<compile_context>
chip_gen: v6e
topology: v6e:2x2x1
jax: 0.10.0
libtpu: 0.0.40
codegen_flags: <defaults>
</compile_context>

<pallas_src>
import jax
import jax.numpy as jnp
from jax.experimental import pallas as pl
from jax.experimental.pallas import tpu as pltpu

EPS = 1e-5


def _fused_kernel(x_ref, r_ref, w1_ref, g1_ref, b1_ref,
                  w2_ref, g2_ref, b2_ref, o_ref):
    # x_ref : (240, P)  input, channels-major
    # r_ref : (80, P)   residual
    # w1_ref: (80, 240) conv1 weight (O, I) as stored by PyTorch
    # w2_ref: (480, 80) conv2 weight (O, I)
    # g*/b* : (C, 1)    batchnorm gamma / beta
    x = x_ref[...]
    inv_p = jnp.float32(1.0 / x.shape[1])

    # ---- conv2d35 (1x1) == matmul over channels (MXU) --------------------
    y1 = jnp.dot(w1_ref[...], x, preferred_element_type=jnp.float32)   # (80, P)

    # ---- batchnorm2d35 (training-mode batch stats, biased variance) ------
    # Row reductions over the lane axis go to the XLU; MXU stays free.
    s1 = jnp.sum(y1, axis=1, keepdims=True)                            # (80, 1)
    q1 = jnp.sum(y1 * y1, axis=1, keepdims=True)                       # (80, 1)
    mean1 = s1 * inv_p
    var1 = q1 * inv_p - mean1 * mean1
    scale1 = jax.lax.rsqrt(var1 + EPS) * g1_ref[...]
    shift1 = b1_ref[...] - mean1 * scale1

    # normalize + residual add: single fused elementwise pass over (80, P)
    z = y1 * scale1 + shift1 + r_ref[...]

    # ---- conv2d36 (1x1) ---------------------------------------------------
    y2 = jnp.dot(w2_ref[...], z, preferred_element_type=jnp.float32)   # (480, P)

    # ---- batchnorm2d36 ------------------------------------------------------
    s2 = jnp.sum(y2, axis=1, keepdims=True)                            # (480, 1)
    q2 = jnp.sum(y2 * y2, axis=1, keepdims=True)                       # (480, 1)
    mean2 = s2 * inv_p
    var2 = q2 * inv_p - mean2 * mean2
    scale2 = jax.lax.rsqrt(var2 + EPS) * g2_ref[...]
    shift2 = b2_ref[...] - mean2 * scale2

    o_ref[...] = (y2 * scale2 + shift2).astype(o_ref.dtype)


def fused_forward(x114, x107, w1, g1, b1, w2, g2, b2):
    """x114: (N, 240, H, W), x107: (N, 80, H, W) NCHW -> (N, 480, H, W)."""
    n, c_in, h, w = x114.shape
    c_mid = w1.shape[0]
    c_out = w2.shape[0]
    p = n * h * w

    if n == 1:
        # Free reshapes: NCHW with N==1 is already channels-major.
        x_mat = x114.reshape(c_in, p)
        r_mat = x107.reshape(c_mid, p)
    else:
        # General-N fallback: one transpose per input to channels-major.
        x_mat = jnp.transpose(x114, (1, 0, 2, 3)).reshape(c_in, p)
        r_mat = jnp.transpose(x107, (1, 0, 2, 3)).reshape(c_mid, p)

    # Conv weights (O, I, 1, 1) -> (O, I): free reshape, no transpose.
    w1_mat = w1.reshape(c_mid, c_in)
    w2_mat = w2.reshape(c_out, c_mid)

    vmem = pl.BlockSpec(memory_space=pltpu.MemorySpace.VMEM)

    out_mat = pl.pallas_call(
        _fused_kernel,
        out_shape=jax.ShapeDtypeStruct((c_out, p), jnp.float32),
        in_specs=[vmem] * 8,
        out_specs=vmem,
    )(x_mat, r_mat, w1_mat, g1.reshape(-1, 1), b1.reshape(-1, 1),
      w2_mat, g2.reshape(-1, 1), b2.reshape(-1, 1))

    if n == 1:
        return out_mat.reshape(n, c_out, h, w)          # free reshape
    return jnp.transpose(out_mat.reshape(c_out, n, h, w), (1, 0, 2, 3))


def _reference(x114, x107, w1, g1, b1, w2, g2, b2):
    """Pure-JAX reference with PyTorch training-mode BN semantics."""
    def conv1x1(x, wt):
        return jnp.einsum('nchw,oc->nohw', x, wt.reshape(wt.shape[0], wt.shape[1]))

    def bn(x, g, b):
        m = jnp.mean(x, axis=(0, 2, 3), keepdims=True)
        v = jnp.mean((x - m) ** 2, axis=(0, 2, 3), keepdims=True)
        return (x - m) * jax.lax.rsqrt(v + EPS) * g.reshape(1, -1, 1, 1) \
            + b.reshape(1, -1, 1, 1)

    y = bn(conv1x1(x114, w1), g1, b1) + x107
    return bn(conv1x1(y, w2), g2, b2)


if __name__ == "__main__":
    key = jax.random.PRNGKey(0)
    k = jax.random.split(key, 8)

    # Shapes from the PyTorch module's forward
    x114 = jax.random.normal(k[0], (1, 240, 14, 14), dtype=jnp.float32)
    x107 = jax.random.normal(k[1], (1, 80, 14, 14), dtype=jnp.float32)

    # Deterministic parameters (conv weights: (O, I, 1, 1), bn: (C,))
    w1 = jax.random.normal(k[2], (80, 240, 1, 1), dtype=jnp.float32) * 0.05
    w2 = jax.random.normal(k[3], (480, 80, 1, 1), dtype=jnp.float32) * 0.05
    g1 = 1.0 + 0.1 * jax.random.normal(k[4], (80,), dtype=jnp.float32)
    b1 = 0.1 * jax.random.normal(k[5], (80,), dtype=jnp.float32)
    g2 = 1.0 + 0.1 * jax.random.normal(k[6], (480,), dtype=jnp.float32)
    b2 = 0.1 * jax.random.normal(k[7], (480,), dtype=jnp.float32)

    out = fused_forward(x114, x107, w1, g1, b1, w2, g2, b2)
    jax.block_until_ready(out)

    ref = _reference(x114, x107, w1, g1, b1, w2, g2, b2)
    assert out.shape == (1, 480, 14, 14)
    assert jnp.allclose(out, ref, atol=1e-3, rtol=1e-3)

    print("KERNEL_OK")
</pallas_src>

<mosaic_0001>
module attributes {stable_mosaic.version = 11 : i64} {
  func.func @_fused_kernel(%arg0: memref<240x196xf32, #tpu.memory_space<vmem>>, %arg1: memref<80x196xf32, #tpu.memory_space<vmem>>, %arg2: memref<80x240xf32, #tpu.memory_space<vmem>>, %arg3: memref<80x1xf32, #tpu.memory_space<vmem>>, %arg4: memref<80x1xf32, #tpu.memory_space<vmem>>, %arg5: memref<480x80xf32, #tpu.memory_space<vmem>>, %arg6: memref<480x1xf32, #tpu.memory_space<vmem>>, %arg7: memref<480x1xf32, #tpu.memory_space<vmem>>, %arg8: memref<480x196xf32, #tpu.memory_space<vmem>>) attributes {dimension_semantics = [], scalar_prefetch = 0 : i64, scratch_operands = 0 : i64, tpu.core_type = #tpu.core_type<tc>} {
    %c0 = arith.constant 0 : index
    %c0_0 = arith.constant 0 : index
    %0 = vector.load %arg0[%c0, %c0_0] : memref<240x196xf32, #tpu.memory_space<vmem>>, vector<240x196xf32>
    %c0_1 = arith.constant 0 : index
    %c0_2 = arith.constant 0 : index
    %1 = vector.load %arg2[%c0_1, %c0_2] : memref<80x240xf32, #tpu.memory_space<vmem>>, vector<80x240xf32>
    %cst = arith.constant dense<0.000000e+00> : vector<80x196xf32>
    %2 = tpu.matmul %1, %0, %cst {dimension_numbers = #tpu.dot_dimension_numbers<[1], [0], [0], [1], [0, 0, 1, 1], [], []>} : vector<80x240xf32>, vector<240x196xf32>, vector<80x196xf32> -> vector<80x196xf32>
    %cst_3 = arith.constant dense<0.000000e+00> : vector<80xf32>
    %3 = vector.multi_reduction <add>, %2, %cst_3 [1] : vector<80x196xf32> to vector<80xf32>
    %4 = vector.shape_cast %3 : vector<80xf32> to vector<80x1xf32>
    %5 = arith.mulf %2, %2 : vector<80x196xf32>
    %cst_4 = arith.constant dense<0.000000e+00> : vector<80xf32>
    %6 = vector.multi_reduction <add>, %5, %cst_4 [1] : vector<80x196xf32> to vector<80xf32>
    %7 = vector.shape_cast %6 : vector<80xf32> to vector<80x1xf32>
    %cst_5 = arith.constant 0.00510204071 : f32
    %8 = vector.broadcast %cst_5 : f32 to vector<80x1xf32>
    %9 = arith.mulf %4, %8 : vector<80x1xf32>
    %cst_6 = arith.constant 0.00510204071 : f32
    %10 = vector.broadcast %cst_6 : f32 to vector<80x1xf32>
    %11 = arith.mulf %7, %10 : vector<80x1xf32>
    %12 = arith.mulf %9, %9 : vector<80x1xf32>
    %13 = arith.subf %11, %12 : vector<80x1xf32>
    %cst_7 = arith.constant 9.99999974E-6 : f32
    %14 = vector.broadcast %cst_7 : f32 to vector<80x1xf32>
    %15 = arith.addf %13, %14 : vector<80x1xf32>
    %16 = math.rsqrt %15 : vector<80x1xf32>
    %c0_8 = arith.constant 0 : index
    %c0_9 = arith.constant 0 : index
    %17 = vector.load %arg3[%c0_8, %c0_9] : memref<80x1xf32, #tpu.memory_space<vmem>>, vector<80x1xf32>
    %18 = arith.mulf %16, %17 : vector<80x1xf32>
    %c0_10 = arith.constant 0 : index
    %c0_11 = arith.constant 0 : index
    %19 = vector.load %arg4[%c0_10, %c0_11] : memref<80x1xf32, #tpu.memory_space<vmem>>, vector<80x1xf32>
    %20 = arith.mulf %9, %18 : vector<80x1xf32>
    %21 = arith.subf %19, %20 : vector<80x1xf32>
    %22 = vector.broadcast %18 : vector<80x1xf32> to vector<80x196xf32>
    %23 = arith.mulf %2, %22 : vector<80x196xf32>
    %24 = vector.broadcast %21 : vector<80x1xf32> to vector<80x196xf32>
    %25 = arith.addf %23, %24 : vector<80x196xf32>
    %c0_12 = arith.constant 0 : index
    %c0_13 = arith.constant 0 : index
    %26 = vector.load %arg1[%c0_12, %c0_13] : memref<80x196xf32, #tpu.memory_space<vmem>>, vector<80x196xf32>
    %27 = arith.addf %25, %26 : vector<80x196xf32>
    %c0_14 = arith.constant 0 : index
    %c0_15 = arith.constant 0 : index
    %28 = vector.load %arg5[%c0_14, %c0_15] : memref<480x80xf32, #tpu.memory_space<vmem>>, vector<480x80xf32>
    %cst_16 = arith.constant dense<0.000000e+00> : vector<480x196xf32>
    %29 = tpu.matmul %28, %27, %cst_16 {dimension_numbers = #tpu.dot_dimension_numbers<[1], [0], [0], [1], [0, 0, 1, 1], [], []>} : vector<480x80xf32>, vector<80x196xf32>, vector<480x196xf32> -> vector<480x196xf32>
    %cst_17 = arith.constant dense<0.000000e+00> : vector<480xf32>
    %30 = vector.multi_reduction <add>, %29, %cst_17 [1] : vector<480x196xf32> to vector<480xf32>
    %31 = vector.shape_cast %30 : vector<480xf32> to vector<480x1xf32>
    %32 = arith.mulf %29, %29 : vector<480x196xf32>
    %cst_18 = arith.constant dense<0.000000e+00> : vector<480xf32>
    %33 = vector.multi_reduction <add>, %32, %cst_18 [1] : vector<480x196xf32> to vector<480xf32>
    %34 = vector.shape_cast %33 : vector<480xf32> to vector<480x1xf32>
    %cst_19 = arith.constant 0.00510204071 : f32
    %35 = vector.broadcast %cst_19 : f32 to vector<480x1xf32>
    %36 = arith.mulf %31, %35 : vector<480x1xf32>
    %cst_20 = arith.constant 0.00510204071 : f32
    %37 = vector.broadcast %cst_20 : f32 to vector<480x1xf32>
    %38 = arith.mulf %34, %37 : vector<480x1xf32>
    %39 = arith.mulf %36, %36 : vector<480x1xf32>
    %40 = arith.subf %38, %39 : vector<480x1xf32>
    %cst_21 = arith.constant 9.99999974E-6 : f32
    %41 = vector.broadcast %cst_21 : f32 to vector<480x1xf32>
    %42 = arith.addf %40, %41 : vector<480x1xf32>
    %43 = math.rsqrt %42 : vector<480x1xf32>
    %c0_22 = arith.constant 0 : index
    %c0_23 = arith.constant 0 : index
    %44 = vector.load %arg6[%c0_22, %c0_23] : memref<480x1xf32, #tpu.memory_space<vmem>>, vector<480x1xf32>
    %45 = arith.mulf %43, %44 : vector<480x1xf32>
    %c0_24 = arith.constant 0 : index
    %c0_25 = arith.constant 0 : index
    %46 = vector.load %arg7[%c0_24, %c0_25] : memref<480x1xf32, #tpu.memory_space<vmem>>, vector<480x1xf32>
    %47 = arith.mulf %36, %45 : vector<480x1xf32>
    %48 = arith.subf %46, %47 : vector<480x1xf32>
    %49 = vector.broadcast %45 : vector<480x1xf32> to vector<480x196xf32>
    %50 = arith.mulf %29, %49 : vector<480x196xf32>
    %51 = vector.broadcast %48 : vector<480x1xf32> to vector<480x196xf32>
    %52 = arith.addf %50, %51 : vector<480x196xf32>
    %c0_26 = arith.constant 0 : index
    %c0_27 = arith.constant 0 : index
    %53 = vector.load %arg8[%c0_26, %c0_27] : memref<480x196xf32, #tpu.memory_space<vmem>>, vector<480x196xf32>
    tpu.vector_store %arg8[%c0_26, %c0_27], %52 {strides = array<i32>} : memref<480x196xf32, #tpu.memory_space<vmem>>, vector<480x196xf32>,
    return
  }
}

</mosaic_0001>

<llo_original>
// kernel: tpu_custom_call.1
$region0: #{tpu_custom_call.1}
  #allocation0 [shape = 'u32[]', space=smem, size = 0x4, offset = 0x4, fixed_abs, tag = 'smem constant byte address 0x4 - core index']
  #allocation1 [shape = 'u32[144,128]{1,0:T(1,128)}', space=vmem, size = 0x12000, scoped, tag = 'internal scratch']
  %s0 = inlined_call_operand.vmem [shape: f32[240,196], index: 0, kind: input, shape index: {}]
  %s1 = inlined_call_operand.vmem [shape: f32[80,196], index: 1, kind: input, shape index: {}]
  %s2 = inlined_call_operand.vmem [shape: f32[80,240], index: 2, kind: input, shape index: {}]
  %s3 = inlined_call_operand.vmem [shape: f32[80,1], index: 3, kind: input, shape index: {}]
  %s4 = inlined_call_operand.vmem [shape: f32[80,1], index: 4, kind: input, shape index: {}]
  %s5 = inlined_call_operand.vmem [shape: f32[480,80], index: 5, kind: input, shape index: {}]
  %s6 = inlined_call_operand.vmem [shape: f32[480,1], index: 6, kind: input, shape index: {}]
  %s7 = inlined_call_operand.vmem [shape: f32[480,1], index: 7, kind: input, shape index: {}]
  %s8 = inlined_call_operand.vmem [shape: f32[480,196], index: 8, kind: output, shape index: {}]
  %s9 = sld [smem:[#allocation0]]
  $region42: #{tpu_custom_call.1} parent=0
    _
  %s11 = ssub.s32 1, %s9
  %s12 = scalar_select 0, %s11, %s9
  // Predicated region
  $region2: #{tpu_custom_call.1} parent=0 // pred_check
    _
  $region3: #{tpu_custom_call.1} parent=0 // pred_check_branch
    %14 = sbr.rel (0) target = $region5
  $region4: #{tpu_custom_call.1} parent=0 // pred_region
    _
  $region5: #{tpu_custom_call.1} parent=0 // pred_fallthru
    _
  // Predicated region
  $region6: #{tpu_custom_call.1} parent=0 // pred_check
    _
  $region7: #{tpu_custom_call.1} parent=0 // pred_check_branch
    %16 = sbr.rel (0) target = $region9
  $region8: #{tpu_custom_call.1} parent=0 // pred_region
    _
  $region9: #{tpu_custom_call.1} parent=0 // pred_fallthru
    _
  // Predicated region
  $region10: #{tpu_custom_call.1} parent=0 // pred_check
    _
  $region11: #{tpu_custom_call.1} parent=0 // pred_check_branch
    %18 = sbr.rel (0) target = $region13
  $region12: #{tpu_custom_call.1} parent=0 // pred_region
    _
  $region13: #{tpu_custom_call.1} parent=0 // pred_fallthru
    _
  // Predicated region
  $region14: #{tpu_custom_call.1} parent=0 // pred_check
    _
  $region15: #{tpu_custom_call.1} parent=0 // pred_check_branch
    %20 = sbr.rel (0) target = $region17
  $region16: #{tpu_custom_call.1} parent=0 // pred_region
    _
  $region17: #{tpu_custom_call.1} parent=0 // pred_fallthru
    _
  // Predicated region
  $region18: #{tpu_custom_call.1} parent=0 // pred_check
    _
  $region19: #{tpu_custom_call.1} parent=0 // pred_check_branch
    %22 = sbr.rel (0) target = $region21
  $region20: #{tpu_custom_call.1} parent=0 // pred_region
    _
  $region21: #{tpu_custom_call.1} parent=0 // pred_fallthru
    _
  // Predicated region
  $region22: #{tpu_custom_call.1} parent=0 // pred_check
    _
  $region23: #{tpu_custom_call.1} parent=0 // pred_check_branch
    %24 = sbr.rel (0) target = $region25
  $region24: #{tpu_custom_call.1} parent=0 // pred_region
    _
  $region25: #{tpu_custom_call.1} parent=0 // pred_fallthru
    _
  // Predicated region
  $region26: #{tpu_custom_call.1} parent=0 // pred_check
    _
  $region27: #{tpu_custom_call.1} parent=0 // pred_check_branch
    %26 = sbr.rel (0) target = $region29
  $region28: #{tpu_custom_call.1} parent=0 // pred_region
    _
  $region29: #{tpu_custom_call.1} parent=0 // pred_fallthru
    _
  // Predicated region
  $region30: #{tpu_custom_call.1} parent=0 // pred_check
    _
  $region31: #{tpu_custom_call.1} parent=0 // pred_check_branch
    %28 = sbr.rel (0) target = $region33
  $region32: #{tpu_custom_call.1} parent=0 // pred_region
    _
  $region33: #{tpu_custom_call.1} parent=0 // pred_fallthru
    _
  %v29 = vld [vmem:[%s0] sm:$0xff]
  %v30 = vld [vmem:[%s0 + $0x8] sm:$0xff]
  %v31 = vld [vmem:[%s0 + $0x10] sm:$0xff]
  %v32 = vld [vmem:[%s0 + $0x18] sm:$0xff]
  %v33 = vld [vmem:[%s0 + $0x20] sm:$0xff]
  %v34 = vld [vmem:[%s0 + $0x28] sm:$0xff]
  %v35 = vld [vmem:[%s0 + $0x30] sm:$0xff]
  %v36 = vld [vmem:[%s0 + $0x38] sm:$0xff]
  %v37 = vld [vmem:[%s0 + $0x40] sm:$0xff]
  %v38 = vld [vmem:[%s0 + $0x48] sm:$0xff]
  %v39 = vld [vmem:[%s0 + $0x50] sm:$0xff]
  %v40 = vld [vmem:[%s0 + $0x58] sm:$0xff]
  %v41 = vld [vmem:[%s0 + $0x60] sm:$0xff]
  %v42 = vld [vmem:[%s0 + $0x68] sm:$0xff]
  %v43 = vld [vmem:[%s0 + $0x70] sm:$0xff]
  %v44 = vld [vmem:[%s0 + $0x78] sm:$0xff]
  %v45 = vld [vmem:[%s0 + $0x80] sm:$0xff]
  %v46 = vld [vmem:[%s0 + $0x88] sm:$0xff]
  %v47 = vld [vmem:[%s0 + $0x90] sm:$0xff]
  %v48 = vld [vmem:[%s0 + $0x98] sm:$0xff]
  %v49 = vld [vmem:[%s0 + $0xa0] sm:$0xff]
  %v50 = vld [vmem:[%s0 + $0xa8] sm:$0xff]
  %v51 = vld [vmem:[%s0 + $0xb0] sm:$0xff]
  %v52 = vld [vmem:[%s0 + $0xb8] sm:$0xff]
  %v53 = vld [vmem:[%s0 + $0xc0] sm:$0xff]
  %v54 = vld [vmem:[%s0 + $0xc8] sm:$0xff]
  %v55 = vld [vmem:[%s0 + $0xd0] sm:$0xff]
  %v56 = vld [vmem:[%s0 + $0xd8] sm:$0xff]
  %v57 = vld [vmem:[%s0 + $0xe0] sm:$0xff]
  %v58 = vld [vmem:[%s0 + $0xe8] sm:$0xff]
  %v59 = vld [vmem:[%s0 + $0xf0] sm:$0xff]
  %v60 = vld [vmem:[%s0 + $0xf8] sm:$0xff]
  %v61 = vld [vmem:[%s0 + $0x100] sm:$0xff]
  %v62 = vld [vmem:[%s0 + $0x108] sm:$0xff]
  %v63 = vld [vmem:[%s0 + $0x110] sm:$0xff]
  %v64 = vld [vmem:[%s0 + $0x118] sm:$0xff]
  %v65 = vld [vmem:[%s0 + $0x120] sm:$0xff]
  %v66 = vld [vmem:[%s0 + $0x128] sm:$0xff]
  %v67 = vld [vmem:[%s0 + $0x130] sm:$0xff]
  %v68 = vld [vmem:[%s0 + $0x138] sm:$0xff]
  %v69 = vld [vmem:[%s0 + $0x140] sm:$0xff]
  %v70 = vld [vmem:[%s0 + $0x148] sm:$0xff]
  %v71 = vld [vmem:[%s0 + $0x150] sm:$0xff]
  %v72 = vld [vmem:[%s0 + $0x158] sm:$0xff]
  %v73 = vld [vmem:[%s0 + $0x160] sm:$0xff]
  %v74 = vld [vmem:[%s0 + $0x168] sm:$0xff]
  %v75 = vld [vmem:[%s0 + $0x170] sm:$0xff]
  %v76 = vld [vmem:[%s0 + $0x178] sm:$0xff]
  %v77 = vld [vmem:[%s0 + $0x180] sm:$0xff]
  %v78 = vld [vmem:[%s0 + $0x188] sm:$0xff]
  %v79 = vld [vmem:[%s0 + $0x190] sm:$0xff]
  %v80 = vld [vmem:[%s0 + $0x198] sm:$0xff]
  %v81 = vld [vmem:[%s0 + $0x1a0] sm:$0xff]
  %v82 = vld [vmem:[%s0 + $0x1a8] sm:$0xff]
  %v83 = vld [vmem:[%s0 + $0x1b0] sm:$0xff]
  %v84 = vld [vmem:[%s0 + $0x1b8] sm:$0xff]
  %v85 = vld [vmem:[%s0 + $0x1c0] sm:$0xff]
  %v86 = vld [vmem:[%s0 + $0x1c8] sm:$0xff]
  %v87 = vld [vmem:[%s0 + $0x1d0] sm:$0xff]
  %v88 = vld [vmem:[%s0 + $0x1d8] sm:$0xff]
  %v89 = vld [vmem:[%s2] sm:$0xff]
  %v90 = vld [vmem:[%s2 + $0x8] sm:$0xff]
  %v91 = vld [vmem:[%s2 + $0x10] sm:$0xff]
  %v92 = vld [vmem:[%s2 + $0x18] sm:$0xff]
  %v93 = vld [vmem:[%s2 + $0x20] sm:$0xff]
  %v94 = vld [vmem:[%s2 + $0x28] sm:$0xff]
  %v95 = vld [vmem:[%s2 + $0x30] sm:$0xff]
  %v96 = vld [vmem:[%s2 + $0x38] sm:$0xff]
  %v97 = vld [vmem:[%s2 + $0x40] sm:$0xff]
  %v98 = vld [vmem:[%s2 + $0x48] sm:$0xff]
  %v99 = vld [vmem:[%s2 + $0x50] sm:$0xff]
  %v100 = vld [vmem:[%s2 + $0x58] sm:$0xff]
  %v101 = vld [vmem:[%s2 + $0x60] sm:$0xff]
  %v102 = vld [vmem:[%s2 + $0x68] sm:$0xff]
  %v103 = vld [vmem:[%s2 + $0x70] sm:$0xff]
  %v104 = vld [vmem:[%s2 + $0x78] sm:$0xff]
  %v105 = vld [vmem:[%s2 + $0x80] sm:$0xff]
  %v106 = vld [vmem:[%s2 + $0x88] sm:$0xff]
  %v107 = vld [vmem:[%s2 + $0x90] sm:$0xff]
  %v108 = vld [vmem:[%s2 + $0x98] sm:$0xff]
  %vm109 = vcmask 916480
  %v111 = vsel %vm109, %v90, 0
  %v114 = vsel %vm109, %v92, 0
  %v117 = vsel %vm109, %v94, 0
  %v120 = vsel %vm109, %v96, 0
  %v123 = vsel %vm109, %v98, 0
  %v126 = vsel %vm109, %v100, 0
  %v129 = vsel %vm109, %v102, 0
  %v132 = vsel %vm109, %v104, 0
  %v135 = vsel %vm109, %v106, 0
  %v138 = vsel %vm109, %v108, 0
  %140 = vmatprep.subr.mxu0 %v60
  %141 = vmatpush1.msra.mxu0 %v59
  %142 = vmatprep.subr.mxu0 %v58
  %143 = vmatpush1.msra.mxu0 %v57
  %144 = vmatprep.subr.mxu0 %v56
  %145 = vmatpush1.msra.mxu0 %v55
  %146 = vmatprep.subr.mxu0 %v54
  %147 = vmatpush1.msra.mxu0 %v53
  %148 = vmatprep.subr.mxu0 %v52
  %149 = vmatpush1.msra.mxu0 %v51
  %150 = vmatprep.subr.mxu0 %v50
  %151 = vmatpush1.msra.mxu0 %v49
  %152 = vmatprep.subr.mxu0 %v48
  %153 = vmatpush1.msra.mxu0 %v47
  %154 = vmatprep.subr.mxu0 %v46
  %155 = vmatpush1.msra.mxu0 %v45
  %156 = vmatprep.subr.mxu0 %v44
  %157 = vmatpush1.msra.mxu0 %v43
  %158 = vmatprep.subr.mxu0 %v42
  %159 = vmatpush1.msra.mxu0 %v41
  %160 = vmatprep.subr.mxu0 %v40
  %161 = vmatpush1.msra.mxu0 %v39
  %162 = vmatprep.subr.mxu0 %v38
  %163 = vmatpush1.msra.mxu0 %v37
  %164 = vmatprep.subr.mxu0 %v36
  %165 = vmatpush1.msra.mxu0 %v35
  %166 = vmatprep.subr.mxu0 %v34
  %167 = vmatpush1.msra.mxu0 %v33
  %168 = vmatprep.subr.mxu0 %v32
  %169 = vmatpush1.msra.mxu0 %v31
  %170 = vmatprep.subr.mxu0 %v30
  %171 = vmatpush1.msra.mxu0 %v29
  %172 = vmatprep.subr.mxu0 0.0
  %173 = vmatpush2.msra.mxu0 0.0
  %174 = vmatprep.subr.mxu0 0.0
  %175 = vmatpush2.msra.mxu0 0.0
  %176 = vmatprep.subr.mxu0 %v88
  %177 = vmatpush2.msra.mxu0 %v87
  %178 = vmatprep.subr.mxu0 %v86
  %179 = vmatpush2.msra.mxu0 %v85
  %180 = vmatprep.subr.mxu0 %v84
  %181 = vmatpush2.msra.mxu0 %v83
  %182 = vmatprep.subr.mxu0 %v82
  %183 = vmatpush2.msra.mxu0 %v81
  %184 = vmatprep.subr.mxu0 %v80
  %185 = vmatpush2.msra.mxu0 %v79
  %186 = vmatprep.subr.mxu0 %v78
  %187 = vmatpush2.msra.mxu0 %v77
  %188 = vmatprep.subr.mxu0 %v76
  %189 = vmatpush2.msra.mxu0 %v75
  %190 = vmatprep.subr.mxu0 %v74
  %191 = vmatpush2.msra.mxu0 %v73
  %192 = vmatprep.subr.mxu0 %v72
  %193 = vmatpush2.msra.mxu0 %v71
  %194 = vmatprep.subr.mxu0 %v70
  %195 = vmatpush2.msra.mxu0 %v69
  %196 = vmatprep.subr.mxu0 %v68
  %197 = vmatpush2.msra.mxu0 %v67
  %198 = vmatprep.subr.mxu0 %v66
  %199 = vmatpush2.msra.mxu0 %v65
  %200 = vmatprep.subr.mxu0 %v64
  %201 = vmatpush2.msra.mxu0 %v63
  %202 = vmatprep.subr.mxu0 %v62
  %203 = vmatpush2.msra.mxu0 %v61
  %204 = vmatprep.mubr.f32.mxu0 %v111
  %205 = vmatmul.mubr.f32.gmra.mxu0 %v89
  %v206 = vpop.f32.mrf.mxu0
  %v207 = vadd.f32 0.0, %v206
  %v208 = vpop.f32.mrf.mxu0
  %v209 = vadd.f32 0.0, %v208
  %210 = vmatprep.mubr.f32.mxu0 %v114
  %211 = vmatmul.mubr.f32.gmra.mxu0 %v91
  %v212 = vpop.f32.mrf.mxu0
  %v213 = vadd.f32 0.0, %v212
  %v214 = vpop.f32.mrf.mxu0
  %v215 = vadd.f32 0.0, %v214
  %216 = vmatprep.mubr.f32.mxu0 %v117
  %217 = vmatmul.mubr.f32.gmra.mxu0 %v93
  %v218 = vpop.f32.mrf.mxu0
  %v219 = vadd.f32 0.0, %v218
  %v220 = vpop.f32.mrf.mxu0
  %v221 = vadd.f32 0.0, %v220
  %222 = vmatprep.mubr.f32.mxu0 %v120
  %223 = vmatmul.mubr.f32.gmra.mxu0 %v95
  %v224 = vpop.f32.mrf.mxu0
  %v225 = vadd.f32 0.0, %v224
  %v226 = vpop.f32.mrf.mxu0
  %v227 = vadd.f32 0.0, %v226
  %228 = vmatprep.mubr.f32.mxu0 %v123
  %229 = vmatmul.mubr.f32.gmra.mxu0 %v97
  %v230 = vpop.f32.mrf.mxu0
  %v231 = vadd.f32 0.0, %v230
  %v232 = vpop.f32.mrf.mxu0
  %v233 = vadd.f32 0.0, %v232
  %234 = vmatprep.mubr.f32.mxu0 %v126
  %235 = vmatmul.mubr.f32.gmra.mxu0 %v99
  %v236 = vpop.f32.mrf.mxu0
  %v237 = vadd.f32 0.0, %v236
  %v238 = vpop.f32.mrf.mxu0
  %v239 = vadd.f32 0.0, %v238
  %240 = vmatprep.mubr.f32.mxu0 %v129
  %241 = vmatmul.mubr.f32.gmra.mxu0 %v101
  %v242 = vpop.f32.mrf.mxu0
  %v243 = vadd.f32 0.0, %v242
  %v244 = vpop.f32.mrf.mxu0
  %v245 = vadd.f32 0.0, %v244
  %246 = vmatprep.mubr.f32.mxu0 %v132
  %247 = vmatmul.mubr.f32.gmra.mxu0 %v103
  %v248 = vpop.f32.mrf.mxu0
  %v249 = vadd.f32 0.0, %v248
  %v250 = vpop.f32.mrf.mxu0
  %v251 = vadd.f32 0.0, %v250
  %252 = vmatprep.mubr.f32.mxu0 %v135
  %253 = vmatmul.mubr.f32.gmra.mxu0 %v105
  %v254 = vpop.f32.mrf.mxu0
  %v255 = vadd.f32 0.0, %v254
  %v256 = vpop.f32.mrf.mxu0
  %v257 = vadd.f32 0.0, %v256
  %258 = vmatprep.mubr.f32.mxu0 %v138
  %259 = vmatmul.mubr.f32.gmra.mxu0 %v107
  %v260 = vpop.f32.mrf.mxu0
  %v261 = vadd.f32 0.0, %v260
  %v262 = vpop.f32.mrf.mxu0
  %v263 = vadd.f32 0.0, %v262
  %264 = vdwg.mxu0
  %vm265 = vcmask 556032
  %v266 = vsel %vm265, %v209, 0.0
  %v267 = vadd.f32 %v207, %v266
  %268 = vadd.xlane.f32.xlu0 %v267
  %v269 = vpop.xlane.xlu0 %268
  %v270 = vsel %vm265, %v215, 0.0
  %v271 = vadd.f32 %v213, %v270
  %272 = vadd.xlane.f32.xlu0 %v271
  %v273 = vpop.xlane.xlu0 %272
  %v274 = vsel %vm265, %v221, 0.0
  %v275 = vadd.f32 %v219, %v274
  %276 = vadd.xlane.f32.xlu0 %v275
  %v277 = vpop.xlane.xlu0 %276
  %v278 = vsel %vm265, %v227, 0.0
  %v279 = vadd.f32 %v225, %v278
  %280 = vadd.xlane.f32.xlu0 %v279
  %v281 = vpop.xlane.xlu0 %280
  %v282 = vsel %vm265, %v233, 0.0
  %v283 = vadd.f32 %v231, %v282
  %284 = vadd.xlane.f32.xlu0 %v283
  %v285 = vpop.xlane.xlu0 %284
  %v286 = vsel %vm265, %v239, 0.0
  %v287 = vadd.f32 %v237, %v286
  %288 = vadd.xlane.f32.xlu0 %v287
  %v289 = vpop.xlane.xlu0 %288
  %v290 = vsel %vm265, %v245, 0.0
  %v291 = vadd.f32 %v243, %v290
  %292 = vadd.xlane.f32.xlu0 %v291
  %v293 = vpop.xlane.xlu0 %292
  %v294 = vsel %vm265, %v251, 0.0
  %v295 = vadd.f32 %v249, %v294
  %296 = vadd.xlane.f32.xlu0 %v295
  %v297 = vpop.xlane.xlu0 %296
  %v298 = vsel %vm265, %v257, 0.0
  %v299 = vadd.f32 %v255, %v298
  %300 = vadd.xlane.f32.xlu0 %v299
  %v301 = vpop.xlane.xlu0 %300
  %v302 = vsel %vm265, %v263, 0.0
  %v303 = vadd.f32 %v261, %v302
  %304 = vadd.xlane.f32.xlu0 %v303
  %v305 = vpop.xlane.xlu0 %304
  %v306 = vmul.f32 %v207, %v207
  %v307 = vmul.f32 %v209, %v209
  %v308 = vmul.f32 %v213, %v213
  %v309 = vmul.f32 %v215, %v215
  %v310 = vmul.f32 %v219, %v219
  %v311 = vmul.f32 %v221, %v221
  %v312 = vmul.f32 %v225, %v225
  %v313 = vmul.f32 %v227, %v227
  %v314 = vmul.f32 %v231, %v231
  %v315 = vmul.f32 %v233, %v233
  %v316 = vmul.f32 %v237, %v237
  %v317 = vmul.f32 %v239, %v239
  %v318 = vmul.f32 %v243, %v243
  %v319 = vmul.f32 %v245, %v245
  %v320 = vmul.f32 %v249, %v249
  %v321 = vmul.f32 %v251, %v251
  %v322 = vmul.f32 %v255, %v255
  %v323 = vmul.f32 %v257, %v257
  %v324 = vmul.f32 %v261, %v261
  %v325 = vmul.f32 %v263, %v263
  %v326 = vsel %vm265, %v307, 0.0
  %v327 = vadd.f32 %v306, %v326
  %328 = vadd.xlane.f32.xlu0 %v327
  %v329 = vpop.xlane.xlu0 %328
  %v330 = vsel %vm265, %v309, 0.0
  %v331 = vadd.f32 %v308, %v330
  %332 = vadd.xlane.f32.xlu0 %v331
  %v333 = vpop.xlane.xlu0 %332
  %v334 = vsel %vm265, %v311, 0.0
  %v335 = vadd.f32 %v310, %v334
  %336 = vadd.xlane.f32.xlu0 %v335
  %v337 = vpop.xlane.xlu0 %336
  %v338 = vsel %vm265, %v313, 0.0
  %v339 = vadd.f32 %v312, %v338
  %340 = vadd.xlane.f32.xlu0 %v339
  %v341 = vpop.xlane.xlu0 %340
  %v342 = vsel %vm265, %v315, 0.0
  %v343 = vadd.f32 %v314, %v342
  %344 = vadd.xlane.f32.xlu0 %v343
  %v345 = vpop.xlane.xlu0 %344
  %v346 = vsel %vm265, %v317, 0.0
  %v347 = vadd.f32 %v316, %v346
  %348 = vadd.xlane.f32.xlu0 %v347
  %v349 = vpop.xlane.xlu0 %348
  %v350 = vsel %vm265, %v319, 0.0
  %v351 = vadd.f32 %v318, %v350
  %352 = vadd.xlane.f32.xlu0 %v351
  %v353 = vpop.xlane.xlu0 %352
  %v354 = vsel %vm265, %v321, 0.0
  %v355 = vadd.f32 %v320, %v354
  %356 = vadd.xlane.f32.xlu0 %v355
  %v357 = vpop.xlane.xlu0 %356
  %v358 = vsel %vm265, %v323, 0.0
  %v359 = vadd.f32 %v322, %v358
  %360 = vadd.xlane.f32.xlu0 %v359
  %v361 = vpop.xlane.xlu0 %360
  %v362 = vsel %vm265, %v325, 0.0
  %v363 = vadd.f32 %v324, %v362
  %364 = vadd.xlane.f32.xlu0 %v363
  %v365 = vpop.xlane.xlu0 %364
  %v366 = vmul.f32 %v269, 0.0051020407
  %v367 = vmul.f32 %v273, 0.0051020407
  %v368 = vmul.f32 %v277, 0.0051020407
  %v369 = vmul.f32 %v281, 0.0051020407
  %v370 = vmul.f32 %v285, 0.0051020407
  %v371 = vmul.f32 %v289, 0.0051020407
  %v372 = vmul.f32 %v293, 0.0051020407
  %v373 = vmul.f32 %v297, 0.0051020407
  %v374 = vmul.f32 %v301, 0.0051020407
  %v375 = vmul.f32 %v305, 0.0051020407
  %v376 = vmul.f32 %v329, 0.0051020407
  %v377 = vmul.f32 %v333, 0.0051020407
  %v378 = vmul.f32 %v337, 0.0051020407
  %v379 = vmul.f32 %v341, 0.0051020407
  %v380 = vmul.f32 %v345, 0.0051020407
  %v381 = vmul.f32 %v349, 0.0051020407
  %v382 = vmul.f32 %v353, 0.0051020407
  %v383 = vmul.f32 %v357, 0.0051020407
  %v384 = vmul.f32 %v361, 0.0051020407
  %v385 = vmul.f32 %v365, 0.0051020407
  %v386 = vmul.f32 %v366, %v366
  %v387 = vmul.f32 %v367, %v367
  %v388 = vmul.f32 %v368, %v368
  %v389 = vmul.f32 %v369, %v369
  %v390 = vmul.f32 %v370, %v370
  %v391 = vmul.f32 %v371, %v371
  %v392 = vmul.f32 %v372, %v372
  %v393 = vmul.f32 %v373, %v373
  %v394 = vmul.f32 %v374, %v374
  %v395 = vmul.f32 %v375, %v375
  %v396 = vsub.f32 %v376, %v386
  %v397 = vsub.f32 %v377, %v387
  %v398 = vsub.f32 %v378, %v388
  %v399 = vsub.f32 %v379, %v389
  %v400 = vsub.f32 %v380, %v390
  %v401 = vsub.f32 %v381, %v391
  %v402 = vsub.f32 %v382, %v392
  %v403 = vsub.f32 %v383, %v393
  %v404 = vsub.f32 %v384, %v394
  %v405 = vsub.f32 %v385, %v395
  %v406 = vadd.f32 %v396, 1e-05
  %v407 = vadd.f32 %v397, 1e-05
  %v408 = vadd.f32 %v398, 1e-05
  %v409 = vadd.f32 %v399, 1e-05
  %v410 = vadd.f32 %v400, 1e-05
  %v411 = vadd.f32 %v401, 1e-05
  %v412 = vadd.f32 %v402, 1e-05
  %v413 = vadd.f32 %v403, 1e-05
  %v414 = vadd.f32 %v404, 1e-05
  %v415 = vadd.f32 %v405, 1e-05
  %v416 = vrsqrt.pop %v406
  %v417 = vrsqrt.pop %v407
  %v418 = vrsqrt.pop %v408
  %v419 = vrsqrt.pop %v409
  %v420 = vrsqrt.pop %v410
  %v421 = vrsqrt.pop %v411
  %v422 = vrsqrt.pop %v412
  %v423 = vrsqrt.pop %v413
  %v424 = vrsqrt.pop %v414
  %v425 = vrsqrt.pop %v415
  %v426 = vld [vmem:[%s3] sm:$0xff]
  %v427 = vld [vmem:[%s3 + $0x8] sm:$0xff]
  %v428 = vld [vmem:[%s3 + $0x10] sm:$0xff]
  %v429 = vld [vmem:[%s3 + $0x18] sm:$0xff]
  %v430 = vld [vmem:[%s3 + $0x20] sm:$0xff]
  %v431 = vld [vmem:[%s3 + $0x28] sm:$0xff]
  %v432 = vld [vmem:[%s3 + $0x30] sm:$0xff]
  %v433 = vld [vmem:[%s3 + $0x38] sm:$0xff]
  %v434 = vld [vmem:[%s3 + $0x40] sm:$0xff]
  %v435 = vld [vmem:[%s3 + $0x48] sm:$0xff]
  %v436 = vmul.f32 %v416, %v426
  %v437 = vmul.f32 %v417, %v427
  %v438 = vmul.f32 %v418, %v428
  %v439 = vmul.f32 %v419, %v429
  %v440 = vmul.f32 %v420, %v430
  %v441 = vmul.f32 %v421, %v431
  %v442 = vmul.f32 %v422, %v432
  %v443 = vmul.f32 %v423, %v433
  %v444 = vmul.f32 %v424, %v434
  %v445 = vmul.f32 %v425, %v435
  %v446 = vld [vmem:[%s4] sm:$0xff]
  %v447 = vld [vmem:[%s4 + $0x8] sm:$0xff]
  %v448 = vld [vmem:[%s4 + $0x10] sm:$0xff]
  %v449 = vld [vmem:[%s4 + $0x18] sm:$0xff]
  %v450 = vld [vmem:[%s4 + $0x20] sm:$0xff]
  %v451 = vld [vmem:[%s4 + $0x28] sm:$0xff]
  %v452 = vld [vmem:[%s4 + $0x30] sm:$0xff]
  %v453 = vld [vmem:[%s4 + $0x38] sm:$0xff]
  %v454 = vld [vmem:[%s4 + $0x40] sm:$0xff]
  %v455 = vld [vmem:[%s4 + $0x48] sm:$0xff]
  %v456 = vmul.f32 %v366, %v436
  %v457 = vmul.f32 %v367, %v437
  %v458 = vmul.f32 %v368, %v438
  %v459 = vmul.f32 %v369, %v439
  %v460 = vmul.f32 %v370, %v440
  %v461 = vmul.f32 %v371, %v441
  %v462 = vmul.f32 %v372, %v442
  %v463 = vmul.f32 %v373, %v443
  %v464 = vmul.f32 %v374, %v444
  %v465 = vmul.f32 %v375, %v445
  %v466 = vsub.f32 %v446, %v456
  %v467 = vsub.f32 %v447, %v457
  %v468 = vsub.f32 %v448, %v458
  %v469 = vsub.f32 %v449, %v459
  %v470 = vsub.f32 %v450, %v460
  %v471 = vsub.f32 %v451, %v461
  %v472 = vsub.f32 %v452, %v462
  %v473 = vsub.f32 %v453, %v463
  %v474 = vsub.f32 %v454, %v464
  %v475 = vsub.f32 %v455, %v465
  %477 = vset.pattern.permute.xlu0 0
  %478 = vperm.xlu0 %477, %v436
  %v479 = vpop.permute.xlu0 %478
  %482 = vset.pattern.permute.xlu0 0
  %483 = vperm.xlu0 %482, %v437
  %v484 = vpop.permute.xlu0 %483
  %487 = vset.pattern.permute.xlu0 0
  %488 = vperm.xlu0 %487, %v438
  %v489 = vpop.permute.xlu0 %488
  %492 = vset.pattern.permute.xlu0 0
  %493 = vperm.xlu0 %492, %v439
  %v494 = vpop.permute.xlu0 %493
  %497 = vset.pattern.permute.xlu0 0
  %498 = vperm.xlu0 %497, %v440
  %v499 = vpop.permute.xlu0 %498
  %502 = vset.pattern.permute.xlu0 0
  %503 = vperm.xlu0 %502, %v441
  %v504 = vpop.permute.xlu0 %503
  %507 = vset.pattern.permute.xlu0 0
  %508 = vperm.xlu0 %507, %v442
  %v509 = vpop.permute.xlu0 %508
  %512 = vset.pattern.permute.xlu0 0
  %513 = vperm.xlu0 %512, %v443
  %v514 = vpop.permute.xlu0 %513
  %517 = vset.pattern.permute.xlu0 0
  %518 = vperm.xlu0 %517, %v444
  %v519 = vpop.permute.xlu0 %518
  %522 = vset.pattern.permute.xlu0 0
  %523 = vperm.xlu0 %522, %v445
  %v524 = vpop.permute.xlu0 %523
  %v526 = vmul.f32 %v207, %v479
  %v527 = vmul.f32 %v209, %v479
  %v528 = vmul.f32 %v213, %v484
  %v529 = vmul.f32 %v215, %v484
  %v530 = vmul.f32 %v219, %v489
  %v531 = vmul.f32 %v221, %v489
  %v532 = vmul.f32 %v225, %v494
  %v533 = vmul.f32 %v227, %v494
  %v534 = vmul.f32 %v231, %v499
  %v535 = vmul.f32 %v233, %v499
  %v536 = vmul.f32 %v237, %v504
  %v537 = vmul.f32 %v239, %v504
  %v538 = vmul.f32 %v243, %v509
  %v539 = vmul.f32 %v245, %v509
  %v540 = vmul.f32 %v249, %v514
  %v541 = vmul.f32 %v251, %v514
  %v542 = vmul.f32 %v255, %v519
  %v543 = vmul.f32 %v257, %v519
  %v544 = vmul.f32 %v261, %v524
  %v545 = vmul.f32 %v263, %v524
  %547 = vset.pattern.permute.xlu0 0
  %548 = vperm.xlu0 %547, %v466
  %v549 = vpop.permute.xlu0 %548
  %552 = vset.pattern.permute.xlu0 0
  %553 = vperm.xlu0 %552, %v467
  %v554 = vpop.permute.xlu0 %553
  %557 = vset.pattern.permute.xlu0 0
  %558 = vperm.xlu0 %557, %v468
  %v559 = vpop.permute.xlu0 %558
  %562 = vset.pattern.permute.xlu0 0
  %563 = vperm.xlu0 %562, %v469
  %v564 = vpop.permute.xlu0 %563
  %567 = vset.pattern.permute.xlu0 0
  %568 = vperm.xlu0 %567, %v470
  %v569 = vpop.permute.xlu0 %568
  %572 = vset.pattern.permute.xlu0 0
  %573 = vperm.xlu0 %572, %v471
  %v574 = vpop.permute.xlu0 %573
  %577 = vset.pattern.permute.xlu0 0
  %578 = vperm.xlu0 %577, %v472
  %v579 = vpop.permute.xlu0 %578
  %582 = vset.pattern.permute.xlu0 0
  %583 = vperm.xlu0 %582, %v473
  %v584 = vpop.permute.xlu0 %583
  %587 = vset.pattern.permute.xlu0 0
  %588 = vperm.xlu0 %587, %v474
  %v589 = vpop.permute.xlu0 %588
  %592 = vset.pattern.permute.xlu0 0
  %593 = vperm.xlu0 %592, %v475
  %v594 = vpop.permute.xlu0 %593
  %v596 = vadd.f32 %v526, %v549
  %v597 = vadd.f32 %v527, %v549
  %v598 = vadd.f32 %v528, %v554
  %v599 = vadd.f32 %v529, %v554
  %v600 = vadd.f32 %v530, %v559
  %v601 = vadd.f32 %v531, %v559
  %v602 = vadd.f32 %v532, %v564
  %v603 = vadd.f32 %v533, %v564
  %v604 = vadd.f32 %v534, %v569
  %v605 = vadd.f32 %v535, %v569
  %v606 = vadd.f32 %v536, %v574
  %v607 = vadd.f32 %v537, %v574
  %v608 = vadd.f32 %v538, %v579
  %v609 = vadd.f32 %v539, %v579
  %v610 = vadd.f32 %v540, %v584
  %v611 = vadd.f32 %v541, %v584
  %v612 = vadd.f32 %v542, %v589
  %v613 = vadd.f32 %v543, %v589
  %v614 = vadd.f32 %v544, %v594
  %v615 = vadd.f32 %v545, %v594
  %v616 = vld [vmem:[%s1] sm:$0xff]
  %v617 = vld [vmem:[%s1 + $0x8] sm:$0xff]
  %v618 = vld [vmem:[%s1 + $0x10] sm:$0xff]
  %v619 = vld [vmem:[%s1 + $0x18] sm:$0xff]
  %v620 = vld [vmem:[%s1 + $0x20] sm:$0xff]
  %v621 = vld [vmem:[%s1 + $0x28] sm:$0xff]
  %v622 = vld [vmem:[%s1 + $0x30] sm:$0xff]
  %v623 = vld [vmem:[%s1 + $0x38] sm:$0xff]
  %v624 = vld [vmem:[%s1 + $0x40] sm:$0xff]
  %v625 = vld [vmem:[%s1 + $0x48] sm:$0xff]
  %v626 = vld [vmem:[%s1 + $0x50] sm:$0xff]
  %v627 = vld [vmem:[%s1 + $0x58] sm:$0xff]
  %v628 = vld [vmem:[%s1 + $0x60] sm:$0xff]
  %v629 = vld [vmem:[%s1 + $0x68] sm:$0xff]
  %v630 = vld [vmem:[%s1 + $0x70] sm:$0xff]
  %v631 = vld [vmem:[%s1 + $0x78] sm:$0xff]
  %v632 = vld [vmem:[%s1 + $0x80] sm:$0xff]
  %v633 = vld [vmem:[%s1 + $0x88] sm:$0xff]
  %v634 = vld [vmem:[%s1 + $0x90] sm:$0xff]
  %v635 = vld [vmem:[%s1 + $0x98] sm:$0xff]
  %v636 = vadd.f32 %v596, %v616
  %v637 = vadd.f32 %v597, %v617
  %v638 = vadd.f32 %v598, %v618
  %v639 = vadd.f32 %v599, %v619
  %v640 = vadd.f32 %v600, %v620
  %v641 = vadd.f32 %v601, %v621
  %v642 = vadd.f32 %v602, %v622
  %v643 = vadd.f32 %v603, %v623
  %v644 = vadd.f32 %v604, %v624
  %v645 = vadd.f32 %v605, %v625
  %v646 = vadd.f32 %v606, %v626
  %v647 = vadd.f32 %v607, %v627
  %v648 = vadd.f32 %v608, %v628
  %v649 = vadd.f32 %v609, %v629
  %v650 = vadd.f32 %v610, %v630
  %v651 = vadd.f32 %v611, %v631
  %v652 = vadd.f32 %v612, %v632
  %v653 = vadd.f32 %v613, %v633
  %v654 = vadd.f32 %v614, %v634
  %v655 = vadd.f32 %v615, %v635
  %v656 = vld [vmem:[%s5] sm:$0xff]
  %v657 = vld [vmem:[%s5 + $0x8] sm:$0xff]
  %v658 = vld [vmem:[%s5 + $0x10] sm:$0xff]
  %v659 = vld [vmem:[%s5 + $0x18] sm:$0xff]
  %v660 = vld [vmem:[%s5 + $0x20] sm:$0xff]
  %v661 = vld [vmem:[%s5 + $0x28] sm:$0xff]
  %v662 = vld [vmem:[%s5 + $0x30] sm:$0xff]
  %v663 = vld [vmem:[%s5 + $0x38] sm:$0xff]
  %v664 = vld [vmem:[%s5 + $0x40] sm:$0xff]
  %v665 = vld [vmem:[%s5 + $0x48] sm:$0xff]
  %v666 = vld [vmem:[%s5 + $0x50] sm:$0xff]
  %v667 = vld [vmem:[%s5 + $0x58] sm:$0xff]
  %v668 = vld [vmem:[%s5 + $0x60] sm:$0xff]
  %v669 = vld [vmem:[%s5 + $0x68] sm:$0xff]
  %v670 = vld [vmem:[%s5 + $0x70] sm:$0xff]
  %v671 = vld [vmem:[%s5 + $0x78] sm:$0xff]
  %v672 = vld [vmem:[%s5 + $0x80] sm:$0xff]
  %v673 = vld [vmem:[%s5 + $0x88] sm:$0xff]
  %v674 = vld [vmem:[%s5 + $0x90] sm:$0xff]
  %v675 = vld [vmem:[%s5 + $0x98] sm:$0xff]
  %v676 = vld [vmem:[%s5 + $0xa0] sm:$0xff]
  %v677 = vld [vmem:[%s5 + $0xa8] sm:$0xff]
  %v678 = vld [vmem:[%s5 + $0xb0] sm:$0xff]
  %v679 = vld [vmem:[%s5 + $0xb8] sm:$0xff]
  %v680 = vld [vmem:[%s5 + $0xc0] sm:$0xff]
  %v681 = vld [vmem:[%s5 + $0xc8] sm:$0xff]
  %v682 = vld [vmem:[%s5 + $0xd0] sm:$0xff]
  %v683 = vld [vmem:[%s5 + $0xd8] sm:$0xff]
  %v684 = vld [vmem:[%s5 + $0xe0] sm:$0xff]
  %v685 = vld [vmem:[%s5 + $0xe8] sm:$0xff]
  %v686 = vld [vmem:[%s5 + $0xf0] sm:$0xff]
  %v687 = vld [vmem:[%s5 + $0xf8] sm:$0xff]
  %v688 = vld [vmem:[%s5 + $0x100] sm:$0xff]
  %v689 = vld [vmem:[%s5 + $0x108] sm:$0xff]
  %v690 = vld [vmem:[%s5 + $0x110] sm:$0xff]
  %v691 = vld [vmem:[%s5 + $0x118] sm:$0xff]
  %v692 = vld [vmem:[%s5 + $0x120] sm:$0xff]
  %v693 = vld [vmem:[%s5 + $0x128] sm:$0xff]
  %v694 = vld [vmem:[%s5 + $0x130] sm:$0xff]
  %v695 = vld [vmem:[%s5 + $0x138] sm:$0xff]
  %v696 = vld [vmem:[%s5 + $0x140] sm:$0xff]
  %v697 = vld [vmem:[%s5 + $0x148] sm:$0xff]
  %v698 = vld [vmem:[%s5 + $0x150] sm:$0xff]
  %v699 = vld [vmem:[%s5 + $0x158] sm:$0xff]
  %v700 = vld [vmem:[%s5 + $0x160] sm:$0xff]
  %v701 = vld [vmem:[%s5 + $0x168] sm:$0xff]
  %v702 = vld [vmem:[%s5 + $0x170] sm:$0xff]
  %v703 = vld [vmem:[%s5 + $0x178] sm:$0xff]
  %v704 = vld [vmem:[%s5 + $0x180] sm:$0xff]
  %v705 = vld [vmem:[%s5 + $0x188] sm:$0xff]
  %v706 = vld [vmem:[%s5 + $0x190] sm:$0xff]
  %v707 = vld [vmem:[%s5 + $0x198] sm:$0xff]
  %v708 = vld [vmem:[%s5 + $0x1a0] sm:$0xff]
  %v709 = vld [vmem:[%s5 + $0x1a8] sm:$0xff]
  %v710 = vld [vmem:[%s5 + $0x1b0] sm:$0xff]
  %v711 = vld [vmem:[%s5 + $0x1b8] sm:$0xff]
  %v712 = vld [vmem:[%s5 + $0x1c0] sm:$0xff]
  %v713 = vld [vmem:[%s5 + $0x1c8] sm:$0xff]
  %v714 = vld [vmem:[%s5 + $0x1d0] sm:$0xff]
  %v715 = vld [vmem:[%s5 + $0x1d8] sm:$0xff]
  %vm716 = vcmask 654336
  %v718 = vsel %vm716, %v656, 0
  %v721 = vsel %vm716, %v657, 0
  %v724 = vsel %vm716, %v658, 0
  %v727 = vsel %vm716, %v659, 0
  %v730 = vsel %vm716, %v660, 0
  %v733 = vsel %vm716, %v661, 0
  %v736 = vsel %vm716, %v662, 0
  %v739 = vsel %vm716, %v663, 0
  %v742 = vsel %vm716, %v664, 0
  %v745 = vsel %vm716, %v665, 0
  %v748 = vsel %vm716, %v666, 0
  %v751 = vsel %vm716, %v667, 0
  %v754 = vsel %vm716, %v668, 0
  %v757 = vsel %vm716, %v669, 0
  %v760 = vsel %vm716, %v670, 0
  %v763 = vsel %vm716, %v671, 0
  %v766 = vsel %vm716, %v672, 0
  %v769 = vsel %vm716, %v673, 0
  %v772 = vsel %vm716, %v674, 0
  %v775 = vsel %vm716, %v675, 0
  %v778 = vsel %vm716, %v676, 0
  %v781 = vsel %vm716, %v677, 0
  %v784 = vsel %vm716, %v678, 0
  %v787 = vsel %vm716, %v679, 0
  %v790 = vsel %vm716, %v680, 0
  %v793 = vsel %vm716, %v681, 0
  %v796 = vsel %vm716, %v682, 0
  %v799 = vsel %vm716, %v683, 0
  %v802 = vsel %vm716, %v684, 0
  %v805 = vsel %vm716, %v685, 0
  %v808 = vsel %vm716, %v686, 0
  %v811 = vsel %vm716, %v687, 0
  %v814 = vsel %vm716, %v688, 0
  %v817 = vsel %vm716, %v689, 0
  %v820 = vsel %vm716, %v690, 0
  %v823 = vsel %vm716, %v691, 0
  %v826 = vsel %vm716, %v692, 0
  %v829 = vsel %vm716, %v693, 0
  %v832 = vsel %vm716, %v694, 0
  %v835 = vsel %vm716, %v695, 0
  %v838 = vsel %vm716, %v696, 0
  %v841 = vsel %vm716, %v697, 0
  %v844 = vsel %vm716, %v698, 0
  %v847 = vsel %vm716, %v699, 0
  %v850 = vsel %vm716, %v700, 0
  %v853 = vsel %vm716, %v701, 0
  %v856 = vsel %vm716, %v702, 0
  %v859 = vsel %vm716, %v703, 0
  %v862 = vsel %vm716, %v704, 0
  %v865 = vsel %vm716, %v705, 0
  %v868 = vsel %vm716, %v706, 0
  %v871 = vsel %vm716, %v707, 0
  %v874 = vsel %vm716, %v708, 0
  %v877 = vsel %vm716, %v709, 0
  %v880 = vsel %vm716, %v710, 0
  %v883 = vsel %vm716, %v711, 0
  %v886 = vsel %vm716, %v712, 0
  %v889 = vsel %vm716, %v713, 0
  %v892 = vsel %vm716, %v714, 0
  %v895 = vsel %vm716, %v715, 0
  %897 = vmatprep.subr.mxu0 0.0
  %898 = vmatpush1.msra.mxu0 0.0
  %899 = vmatprep.subr.mxu0 0.0
  %900 = vmatpush1.msra.mxu0 0.0
  %901 = vmatprep.subr.mxu0 0.0
  %902 = vmatpush1.msra.mxu0 0.0
  %903 = vmatprep.subr.mxu0 0.0
  %904 = vmatpush1.msra.mxu0 0.0
  %905 = vmatprep.subr.mxu0 0.0
  %906 = vmatpush1.msra.mxu0 0.0
  %907 = vmatprep.subr.mxu0 0.0
  %908 = vmatpush1.msra.mxu0 0.0
  %909 = vmatprep.subr.mxu0 %v655
  %910 = vmatpush1.msra.mxu0 %v654
  %911 = vmatprep.subr.mxu0 %v653
  %912 = vmatpush1.msra.mxu0 %v652
  %913 = vmatprep.subr.mxu0 %v651
  %914 = vmatpush1.msra.mxu0 %v650
  %915 = vmatprep.subr.mxu0 %v649
  %916 = vmatpush1.msra.mxu0 %v648
  %917 = vmatprep.subr.mxu0 %v647
  %918 = vmatpush1.msra.mxu0 %v646
  %919 = vmatprep.subr.mxu0 %v645
  %920 = vmatpush1.msra.mxu0 %v644
  %921 = vmatprep.subr.mxu0 %v643
  %922 = vmatpush1.msra.mxu0 %v642
  %923 = vmatprep.subr.mxu0 %v641
  %924 = vmatpush1.msra.mxu0 %v640
  %925 = vmatprep.subr.mxu0 %v639
  %926 = vmatpush1.msra.mxu0 %v638
  %927 = vmatprep.subr.mxu0 %v637
  %928 = vmatpush1.msra.mxu0 %v636
  %929 = vmatprep.subr.mxu0 0.0
  %930 = vmatpush2.msra.mxu0 0.0
  %931 = vmatprep.subr.mxu0 0.0
  %932 = vmatpush2.msra.mxu0 0.0
  %933 = vmatprep.subr.mxu0 0.0
  %934 = vmatpush2.msra.mxu0 0.0
  %935 = vmatprep.subr.mxu0 0.0
  %936 = vmatpush2.msra.mxu0 0.0
  %937 = vmatprep.subr.mxu0 0.0
  %938 = vmatpush2.msra.mxu0 0.0
  %939 = vmatprep.subr.mxu0 0.0
  %940 = vmatpush2.msra.mxu0 0.0
  %941 = vmatprep.subr.mxu0 0.0
  %942 = vmatpush2.msra.mxu0 0.0
  %943 = vmatprep.subr.mxu0 0.0
  %944 = vmatpush2.msra.mxu0 0.0
  %945 = vmatprep.subr.mxu0 0.0
  %946 = vmatpush2.msra.mxu0 0.0
  %947 = vmatprep.subr.mxu0 0.0
  %948 = vmatpush2.msra.mxu0 0.0
  %949 = vmatprep.subr.mxu0 0.0
  %950 = vmatpush2.msra.mxu0 0.0
  %951 = vmatprep.subr.mxu0 0.0
  %952 = vmatpush2.msra.mxu0 0.0
  %953 = vmatprep.subr.mxu0 0.0
  %954 = vmatpush2.msra.mxu0 0.0
  %955 = vmatprep.subr.mxu0 0.0
  %956 = vmatpush2.msra.mxu0 0.0
  %957 = vmatprep.subr.mxu0 0.0
  %958 = vmatpush2.msra.mxu0 0.0
  %959 = vmatprep.subr.mxu0 0.0
  %960 = vmatpush2.msra.mxu0 0.0
  %961 = vmatprep.mubr.f32.mxu0 0.0
  %962 = vmatmul.mubr.f32.gmra.mxu0 %v718
  %v963 = vpop.f32.mrf.mxu0
  %v964 = vadd.f32 0.0, %v963
  %v965 = vpop.f32.mrf.mxu0
  %v966 = vadd.f32 0.0, %v965
  %967 = vmatprep.mubr.f32.mxu0 0.0
  %968 = vmatmul.mubr.f32.gmra.mxu0 %v721
  %v969 = vpop.f32.mrf.mxu0
  %v970 = vadd.f32 0.0, %v969
  %v971 = vpop.f32.mrf.mxu0
  %v972 = vadd.f32 0.0, %v971
  %973 = vmatprep.mubr.f32.mxu0 0.0
  %974 = vmatmul.mubr.f32.gmra.mxu0 %v724
  %v975 = vpop.f32.mrf.mxu0
  %v976 = vadd.f32 0.0, %v975
  %v977 = vpop.f32.mrf.mxu0
  %v978 = vadd.f32 0.0, %v977
  %979 = vmatprep.mubr.f32.mxu0 0.0
  %980 = vmatmul.mubr.f32.gmra.mxu0 %v727
  %v981 = vpop.f32.mrf.mxu0
  %v982 = vadd.f32 0.0, %v981
  %v983 = vpop.f32.mrf.mxu0
  %v984 = vadd.f32 0.0, %v983
  %985 = vmatprep.mubr.f32.mxu0 0.0
  %986 = vmatmul.mubr.f32.gmra.mxu0 %v730
  %v987 = vpop.f32.mrf.mxu0
  %v988 = vadd.f32 0.0, %v987
  %v989 = vpop.f32.mrf.mxu0
  %v990 = vadd.f32 0.0, %v989
  %991 = vmatprep.mubr.f32.mxu0 0.0
  %992 = vmatmul.mubr.f32.gmra.mxu0 %v733
  %v993 = vpop.f32.mrf.mxu0
  %v994 = vadd.f32 0.0, %v993
  %v995 = vpop.f32.mrf.mxu0
  %v996 = vadd.f32 0.0, %v995
  %997 = vmatprep.mubr.f32.mxu0 0.0
  %998 = vmatmul.mubr.f32.gmra.mxu0 %v736
  %v999 = vpop.f32.mrf.mxu0
  %v1000 = vadd.f32 0.0, %v999
  %v1001 = vpop.f32.mrf.mxu0
  %v1002 = vadd.f32 0.0, %v1001
  %1003 = vmatprep.mubr.f32.mxu0 0.0
  %1004 = vmatmul.mubr.f32.gmra.mxu0 %v739
  %v1005 = vpop.f32.mrf.mxu0
  %v1006 = vadd.f32 0.0, %v1005
  %v1007 = vpop.f32.mrf.mxu0
  %v1008 = vadd.f32 0.0, %v1007
  %1009 = vmatprep.mubr.f32.mxu0 0.0
  %1010 = vmatmul.mubr.f32.gmra.mxu0 %v742
  %v1011 = vpop.f32.mrf.mxu0
  %v1012 = vadd.f32 0.0, %v1011
  %v1013 = vpop.f32.mrf.mxu0
  %v1014 = vadd.f32 0.0, %v1013
  %1015 = vmatprep.mubr.f32.mxu0 0.0
  %1016 = vmatmul.mubr.f32.gmra.mxu0 %v745
  %v1017 = vpop.f32.mrf.mxu0
  %v1018 = vadd.f32 0.0, %v1017
  %v1019 = vpop.f32.mrf.mxu0
  %v1020 = vadd.f32 0.0, %v1019
  %1021 = vmatprep.mubr.f32.mxu0 0.0
  %1022 = vmatmul.mubr.f32.gmra.mxu0 %v748
  %v1023 = vpop.f32.mrf.mxu0
  %v1024 = vadd.f32 0.0, %v1023
  %v1025 = vpop.f32.mrf.mxu0
  %v1026 = vadd.f32 0.0, %v1025
  %1027 = vmatprep.mubr.f32.mxu0 0.0
  %1028 = vmatmul.mubr.f32.gmra.mxu0 %v751
  %v1029 = vpop.f32.mrf.mxu0
  %v1030 = vadd.f32 0.0, %v1029
  %v1031 = vpop.f32.mrf.mxu0
  %v1032 = vadd.f32 0.0, %v1031
  %1033 = vmatprep.mubr.f32.mxu0 0.0
  %1034 = vmatmul.mubr.f32.gmra.mxu0 %v754
  %v1035 = vpop.f32.mrf.mxu0
  %v1036 = vadd.f32 0.0, %v1035
  %v1037 = vpop.f32.mrf.mxu0
  %v1038 = vadd.f32 0.0, %v1037
  %1039 = vmatprep.mubr.f32.mxu0 0.0
  %1040 = vmatmul.mubr.f32.gmra.mxu0 %v757
  %v1041 = vpop.f32.mrf.mxu0
  %v1042 = vadd.f32 0.0, %v1041
  %v1043 = vpop.f32.mrf.mxu0
  %v1044 = vadd.f32 0.0, %v1043
  %1045 = vmatprep.mubr.f32.mxu0 0.0
  %1046 = vmatmul.mubr.f32.gmra.mxu0 %v760
  %v1047 = vpop.f32.mrf.mxu0
  %v1048 = vadd.f32 0.0, %v1047
  %v1049 = vpop.f32.mrf.mxu0
  %v1050 = vadd.f32 0.0, %v1049
  %1051 = vmatprep.mubr.f32.mxu0 0.0
  %1052 = vmatmul.mubr.f32.gmra.mxu0 %v763
  %v1053 = vpop.f32.mrf.mxu0
  %v1054 = vadd.f32 0.0, %v1053
  %v1055 = vpop.f32.mrf.mxu0
  %v1056 = vadd.f32 0.0, %v1055
  %1057 = vmatprep.mubr.f32.mxu0 0.0
  %1058 = vmatmul.mubr.f32.gmra.mxu0 %v766
  %v1059 = vpop.f32.mrf.mxu0
  %v1060 = vadd.f32 0.0, %v1059
  %v1061 = vpop.f32.mrf.mxu0
  %v1062 = vadd.f32 0.0, %v1061
  %1063 = vmatprep.mubr.f32.mxu0 0.0
  %1064 = vmatmul.mubr.f32.gmra.mxu0 %v769
  %v1065 = vpop.f32.mrf.mxu0
  %v1066 = vadd.f32 0.0, %v1065
  %v1067 = vpop.f32.mrf.mxu0
  %v1068 = vadd.f32 0.0, %v1067
  %1069 = vmatprep.mubr.f32.mxu0 0.0
  %1070 = vmatmul.mubr.f32.gmra.mxu0 %v772
  %v1071 = vpop.f32.mrf.mxu0
  %v1072 = vadd.f32 0.0, %v1071
  %v1073 = vpop.f32.mrf.mxu0
  %v1074 = vadd.f32 0.0, %v1073
  %1075 = vmatprep.mubr.f32.mxu0 0.0
  %1076 = vmatmul.mubr.f32.gmra.mxu0 %v775
  %v1077 = vpop.f32.mrf.mxu0
  %v1078 = vadd.f32 0.0, %v1077
  %v1079 = vpop.f32.mrf.mxu0
  %v1080 = vadd.f32 0.0, %v1079
  %1081 = vmatprep.mubr.f32.mxu0 0.0
  %1082 = vmatmul.mubr.f32.gmra.mxu0 %v778
  %v1083 = vpop.f32.mrf.mxu0
  %v1084 = vadd.f32 0.0, %v1083
  %v1085 = vpop.f32.mrf.mxu0
  %v1086 = vadd.f32 0.0, %v1085
  %1087 = vmatprep.mubr.f32.mxu0 0.0
  %1088 = vmatmul.mubr.f32.gmra.mxu0 %v781
  %v1089 = vpop.f32.mrf.mxu0
  %v1090 = vadd.f32 0.0, %v1089
  %v1091 = vpop.f32.mrf.mxu0
  %v1092 = vadd.f32 0.0, %v1091
  %1093 = vmatprep.mubr.f32.mxu0 0.0
  %1094 = vmatmul.mubr.f32.gmra.mxu0 %v784
  %v1095 = vpop.f32.mrf.mxu0
  %v1096 = vadd.f32 0.0, %v1095
  %v1097 = vpop.f32.mrf.mxu0
  %v1098 = vadd.f32 0.0, %v1097
  %1099 = vmatprep.mubr.f32.mxu0 0.0
  %1100 = vmatmul.mubr.f32.gmra.mxu0 %v787
  %v1101 = vpop.f32.mrf.mxu0
  %v1102 = vadd.f32 0.0, %v1101
  %v1103 = vpop.f32.mrf.mxu0
  %v1104 = vadd.f32 0.0, %v1103
  %1105 = vmatprep.mubr.f32.mxu0 0.0
  %1106 = vmatmul.mubr.f32.gmra.mxu0 %v790
  %v1107 = vpop.f32.mrf.mxu0
  %v1108 = vadd.f32 0.0, %v1107
  %v1109 = vpop.f32.mrf.mxu0
  %v1110 = vadd.f32 0.0, %v1109
  %1111 = vmatprep.mubr.f32.mxu0 0.0
  %1112 = vmatmul.mubr.f32.gmra.mxu0 %v793
  %v1113 = vpop.f32.mrf.mxu0
  %v1114 = vadd.f32 0.0, %v1113
  %v1115 = vpop.f32.mrf.mxu0
  %v1116 = vadd.f32 0.0, %v1115
  %1117 = vmatprep.mubr.f32.mxu0 0.0
  %1118 = vmatmul.mubr.f32.gmra.mxu0 %v796
  %v1119 = vpop.f32.mrf.mxu0
  %v1120 = vadd.f32 0.0, %v1119
  %v1121 = vpop.f32.mrf.mxu0
  %v1122 = vadd.f32 0.0, %v1121
  %1123 = vmatprep.mubr.f32.mxu0 0.0
  %1124 = vmatmul.mubr.f32.gmra.mxu0 %v799
  %v1125 = vpop.f32.mrf.mxu0
  %v1126 = vadd.f32 0.0, %v1125
  %v1127 = vpop.f32.mrf.mxu0
  %v1128 = vadd.f32 0.0, %v1127
  %1129 = vmatprep.mubr.f32.mxu0 0.0
  %1130 = vmatmul.mubr.f32.gmra.mxu0 %v802
  %v1131 = vpop.f32.mrf.mxu0
  %v1132 = vadd.f32 0.0, %v1131
  %v1133 = vpop.f32.mrf.mxu0
  %v1134 = vadd.f32 0.0, %v1133
  %1135 = vmatprep.mubr.f32.mxu0 0.0
  %1136 = vmatmul.mubr.f32.gmra.mxu0 %v805
  %v1137 = vpop.f32.mrf.mxu0
  %v1138 = vadd.f32 0.0, %v1137
  %v1139 = vpop.f32.mrf.mxu0
  %v1140 = vadd.f32 0.0, %v1139
  %1141 = vmatprep.mubr.f32.mxu0 0.0
  %1142 = vmatmul.mubr.f32.gmra.mxu0 %v808
  %v1143 = vpop.f32.mrf.mxu0
  %v1144 = vadd.f32 0.0, %v1143
  %v1145 = vpop.f32.mrf.mxu0
  %v1146 = vadd.f32 0.0, %v1145
  %1147 = vmatprep.mubr.f32.mxu0 0.0
  %1148 = vmatmul.mubr.f32.gmra.mxu0 %v811
  %v1149 = vpop.f32.mrf.mxu0
  %v1150 = vadd.f32 0.0, %v1149
  %v1151 = vpop.f32.mrf.mxu0
  %v1152 = vadd.f32 0.0, %v1151
  %1153 = vmatprep.mubr.f32.mxu0 0.0
  %1154 = vmatmul.mubr.f32.gmra.mxu0 %v814
  %v1155 = vpop.f32.mrf.mxu0
  %v1156 = vadd.f32 0.0, %v1155
  %v1157 = vpop.f32.mrf.mxu0
  %v1158 = vadd.f32 0.0, %v1157
  %1159 = vmatprep.mubr.f32.mxu0 0.0
  %1160 = vmatmul.mubr.f32.gmra.mxu0 %v817
  %v1161 = vpop.f32.mrf.mxu0
  %v1162 = vadd.f32 0.0, %v1161
  %v1163 = vpop.f32.mrf.mxu0
  %v1164 = vadd.f32 0.0, %v1163
  %1165 = vmatprep.mubr.f32.mxu0 0.0
  %1166 = vmatmul.mubr.f32.gmra.mxu0 %v820
  %v1167 = vpop.f32.mrf.mxu0
  %v1168 = vadd.f32 0.0, %v1167
  %v1169 = vpop.f32.mrf.mxu0
  %v1170 = vadd.f32 0.0, %v1169
  %1171 = vmatprep.mubr.f32.mxu0 0.0
  %1172 = vmatmul.mubr.f32.gmra.mxu0 %v823
  %v1173 = vpop.f32.mrf.mxu0
  %v1174 = vadd.f32 0.0, %v1173
  %v1175 = vpop.f32.mrf.mxu0
  %v1176 = vadd.f32 0.0, %v1175
  %1177 = vmatprep.mubr.f32.mxu0 0.0
  %1178 = vmatmul.mubr.f32.gmra.mxu0 %v826
  %v1179 = vpop.f32.mrf.mxu0
  %v1180 = vadd.f32 0.0, %v1179
  %v1181 = vpop.f32.mrf.mxu0
  %v1182 = vadd.f32 0.0, %v1181
  %1183 = vmatprep.mubr.f32.mxu0 0.0
  %1184 = vmatmul.mubr.f32.gmra.mxu0 %v829
  %v1185 = vpop.f32.mrf.mxu0
  %v1186 = vadd.f32 0.0, %v1185
  %v1187 = vpop.f32.mrf.mxu0
  %v1188 = vadd.f32 0.0, %v1187
  %1189 = vmatprep.mubr.f32.mxu0 0.0
  %1190 = vmatmul.mubr.f32.gmra.mxu0 %v832
  %v1191 = vpop.f32.mrf.mxu0
  %v1192 = vadd.f32 0.0, %v1191
  %v1193 = vpop.f32.mrf.mxu0
  %v1194 = vadd.f32 0.0, %v1193
  %1195 = vmatprep.mubr.f32.mxu0 0.0
  %1196 = vmatmul.mubr.f32.gmra.mxu0 %v835
  %v1197 = vpop.f32.mrf.mxu0
  %v1198 = vadd.f32 0.0, %v1197
  %v1199 = vpop.f32.mrf.mxu0
  %v1200 = vadd.f32 0.0, %v1199
  %1201 = vmatprep.mubr.f32.mxu0 0.0
  %1202 = vmatmul.mubr.f32.gmra.mxu0 %v838
  %v1203 = vpop.f32.mrf.mxu0
  %v1204 = vadd.f32 0.0, %v1203
  %v1205 = vpop.f32.mrf.mxu0
  %v1206 = vadd.f32 0.0, %v1205
  %1207 = vmatprep.mubr.f32.mxu0 0.0
  %1208 = vmatmul.mubr.f32.gmra.mxu0 %v841
  %v1209 = vpop.f32.mrf.mxu0
  %v1210 = vadd.f32 0.0, %v1209
  %v1211 = vpop.f32.mrf.mxu0
  %v1212 = vadd.f32 0.0, %v1211
  %1213 = vmatprep.mubr.f32.mxu0 0.0
  %1214 = vmatmul.mubr.f32.gmra.mxu0 %v844
  %v1215 = vpop.f32.mrf.mxu0
  %v1216 = vadd.f32 0.0, %v1215
  %v1217 = vpop.f32.mrf.mxu0
  %v1218 = vadd.f32 0.0, %v1217
  %1219 = vmatprep.mubr.f32.mxu0 0.0
  %1220 = vmatmul.mubr.f32.gmra.mxu0 %v847
  %v1221 = vpop.f32.mrf.mxu0
  %v1222 = vadd.f32 0.0, %v1221
  %v1223 = vpop.f32.mrf.mxu0
  %v1224 = vadd.f32 0.0, %v1223
  %1225 = vmatprep.mubr.f32.mxu0 0.0
  %1226 = vmatmul.mubr.f32.gmra.mxu0 %v850
  %v1227 = vpop.f32.mrf.mxu0
  %v1228 = vadd.f32 0.0, %v1227
  %v1229 = vpop.f32.mrf.mxu0
  %v1230 = vadd.f32 0.0, %v1229
  %1231 = vmatprep.mubr.f32.mxu0 0.0
  %1232 = vmatmul.mubr.f32.gmra.mxu0 %v853
  %v1233 = vpop.f32.mrf.mxu0
  %v1234 = vadd.f32 0.0, %v1233
  %v1235 = vpop.f32.mrf.mxu0
  %v1236 = vadd.f32 0.0, %v1235
  %1237 = vmatprep.mubr.f32.mxu0 0.0
  %1238 = vmatmul.mubr.f32.gmra.mxu0 %v856
  %v1239 = vpop.f32.mrf.mxu0
  %v1240 = vadd.f32 0.0, %v1239
  %v1241 = vpop.f32.mrf.mxu0
  %v1242 = vadd.f32 0.0, %v1241
  %1243 = vmatprep.mubr.f32.mxu0 0.0
  %1244 = vmatmul.mubr.f32.gmra.mxu0 %v859
  %v1245 = vpop.f32.mrf.mxu0
  %v1246 = vadd.f32 0.0, %v1245
  %v1247 = vpop.f32.mrf.mxu0
  %v1248 = vadd.f32 0.0, %v1247
  %1249 = vmatprep.mubr.f32.mxu0 0.0
  %1250 = vmatmul.mubr.f32.gmra.mxu0 %v862
  %v1251 = vpop.f32.mrf.mxu0
  %v1252 = vadd.f32 0.0, %v1251
  %v1253 = vpop.f32.mrf.mxu0
  %v1254 = vadd.f32 0.0, %v1253
  %1255 = vmatprep.mubr.f32.mxu0 0.0
  %1256 = vmatmul.mubr.f32.gmra.mxu0 %v865
  %v1257 = vpop.f32.mrf.mxu0
  %v1258 = vadd.f32 0.0, %v1257
  %v1259 = vpop.f32.mrf.mxu0
  %v1260 = vadd.f32 0.0, %v1259
  %1261 = vmatprep.mubr.f32.mxu0 0.0
  %1262 = vmatmul.mubr.f32.gmra.mxu0 %v868
  %v1263 = vpop.f32.mrf.mxu0
  %v1264 = vadd.f32 0.0, %v1263
  %v1265 = vpop.f32.mrf.mxu0
  %v1266 = vadd.f32 0.0, %v1265
  %1267 = vmatprep.mubr.f32.mxu0 0.0
  %1268 = vmatmul.mubr.f32.gmra.mxu0 %v871
  %v1269 = vpop.f32.mrf.mxu0
  %v1270 = vadd.f32 0.0, %v1269
  %v1271 = vpop.f32.mrf.mxu0
  %v1272 = vadd.f32 0.0, %v1271
  %1273 = vmatprep.mubr.f32.mxu0 0.0
  %1274 = vmatmul.mubr.f32.gmra.mxu0 %v874
  %v1275 = vpop.f32.mrf.mxu0
  %v1276 = vadd.f32 0.0, %v1275
  %v1277 = vpop.f32.mrf.mxu0
  %v1278 = vadd.f32 0.0, %v1277
  %1279 = vmatprep.mubr.f32.mxu0 0.0
  %1280 = vmatmul.mubr.f32.gmra.mxu0 %v877
  %v1281 = vpop.f32.mrf.mxu0
  %v1282 = vadd.f32 0.0, %v1281
  %v1283 = vpop.f32.mrf.mxu0
  %v1284 = vadd.f32 0.0, %v1283
  %1285 = vmatprep.mubr.f32.mxu0 0.0
  %1286 = vmatmul.mubr.f32.gmra.mxu0 %v880
  %v1287 = vpop.f32.mrf.mxu0
  %v1288 = vadd.f32 0.0, %v1287
  %v1289 = vpop.f32.mrf.mxu0
  %v1290 = vadd.f32 0.0, %v1289
  %1291 = vmatprep.mubr.f32.mxu0 0.0
  %1292 = vmatmul.mubr.f32.gmra.mxu0 %v883
  %v1293 = vpop.f32.mrf.mxu0
  %v1294 = vadd.f32 0.0, %v1293
  %v1295 = vpop.f32.mrf.mxu0
  %v1296 = vadd.f32 0.0, %v1295
  %1297 = vmatprep.mubr.f32.mxu0 0.0
  %1298 = vmatmul.mubr.f32.gmra.mxu0 %v886
  %v1299 = vpop.f32.mrf.mxu0
  %v1300 = vadd.f32 0.0, %v1299
  %v1301 = vpop.f32.mrf.mxu0
  %v1302 = vadd.f32 0.0, %v1301
  %1303 = vmatprep.mubr.f32.mxu0 0.0
  %1304 = vmatmul.mubr.f32.gmra.mxu0 %v889
  %v1305 = vpop.f32.mrf.mxu0
  %v1306 = vadd.f32 0.0, %v1305
  %v1307 = vpop.f32.mrf.mxu0
  %v1308 = vadd.f32 0.0, %v1307
  %1309 = vmatprep.mubr.f32.mxu0 0.0
  %1310 = vmatmul.mubr.f32.gmra.mxu0 %v892
  %v1311 = vpop.f32.mrf.mxu0
  %v1312 = vadd.f32 0.0, %v1311
  %v1313 = vpop.f32.mrf.mxu0
  %v1314 = vadd.f32 0.0, %v1313
  %1315 = vmatprep.mubr.f32.mxu0 0.0
  %1316 = vmatmul.mubr.f32.gmra.mxu0 %v895
  %v1317 = vpop.f32.mrf.mxu0
  %v1318 = vadd.f32 0.0, %v1317
  %v1319 = vpop.f32.mrf.mxu0
  %v1320 = vadd.f32 0.0, %v1319
  %1321 = vdwg.mxu0
  %v1322 = vsel %vm265, %v966, 0.0
  %v1323 = vadd.f32 %v964, %v1322
  %1324 = vadd.xlane.f32.xlu0 %v1323
  %v1325 = vpop.xlane.xlu0 %1324
  %v1326 = vsel %vm265, %v972, 0.0
  %v1327 = vadd.f32 %v970, %v1326
  %1328 = vadd.xlane.f32.xlu0 %v1327
  %v1329 = vpop.xlane.xlu0 %1328
  %v1330 = vsel %vm265, %v978, 0.0
  %v1331 = vadd.f32 %v976, %v1330
  %1332 = vadd.xlane.f32.xlu0 %v1331
  %v1333 = vpop.xlane.xlu0 %1332
  %v1334 = vsel %vm265, %v984, 0.0
  %v1335 = vadd.f32 %v982, %v1334
  %1336 = vadd.xlane.f32.xlu0 %v1335
  %v1337 = vpop.xlane.xlu0 %1336
  %v1338 = vsel %vm265, %v990, 0.0
  %v1339 = vadd.f32 %v988, %v1338
  %1340 = vadd.xlane.f32.xlu0 %v1339
  %v1341 = vpop.xlane.xlu0 %1340
  %v1342 = vsel %vm265, %v996, 0.0
  %v1343 = vadd.f32 %v994, %v1342
  %1344 = vadd.xlane.f32.xlu0 %v1343
  %v1345 = vpop.xlane.xlu0 %1344
  %v1346 = vsel %vm265, %v1002, 0.0
  %v1347 = vadd.f32 %v1000, %v1346
  %1348 = vadd.xlane.f32.xlu0 %v1347
  %v1349 = vpop.xlane.xlu0 %1348
  %v1350 = vsel %vm265, %v1008, 0.0
  %v1351 = vadd.f32 %v1006, %v1350
  %1352 = vadd.xlane.f32.xlu0 %v1351
  %v1353 = vpop.xlane.xlu0 %1352
  %v1354 = vsel %vm265, %v1014, 0.0
  %v1355 = vadd.f32 %v1012, %v1354
  %1356 = vadd.xlane.f32.xlu0 %v1355
  %v1357 = vpop.xlane.xlu0 %1356
  %v1358 = vsel %vm265, %v1020, 0.0
  %v1359 = vadd.f32 %v1018, %v1358
  %1360 = vadd.xlane.f32.xlu0 %v1359
  %v1361 = vpop.xlane.xlu0 %1360
  %v1362 = vsel %vm265, %v1026, 0.0
  %v1363 = vadd.f32 %v1024, %v1362
  %1364 = vadd.xlane.f32.xlu0 %v1363
  %v1365 = vpop.xlane.xlu0 %1364
  %v1366 = vsel %vm265, %v1032, 0.0
  %v1367 = vadd.f32 %v1030, %v1366
  %1368 = vadd.xlane.f32.xlu0 %v1367
  %v1369 = vpop.xlane.xlu0 %1368
  %v1370 = vsel %vm265, %v1038, 0.0
  %v1371 = vadd.f32 %v1036, %v1370
  %1372 = vadd.xlane.f32.xlu0 %v1371
  %v1373 = vpop.xlane.xlu0 %1372
  %v1374 = vsel %vm265, %v1044, 0.0
  %v1375 = vadd.f32 %v1042, %v1374
  %1376 = vadd.xlane.f32.xlu0 %v1375
  %v1377 = vpop.xlane.xlu0 %1376
  %v1378 = vsel %vm265, %v1050, 0.0
  %v1379 = vadd.f32 %v1048, %v1378
  %1380 = vadd.xlane.f32.xlu0 %v1379
  %v1381 = vpop.xlane.xlu0 %1380
  %v1382 = vsel %vm265, %v1056, 0.0
  %v1383 = vadd.f32 %v1054, %v1382
  %1384 = vadd.xlane.f32.xlu0 %v1383
  %v1385 = vpop.xlane.xlu0 %1384
  %v1386 = vsel %vm265, %v1062, 0.0
  %v1387 = vadd.f32 %v1060, %v1386
  %1388 = vadd.xlane.f32.xlu0 %v1387
  %v1389 = vpop.xlane.xlu0 %1388
  %v1390 = vsel %vm265, %v1068, 0.0
  %v1391 = vadd.f32 %v1066, %v1390
  %1392 = vadd.xlane.f32.xlu0 %v1391
  %v1393 = vpop.xlane.xlu0 %1392
  %v1394 = vsel %vm265, %v1074, 0.0
  %v1395 = vadd.f32 %v1072, %v1394
  %1396 = vadd.xlane.f32.xlu0 %v1395
  %v1397 = vpop.xlane.xlu0 %1396
  %v1398 = vsel %vm265, %v1080, 0.0
  %v1399 = vadd.f32 %v1078, %v1398
  %1400 = vadd.xlane.f32.xlu0 %v1399
  %v1401 = vpop.xlane.xlu0 %1400
  %v1402 = vsel %vm265, %v1086, 0.0
  %v1403 = vadd.f32 %v1084, %v1402
  %1404 = vadd.xlane.f32.xlu0 %v1403
  %v1405 = vpop.xlane.xlu0 %1404
  %v1406 = vsel %vm265, %v1092, 0.0
  %v1407 = vadd.f32 %v1090, %v1406
  %1408 = vadd.xlane.f32.xlu0 %v1407
  %v1409 = vpop.xlane.xlu0 %1408
  %v1410 = vsel %vm265, %v1098, 0.0
  %v1411 = vadd.f32 %v1096, %v1410
  %1412 = vadd.xlane.f32.xlu0 %v1411
  %v1413 = vpop.xlane.xlu0 %1412
  %v1414 = vsel %vm265, %v1104, 0.0
  %v1415 = vadd.f32 %v1102, %v1414
  %1416 = vadd.xlane.f32.xlu0 %v1415
  %v1417 = vpop.xlane.xlu0 %1416
  %v1418 = vsel %vm265, %v1110, 0.0
  %v1419 = vadd.f32 %v1108, %v1418
  %1420 = vadd.xlane.f32.xlu0 %v1419
  %v1421 = vpop.xlane.xlu0 %1420
  %v1422 = vsel %vm265, %v1116, 0.0
  %v1423 = vadd.f32 %v1114, %v1422
  %1424 = vadd.xlane.f32.xlu0 %v1423
  %v1425 = vpop.xlane.xlu0 %1424
  %v1426 = vsel %vm265, %v1122, 0.0
  %v1427 = vadd.f32 %v1120, %v1426
  %1428 = vadd.xlane.f32.xlu0 %v1427
  %v1429 = vpop.xlane.xlu0 %1428
  %v1430 = vsel %vm265, %v1128, 0.0
  %v1431 = vadd.f32 %v1126, %v1430
  %1432 = vadd.xlane.f32.xlu0 %v1431
  %v1433 = vpop.xlane.xlu0 %1432
  %v1434 = vsel %vm265, %v1134, 0.0
  %v1435 = vadd.f32 %v1132, %v1434
  %1436 = vadd.xlane.f32.xlu0 %v1435
  %v1437 = vpop.xlane.xlu0 %1436
  %v1438 = vsel %vm265, %v1140, 0.0
  %v1439 = vadd.f32 %v1138, %v1438
  %1440 = vadd.xlane.f32.xlu0 %v1439
  %v1441 = vpop.xlane.xlu0 %1440
  %v1442 = vsel %vm265, %v1146, 0.0
  %v1443 = vadd.f32 %v1144, %v1442
  %1444 = vadd.xlane.f32.xlu0 %v1443
  %v1445 = vpop.xlane.xlu0 %1444
  %v1446 = vsel %vm265, %v1152, 0.0
  %v1447 = vadd.f32 %v1150, %v1446
  %1448 = vadd.xlane.f32.xlu0 %v1447
  %v1449 = vpop.xlane.xlu0 %1448
  %v1450 = vsel %vm265, %v1158, 0.0
  %v1451 = vadd.f32 %v1156, %v1450
  %1452 = vadd.xlane.f32.xlu0 %v1451
  %v1453 = vpop.xlane.xlu0 %1452
  %v1454 = vsel %vm265, %v1164, 0.0
  %v1455 = vadd.f32 %v1162, %v1454
  %1456 = vadd.xlane.f32.xlu0 %v1455
  %v1457 = vpop.xlane.xlu0 %1456
  %v1458 = vsel %vm265, %v1170, 0.0
  %v1459 = vadd.f32 %v1168, %v1458
  %1460 = vadd.xlane.f32.xlu0 %v1459
  %v1461 = vpop.xlane.xlu0 %1460
  %v1462 = vsel %vm265, %v1176, 0.0
  %v1463 = vadd.f32 %v1174, %v1462
  %1464 = vadd.xlane.f32.xlu0 %v1463
  %v1465 = vpop.xlane.xlu0 %1464
  %v1466 = vsel %vm265, %v1182, 0.0
  %v1467 = vadd.f32 %v1180, %v1466
  %1468 = vadd.xlane.f32.xlu0 %v1467
  %v1469 = vpop.xlane.xlu0 %1468
  %v1470 = vsel %vm265, %v1188, 0.0
  %v1471 = vadd.f32 %v1186, %v1470
  %1472 = vadd.xlane.f32.xlu0 %v1471
  %v1473 = vpop.xlane.xlu0 %1472
  %v1474 = vsel %vm265, %v1194, 0.0
  %v1475 = vadd.f32 %v1192, %v1474
  %1476 = vadd.xlane.f32.xlu0 %v1475
  %v1477 = vpop.xlane.xlu0 %1476
  %v1478 = vsel %vm265, %v1200, 0.0
  %v1479 = vadd.f32 %v1198, %v1478
  %1480 = vadd.xlane.f32.xlu0 %v1479
  %v1481 = vpop.xlane.xlu0 %1480
  %v1482 = vsel %vm265, %v1206, 0.0
  %v1483 = vadd.f32 %v1204, %v1482
  %1484 = vadd.xlane.f32.xlu0 %v1483
  %v1485 = vpop.xlane.xlu0 %1484
  %v1486 = vsel %vm265, %v1212, 0.0
  %v1487 = vadd.f32 %v1210, %v1486
  %1488 = vadd.xlane.f32.xlu0 %v1487
  %v1489 = vpop.xlane.xlu0 %1488
  %v1490 = vsel %vm265, %v1218, 0.0
  %v1491 = vadd.f32 %v1216, %v1490
  %1492 = vadd.xlane.f32.xlu0 %v1491
  %v1493 = vpop.xlane.xlu0 %1492
  %v1494 = vsel %vm265, %v1224, 0.0
  %v1495 = vadd.f32 %v1222, %v1494
  %1496 = vadd.xlane.f32.xlu0 %v1495
  %v1497 = vpop.xlane.xlu0 %1496
  %v1498 = vsel %vm265, %v1230, 0.0
  %v1499 = vadd.f32 %v1228, %v1498
  %1500 = vadd.xlane.f32.xlu0 %v1499
  %v1501 = vpop.xlane.xlu0 %1500
  %v1502 = vsel %vm265, %v1236, 0.0
  %v1503 = vadd.f32 %v1234, %v1502
  %1504 = vadd.xlane.f32.xlu0 %v1503
  %v1505 = vpop.xlane.xlu0 %1504
  %v1506 = vsel %vm265, %v1242, 0.0
  %v1507 = vadd.f32 %v1240, %v1506
  %1508 = vadd.xlane.f32.xlu0 %v1507
  %v1509 = vpop.xlane.xlu0 %1508
  %v1510 = vsel %vm265, %v1248, 0.0
  %v1511 = vadd.f32 %v1246, %v1510
  %1512 = vadd.xlane.f32.xlu0 %v1511
  %v1513 = vpop.xlane.xlu0 %1512
  %v1514 = vsel %vm265, %v1254, 0.0
  %v1515 = vadd.f32 %v1252, %v1514
  %1516 = vadd.xlane.f32.xlu0 %v1515
  %v1517 = vpop.xlane.xlu0 %1516
  %v1518 = vsel %vm265, %v1260, 0.0
  %v1519 = vadd.f32 %v1258, %v1518
  %1520 = vadd.xlane.f32.xlu0 %v1519
  %v1521 = vpop.xlane.xlu0 %1520
  %v1522 = vsel %vm265, %v1266, 0.0
  %v1523 = vadd.f32 %v1264, %v1522
  %1524 = vadd.xlane.f32.xlu0 %v1523
  %v1525 = vpop.xlane.xlu0 %1524
  %v1526 = vsel %vm265, %v1272, 0.0
  %v1527 = vadd.f32 %v1270, %v1526
  %1528 = vadd.xlane.f32.xlu0 %v1527
  %v1529 = vpop.xlane.xlu0 %1528
  %v1530 = vsel %vm265, %v1278, 0.0
  %v1531 = vadd.f32 %v1276, %v1530
  %1532 = vadd.xlane.f32.xlu0 %v1531
  %v1533 = vpop.xlane.xlu0 %1532
  %v1534 = vsel %vm265, %v1284, 0.0
  %v1535 = vadd.f32 %v1282, %v1534
  %1536 = vadd.xlane.f32.xlu0 %v1535
  %v1537 = vpop.xlane.xlu0 %1536
  %v1538 = vsel %vm265, %v1290, 0.0
  %v1539 = vadd.f32 %v1288, %v1538
  %1540 = vadd.xlane.f32.xlu0 %v1539
  %v1541 = vpop.xlane.xlu0 %1540
  %v1542 = vsel %vm265, %v1296, 0.0
  %v1543 = vadd.f32 %v1294, %v1542
  %1544 = vadd.xlane.f32.xlu0 %v1543
  %v1545 = vpop.xlane.xlu0 %1544
  %v1546 = vsel %vm265, %v1302, 0.0
  %v1547 = vadd.f32 %v1300, %v1546
  %1548 = vadd.xlane.f32.xlu0 %v1547
  %v1549 = vpop.xlane.xlu0 %1548
  %v1550 = vsel %vm265, %v1308, 0.0
  %v1551 = vadd.f32 %v1306, %v1550
  %1552 = vadd.xlane.f32.xlu0 %v1551
  %v1553 = vpop.xlane.xlu0 %1552
  %v1554 = vsel %vm265, %v1314, 0.0
  %v1555 = vadd.f32 %v1312, %v1554
  %1556 = vadd.xlane.f32.xlu0 %v1555
  %v1557 = vpop.xlane.xlu0 %1556
  %v1558 = vsel %vm265, %v1320, 0.0
  %v1559 = vadd.f32 %v1318, %v1558
  %1560 = vadd.xlane.f32.xlu0 %v1559
  %v1561 = vpop.xlane.xlu0 %1560
  %v1562 = vmul.f32 %v964, %v964
  %v1563 = vmul.f32 %v966, %v966
  %v1564 = vmul.f32 %v970, %v970
  %v1565 = vmul.f32 %v972, %v972
  %v1566 = vmul.f32 %v976, %v976
  %v1567 = vmul.f32 %v978, %v978
  %v1568 = vmul.f32 %v982, %v982
  %v1569 = vmul.f32 %v984, %v984
  %v1570 = vmul.f32 %v988, %v988
  %v1571 = vmul.f32 %v990, %v990
  %v1572 = vmul.f32 %v994, %v994
  %v1573 = vmul.f32 %v996, %v996
  %v1574 = vmul.f32 %v1000, %v1000
  %v1575 = vmul.f32 %v1002, %v1002
  %v1576 = vmul.f32 %v1006, %v1006
  %v1577 = vmul.f32 %v1008, %v1008
  %v1578 = vmul.f32 %v1012, %v1012
  %v1579 = vmul.f32 %v1014, %v1014
  %v1580 = vmul.f32 %v1018, %v1018
  %v1581 = vmul.f32 %v1020, %v1020
  %v1582 = vmul.f32 %v1024, %v1024
  %v1583 = vmul.f32 %v1026, %v1026
  %v1584 = vmul.f32 %v1030, %v1030
  %v1585 = vmul.f32 %v1032, %v1032
  %v1586 = vmul.f32 %v1036, %v1036
  %v1587 = vmul.f32 %v1038, %v1038
  %v1588 = vmul.f32 %v1042, %v1042
  %v1589 = vmul.f32 %v1044, %v1044
  %v1590 = vmul.f32 %v1048, %v1048
  %v1591 = vmul.f32 %v1050, %v1050
  %v1592 = vmul.f32 %v1054, %v1054
  %v1593 = vmul.f32 %v1056, %v1056
  %v1594 = vmul.f32 %v1060, %v1060
  %v1595 = vmul.f32 %v1062, %v1062
  %v1596 = vmul.f32 %v1066, %v1066
  %v1597 = vmul.f32 %v1068, %v1068
  %v1598 = vmul.f32 %v1072, %v1072
  %v1599 = vmul.f32 %v1074, %v1074
  %v1600 = vmul.f32 %v1078, %v1078
  %v1601 = vmul.f32 %v1080, %v1080
  %v1602 = vmul.f32 %v1084, %v1084
  %v1603 = vmul.f32 %v1086, %v1086
  %v1604 = vmul.f32 %v1090, %v1090
  %v1605 = vmul.f32 %v1092, %v1092
  %v1606 = vmul.f32 %v1096, %v1096
  %v1607 = vmul.f32 %v1098, %v1098
  %v1608 = vmul.f32 %v1102, %v1102
  %v1609 = vmul.f32 %v1104, %v1104
  %v1610 = vmul.f32 %v1108, %v1108
  %v1611 = vmul.f32 %v1110, %v1110
  %v1612 = vmul.f32 %v1114, %v1114
  %v1613 = vmul.f32 %v1116, %v1116
  %v1614 = vmul.f32 %v1120, %v1120
  %v1615 = vmul.f32 %v1122, %v1122
  %v1616 = vmul.f32 %v1126, %v1126
  %v1617 = vmul.f32 %v1128, %v1128
  %v1618 = vmul.f32 %v1132, %v1132
  %v1619 = vmul.f32 %v1134, %v1134
  %v1620 = vmul.f32 %v1138, %v1138
  %v1621 = vmul.f32 %v1140, %v1140
  %v1622 = vmul.f32 %v1144, %v1144
  %v1623 = vmul.f32 %v1146, %v1146
  %v1624 = vmul.f32 %v1150, %v1150
  %v1625 = vmul.f32 %v1152, %v1152
  %v1626 = vmul.f32 %v1156, %v1156
  %v1627 = vmul.f32 %v1158, %v1158
  %v1628 = vmul.f32 %v1162, %v1162
  %v1629 = vmul.f32 %v1164, %v1164
  %v1630 = vmul.f32 %v1168, %v1168
  %v1631 = vmul.f32 %v1170, %v1170
  %v1632 = vmul.f32 %v1174, %v1174
  %v1633 = vmul.f32 %v1176, %v1176
  %v1634 = vmul.f32 %v1180, %v1180
  %v1635 = vmul.f32 %v1182, %v1182
  %v1636 = vmul.f32 %v1186, %v1186
  %v1637 = vmul.f32 %v1188, %v1188
  %v1638 = vmul.f32 %v1192, %v1192
  %v1639 = vmul.f32 %v1194, %v1194
  %v1640 = vmul.f32 %v1198, %v1198
  %v1641 = vmul.f32 %v1200, %v1200
  %v1642 = vmul.f32 %v1204, %v1204
  %v1643 = vmul.f32 %v1206, %v1206
  %v1644 = vmul.f32 %v1210, %v1210
  %v1645 = vmul.f32 %v1212, %v1212
  %v1646 = vmul.f32 %v1216, %v1216
  %v1647 = vmul.f32 %v1218, %v1218
  %v1648 = vmul.f32 %v1222, %v1222
  %v1649 = vmul.f32 %v1224, %v1224
  %v1650 = vmul.f32 %v1228, %v1228
  %v1651 = vmul.f32 %v1230, %v1230
  %v1652 = vmul.f32 %v1234, %v1234
  %v1653 = vmul.f32 %v1236, %v1236
  %v1654 = vmul.f32 %v1240, %v1240
  %v1655 = vmul.f32 %v1242, %v1242
  %v1656 = vmul.f32 %v1246, %v1246
  %v1657 = vmul.f32 %v1248, %v1248
  %v1658 = vmul.f32 %v1252, %v1252
  %v1659 = vmul.f32 %v1254, %v1254
  %v1660 = vmul.f32 %v1258, %v1258
  %v1661 = vmul.f32 %v1260, %v1260
  %v1662 = vmul.f32 %v1264, %v1264
  %v1663 = vmul.f32 %v1266, %v1266
  %v1664 = vmul.f32 %v1270, %v1270
  %v1665 = vmul.f32 %v1272, %v1272
  %v1666 = vmul.f32 %v1276, %v1276
  %v1667 = vmul.f32 %v1278, %v1278
  %v1668 = vmul.f32 %v1282, %v1282
  %v1669 = vmul.f32 %v1284, %v1284
  %v1670 = vmul.f32 %v1288, %v1288
  %v1671 = vmul.f32 %v1290, %v1290
  %v1672 = vmul.f32 %v1294, %v1294
  %v1673 = vmul.f32 %v1296, %v1296
  %v1674 = vmul.f32 %v1300, %v1300
  %v1675 = vmul.f32 %v1302, %v1302
  %v1676 = vmul.f32 %v1306, %v1306
  %v1677 = vmul.f32 %v1308, %v1308
  %v1678 = vmul.f32 %v1312, %v1312
  %v1679 = vmul.f32 %v1314, %v1314
  %v1680 = vmul.f32 %v1318, %v1318
  %v1681 = vmul.f32 %v1320, %v1320
  %v1682 = vsel %vm265, %v1563, 0.0
  %v1683 = vadd.f32 %v1562, %v1682
  %1684 = vadd.xlane.f32.xlu0 %v1683
  %v1685 = vpop.xlane.xlu0 %1684
  %v1686 = vsel %vm265, %v1565, 0.0
  %v1687 = vadd.f32 %v1564, %v1686
  %1688 = vadd.xlane.f32.xlu0 %v1687
  %v1689 = vpop.xlane.xlu0 %1688
  %v1690 = vsel %vm265, %v1567, 0.0
  %v1691 = vadd.f32 %v1566, %v1690
  %1692 = vadd.xlane.f32.xlu0 %v1691
  %v1693 = vpop.xlane.xlu0 %1692
  %v1694 = vsel %vm265, %v1569, 0.0
  %v1695 = vadd.f32 %v1568, %v1694
  %1696 = vadd.xlane.f32.xlu0 %v1695
  %v1697 = vpop.xlane.xlu0 %1696
  %v1698 = vsel %vm265, %v1571, 0.0
  %v1699 = vadd.f32 %v1570, %v1698
  %1700 = vadd.xlane.f32.xlu0 %v1699
  %v1701 = vpop.xlane.xlu0 %1700
  %v1702 = vsel %vm265, %v1573, 0.0
  %v1703 = vadd.f32 %v1572, %v1702
  %1704 = vadd.xlane.f32.xlu0 %v1703
  %v1705 = vpop.xlane.xlu0 %1704
  %v1706 = vsel %vm265, %v1575, 0.0
  %v1707 = vadd.f32 %v1574, %v1706
  %1708 = vadd.xlane.f32.xlu0 %v1707
  %v1709 = vpop.xlane.xlu0 %1708
  %v1710 = vsel %vm265, %v1577, 0.0
  %v1711 = vadd.f32 %v1576, %v1710
  %1712 = vadd.xlane.f32.xlu0 %v1711
  %v1713 = vpop.xlane.xlu0 %1712
  %v1714 = vsel %vm265, %v1579, 0.0
  %v1715 = vadd.f32 %v1578, %v1714
  %1716 = vadd.xlane.f32.xlu0 %v1715
  %v1717 = vpop.xlane.xlu0 %1716
  %v1718 = vsel %vm265, %v1581, 0.0
  %v1719 = vadd.f32 %v1580, %v1718
  %1720 = vadd.xlane.f32.xlu0 %v1719
  %v1721 = vpop.xlane.xlu0 %1720
  %v1722 = vsel %vm265, %v1583, 0.0
  %v1723 = vadd.f32 %v1582, %v1722
  %1724 = vadd.xlane.f32.xlu0 %v1723
  %v1725 = vpop.xlane.xlu0 %1724
  %v1726 = vsel %vm265, %v1585, 0.0
  %v1727 = vadd.f32 %v1584, %v1726
  %1728 = vadd.xlane.f32.xlu0 %v1727
  %v1729 = vpop.xlane.xlu0 %1728
  %v1730 = vsel %vm265, %v1587, 0.0
  %v1731 = vadd.f32 %v1586, %v1730
  %1732 = vadd.xlane.f32.xlu0 %v1731
  %v1733 = vpop.xlane.xlu0 %1732
  %v1734 = vsel %vm265, %v1589, 0.0
  %v1735 = vadd.f32 %v1588, %v1734
  %1736 = vadd.xlane.f32.xlu0 %v1735
  %v1737 = vpop.xlane.xlu0 %1736
  %v1738 = vsel %vm265, %v1591, 0.0
  %v1739 = vadd.f32 %v1590, %v1738
  %1740 = vadd.xlane.f32.xlu0 %v1739
  %v1741 = vpop.xlane.xlu0 %1740
  %v1742 = vsel %vm265, %v1593, 0.0
  %v1743 = vadd.f32 %v1592, %v1742
  %1744 = vadd.xlane.f32.xlu0 %v1743
  %v1745 = vpop.xlane.xlu0 %1744
  %v1746 = vsel %vm265, %v1595, 0.0
  %v1747 = vadd.f32 %v1594, %v1746
  %1748 = vadd.xlane.f32.xlu0 %v1747
  %v1749 = vpop.xlane.xlu0 %1748
  %v1750 = vsel %vm265, %v1597, 0.0
  %v1751 = vadd.f32 %v1596, %v1750
  %1752 = vadd.xlane.f32.xlu0 %v1751
  %v1753 = vpop.xlane.xlu0 %1752
  %v1754 = vsel %vm265, %v1599, 0.0
  %v1755 = vadd.f32 %v1598, %v1754
  %1756 = vadd.xlane.f32.xlu0 %v1755
  %v1757 = vpop.xlane.xlu0 %1756
  %v1758 = vsel %vm265, %v1601, 0.0
  %v1759 = vadd.f32 %v1600, %v1758
  %1760 = vadd.xlane.f32.xlu0 %v1759
  %v1761 = vpop.xlane.xlu0 %1760
  %v1762 = vsel %vm265, %v1603, 0.0
  %v1763 = vadd.f32 %v1602, %v1762
  %1764 = vadd.xlane.f32.xlu0 %v1763
  %v1765 = vpop.xlane.xlu0 %1764
  %v1766 = vsel %vm265, %v1605, 0.0
  %v1767 = vadd.f32 %v1604, %v1766
  %1768 = vadd.xlane.f32.xlu0 %v1767
  %v1769 = vpop.xlane.xlu0 %1768
  %v1770 = vsel %vm265, %v1607, 0.0
  %v1771 = vadd.f32 %v1606, %v1770
  %1772 = vadd.xlane.f32.xlu0 %v1771
  %v1773 = vpop.xlane.xlu0 %1772
  %v1774 = vsel %vm265, %v1609, 0.0
  %v1775 = vadd.f32 %v1608, %v1774
  %1776 = vadd.xlane.f32.xlu0 %v1775
  %v1777 = vpop.xlane.xlu0 %1776
  %v1778 = vsel %vm265, %v1611, 0.0
  %v1779 = vadd.f32 %v1610, %v1778
  %1780 = vadd.xlane.f32.xlu0 %v1779
  %v1781 = vpop.xlane.xlu0 %1780
  %v1782 = vsel %vm265, %v1613, 0.0
  %v1783 = vadd.f32 %v1612, %v1782
  %1784 = vadd.xlane.f32.xlu0 %v1783
  %v1785 = vpop.xlane.xlu0 %1784
  %v1786 = vsel %vm265, %v1615, 0.0
  %v1787 = vadd.f32 %v1614, %v1786
  %1788 = vadd.xlane.f32.xlu0 %v1787
  %v1789 = vpop.xlane.xlu0 %1788
  %v1790 = vsel %vm265, %v1617, 0.0
  %v1791 = vadd.f32 %v1616, %v1790
  %1792 = vadd.xlane.f32.xlu0 %v1791
  %v1793 = vpop.xlane.xlu0 %1792
  %v1794 = vsel %vm265, %v1619, 0.0
  %v1795 = vadd.f32 %v1618, %v1794
  %1796 = vadd.xlane.f32.xlu0 %v1795
  %v1797 = vpop.xlane.xlu0 %1796
  %v1798 = vsel %vm265, %v1621, 0.0
  %v1799 = vadd.f32 %v1620, %v1798
  %1800 = vadd.xlane.f32.xlu0 %v1799
  %v1801 = vpop.xlane.xlu0 %1800
  %v1802 = vsel %vm265, %v1623, 0.0
  %v1803 = vadd.f32 %v1622, %v1802
  %1804 = vadd.xlane.f32.xlu0 %v1803
  %v1805 = vpop.xlane.xlu0 %1804
  %v1806 = vsel %vm265, %v1625, 0.0
  %v1807 = vadd.f32 %v1624, %v1806
  %1808 = vadd.xlane.f32.xlu0 %v1807
  %v1809 = vpop.xlane.xlu0 %1808
  %v1810 = vsel %vm265, %v1627, 0.0
  %v1811 = vadd.f32 %v1626, %v1810
  %1812 = vadd.xlane.f32.xlu0 %v1811
  %v1813 = vpop.xlane.xlu0 %1812
  %v1814 = vsel %vm265, %v1629, 0.0
  %v1815 = vadd.f32 %v1628, %v1814
  %1816 = vadd.xlane.f32.xlu0 %v1815
  %v1817 = vpop.xlane.xlu0 %1816
  %v1818 = vsel %vm265, %v1631, 0.0
  %v1819 = vadd.f32 %v1630, %v1818
  %1820 = vadd.xlane.f32.xlu0 %v1819
  %v1821 = vpop.xlane.xlu0 %1820
  %v1822 = vsel %vm265, %v1633, 0.0
  %v1823 = vadd.f32 %v1632, %v1822
  %1824 = vadd.xlane.f32.xlu0 %v1823
  %v1825 = vpop.xlane.xlu0 %1824
  %v1826 = vsel %vm265, %v1635, 0.0
  %v1827 = vadd.f32 %v1634, %v1826
  %1828 = vadd.xlane.f32.xlu0 %v1827
  %v1829 = vpop.xlane.xlu0 %1828
  %v1830 = vsel %vm265, %v1637, 0.0
  %v1831 = vadd.f32 %v1636, %v1830
  %1832 = vadd.xlane.f32.xlu0 %v1831
  %v1833 = vpop.xlane.xlu0 %1832
  %v1834 = vsel %vm265, %v1639, 0.0
  %v1835 = vadd.f32 %v1638, %v1834
  %1836 = vadd.xlane.f32.xlu0 %v1835
  %v1837 = vpop.xlane.xlu0 %1836
  %v1838 = vsel %vm265, %v1641, 0.0
  %v1839 = vadd.f32 %v1640, %v1838
  %1840 = vadd.xlane.f32.xlu0 %v1839
  %v1841 = vpop.xlane.xlu0 %1840
  %v1842 = vsel %vm265, %v1643, 0.0
  %v1843 = vadd.f32 %v1642, %v1842
  %1844 = vadd.xlane.f32.xlu0 %v1843
  %v1845 = vpop.xlane.xlu0 %1844
  %v1846 = vsel %vm265, %v1645, 0.0
  %v1847 = vadd.f32 %v1644, %v1846
  %1848 = vadd.xlane.f32.xlu0 %v1847
  %v1849 = vpop.xlane.xlu0 %1848
  %v1850 = vsel %vm265, %v1647, 0.0
  %v1851 = vadd.f32 %v1646, %v1850
  %1852 = vadd.xlane.f32.xlu0 %v1851
  %v1853 = vpop.xlane.xlu0 %1852
  %v1854 = vsel %vm265, %v1649, 0.0
  %v1855 = vadd.f32 %v1648, %v1854
  %1856 = vadd.xlane.f32.xlu0 %v1855
  %v1857 = vpop.xlane.xlu0 %1856
  %v1858 = vsel %vm265, %v1651, 0.0
  %v1859 = vadd.f32 %v1650, %v1858
  %1860 = vadd.xlane.f32.xlu0 %v1859
  %v1861 = vpop.xlane.xlu0 %1860
  %v1862 = vsel %vm265, %v1653, 0.0
  %v1863 = vadd.f32 %v1652, %v1862
  %1864 = vadd.xlane.f32.xlu0 %v1863
  %v1865 = vpop.xlane.xlu0 %1864
  %v1866 = vsel %vm265, %v1655, 0.0
  %v1867 = vadd.f32 %v1654, %v1866
  %1868 = vadd.xlane.f32.xlu0 %v1867
  %v1869 = vpop.xlane.xlu0 %1868
  %v1870 = vsel %vm265, %v1657, 0.0
  %v1871 = vadd.f32 %v1656, %v1870
  %1872 = vadd.xlane.f32.xlu0 %v1871
  %v1873 = vpop.xlane.xlu0 %1872
  %v1874 = vsel %vm265, %v1659, 0.0
  %v1875 = vadd.f32 %v1658, %v1874
  %1876 = vadd.xlane.f32.xlu0 %v1875
  %v1877 = vpop.xlane.xlu0 %1876
  %v1878 = vsel %vm265, %v1661, 0.0
  %v1879 = vadd.f32 %v1660, %v1878
  %1880 = vadd.xlane.f32.xlu0 %v1879
  %v1881 = vpop.xlane.xlu0 %1880
  %v1882 = vsel %vm265, %v1663, 0.0
  %v1883 = vadd.f32 %v1662, %v1882
  %1884 = vadd.xlane.f32.xlu0 %v1883
  %v1885 = vpop.xlane.xlu0 %1884
  %v1886 = vsel %vm265, %v1665, 0.0
  %v1887 = vadd.f32 %v1664, %v1886
  %1888 = vadd.xlane.f32.xlu0 %v1887
  %v1889 = vpop.xlane.xlu0 %1888
  %v1890 = vsel %vm265, %v1667, 0.0
  %v1891 = vadd.f32 %v1666, %v1890
  %1892 = vadd.xlane.f32.xlu0 %v1891
  %v1893 = vpop.xlane.xlu0 %1892
  %v1894 = vsel %vm265, %v1669, 0.0
  %v1895 = vadd.f32 %v1668, %v1894
  %1896 = vadd.xlane.f32.xlu0 %v1895
  %v1897 = vpop.xlane.xlu0 %1896
  %v1898 = vsel %vm265, %v1671, 0.0
  %v1899 = vadd.f32 %v1670, %v1898
  %1900 = vadd.xlane.f32.xlu0 %v1899
  %v1901 = vpop.xlane.xlu0 %1900
  %v1902 = vsel %vm265, %v1673, 0.0
  %v1903 = vadd.f32 %v1672, %v1902
  %1904 = vadd.xlane.f32.xlu0 %v1903
  %v1905 = vpop.xlane.xlu0 %1904
  %v1906 = vsel %vm265, %v1675, 0.0
  %v1907 = vadd.f32 %v1674, %v1906
  %1908 = vadd.xlane.f32.xlu0 %v1907
  %v1909 = vpop.xlane.xlu0 %1908
  %v1910 = vsel %vm265, %v1677, 0.0
  %v1911 = vadd.f32 %v1676, %v1910
  %1912 = vadd.xlane.f32.xlu0 %v1911
  %v1913 = vpop.xlane.xlu0 %1912
  %v1914 = vsel %vm265, %v1679, 0.0
  %v1915 = vadd.f32 %v1678, %v1914
  %1916 = vadd.xlane.f32.xlu0 %v1915
  %v1917 = vpop.xlane.xlu0 %1916
  %v1918 = vsel %vm265, %v1681, 0.0
  %v1919 = vadd.f32 %v1680, %v1918
  %1920 = vadd.xlane.f32.xlu0 %v1919
  %v1921 = vpop.xlane.xlu0 %1920
  %v1922 = vmul.f32 %v1325, 0.0051020407
  %v1923 = vmul.f32 %v1329, 0.0051020407
  %v1924 = vmul.f32 %v1333, 0.0051020407
  %v1925 = vmul.f32 %v1337, 0.0051020407
  %v1926 = vmul.f32 %v1341, 0.0051020407
  %v1927 = vmul.f32 %v1345, 0.0051020407
  %v1928 = vmul.f32 %v1349, 0.0051020407
  %v1929 = vmul.f32 %v1353, 0.0051020407
  %v1930 = vmul.f32 %v1357, 0.0051020407
  %v1931 = vmul.f32 %v1361, 0.0051020407
  %v1932 = vmul.f32 %v1365, 0.0051020407
  %v1933 = vmul.f32 %v1369, 0.0051020407
  %v1934 = vmul.f32 %v1373, 0.0051020407
  %v1935 = vmul.f32 %v1377, 0.0051020407
  %v1936 = vmul.f32 %v1381, 0.0051020407
  %v1937 = vmul.f32 %v1385, 0.0051020407
  %v1938 = vmul.f32 %v1389, 0.0051020407
  %v1939 = vmul.f32 %v1393, 0.0051020407
  %v1940 = vmul.f32 %v1397, 0.0051020407
  %v1941 = vmul.f32 %v1401, 0.0051020407
  %v1942 = vmul.f32 %v1405, 0.0051020407
  %v1943 = vmul.f32 %v1409, 0.0051020407
  %v1944 = vmul.f32 %v1413, 0.0051020407
  %v1945 = vmul.f32 %v1417, 0.0051020407
  %v1946 = vmul.f32 %v1421, 0.0051020407
  %v1947 = vmul.f32 %v1425, 0.0051020407
  %v1948 = vmul.f32 %v1429, 0.0051020407
  %v1949 = vmul.f32 %v1433, 0.0051020407
  %v1950 = vmul.f32 %v1437, 0.0051020407
  %v1951 = vmul.f32 %v1441, 0.0051020407
  %v1952 = vmul.f32 %v1445, 0.0051020407
  %v1953 = vmul.f32 %v1449, 0.0051020407
  %v1954 = vmul.f32 %v1453, 0.0051020407
  %v1955 = vmul.f32 %v1457, 0.0051020407
  %v1956 = vmul.f32 %v1461, 0.0051020407
  %v1957 = vmul.f32 %v1465, 0.0051020407
  %v1958 = vmul.f32 %v1469, 0.0051020407
  %v1959 = vmul.f32 %v1473, 0.0051020407
  %v1960 = vmul.f32 %v1477, 0.0051020407
  %v1961 = vmul.f32 %v1481, 0.0051020407
  %v1962 = vmul.f32 %v1485, 0.0051020407
  %v1963 = vmul.f32 %v1489, 0.0051020407
  %v1964 = vmul.f32 %v1493, 0.0051020407
  %v1965 = vmul.f32 %v1497, 0.0051020407
  %v1966 = vmul.f32 %v1501, 0.0051020407
  %v1967 = vmul.f32 %v1505, 0.0051020407
  %v1968 = vmul.f32 %v1509, 0.0051020407
  %v1969 = vmul.f32 %v1513, 0.0051020407
  %v1970 = vmul.f32 %v1517, 0.0051020407
  %v1971 = vmul.f32 %v1521, 0.0051020407
  %v1972 = vmul.f32 %v1525, 0.0051020407
  %v1973 = vmul.f32 %v1529, 0.0051020407
  %v1974 = vmul.f32 %v1533, 0.0051020407
  %v1975 = vmul.f32 %v1537, 0.0051020407
  %v1976 = vmul.f32 %v1541, 0.0051020407
  %v1977 = vmul.f32 %v1545, 0.0051020407
  %v1978 = vmul.f32 %v1549, 0.0051020407
  %v1979 = vmul.f32 %v1553, 0.0051020407
  %v1980 = vmul.f32 %v1557, 0.0051020407
  %v1981 = vmul.f32 %v1561, 0.0051020407
  %v1982 = vmul.f32 %v1685, 0.0051020407
  %v1983 = vmul.f32 %v1689, 0.0051020407
  %v1984 = vmul.f32 %v1693, 0.0051020407
  %v1985 = vmul.f32 %v1697, 0.0051020407
  %v1986 = vmul.f32 %v1701, 0.0051020407
  %v1987 = vmul.f32 %v1705, 0.0051020407
  %v1988 = vmul.f32 %v1709, 0.0051020407
  %v1989 = vmul.f32 %v1713, 0.0051020407
  %v1990 = vmul.f32 %v1717, 0.0051020407
  %v1991 = vmul.f32 %v1721, 0.0051020407
  %v1992 = vmul.f32 %v1725, 0.0051020407
  %v1993 = vmul.f32 %v1729, 0.0051020407
  %v1994 = vmul.f32 %v1733, 0.0051020407
  %v1995 = vmul.f32 %v1737, 0.0051020407
  %v1996 = vmul.f32 %v1741, 0.0051020407
  %v1997 = vmul.f32 %v1745, 0.0051020407
  %v1998 = vmul.f32 %v1749, 0.0051020407
  %v1999 = vmul.f32 %v1753, 0.0051020407
  %v2000 = vmul.f32 %v1757, 0.0051020407
  %v2001 = vmul.f32 %v1761, 0.0051020407
  %v2002 = vmul.f32 %v1765, 0.0051020407
  %v2003 = vmul.f32 %v1769, 0.0051020407
  %v2004 = vmul.f32 %v1773, 0.0051020407
  %v2005 = vmul.f32 %v1777, 0.0051020407
  %v2006 = vmul.f32 %v1781, 0.0051020407
  %v2007 = vmul.f32 %v1785, 0.0051020407
  %v2008 = vmul.f32 %v1789, 0.0051020407
  %v2009 = vmul.f32 %v1793, 0.0051020407
  %v2010 = vmul.f32 %v1797, 0.0051020407
  %v2011 = vmul.f32 %v1801, 0.0051020407
  %v2012 = vmul.f32 %v1805, 0.0051020407
  %v2013 = vmul.f32 %v1809, 0.0051020407
  %v2014 = vmul.f32 %v1813, 0.0051020407
  %v2015 = vmul.f32 %v1817, 0.0051020407
  %v2016 = vmul.f32 %v1821, 0.0051020407
  %v2017 = vmul.f32 %v1825, 0.0051020407
  %v2018 = vmul.f32 %v1829, 0.0051020407
  %v2019 = vmul.f32 %v1833, 0.0051020407
  %v2020 = vmul.f32 %v1837, 0.0051020407
  %v2021 = vmul.f32 %v1841, 0.0051020407
  %v2022 = vmul.f32 %v1845, 0.0051020407
  %v2023 = vmul.f32 %v1849, 0.0051020407
  %v2024 = vmul.f32 %v1853, 0.0051020407
  %v2025 = vmul.f32 %v1857, 0.0051020407
  %v2026 = vmul.f32 %v1861, 0.0051020407
  %v2027 = vmul.f32 %v1865, 0.0051020407
  %v2028 = vmul.f32 %v1869, 0.0051020407
  %v2029 = vmul.f32 %v1873, 0.0051020407
  %v2030 = vmul.f32 %v1877, 0.0051020407
  %v2031 = vmul.f32 %v1881, 0.0051020407
  %v2032 = vmul.f32 %v1885, 0.0051020407
  %v2033 = vmul.f32 %v1889, 0.0051020407
  %v2034 = vmul.f32 %v1893, 0.0051020407
  %v2035 = vmul.f32 %v1897, 0.0051020407
  %v2036 = vmul.f32 %v1901, 0.0051020407
  %v2037 = vmul.f32 %v1905, 0.0051020407
  %v2038 = vmul.f32 %v1909, 0.0051020407
  %v2039 = vmul.f32 %v1913, 0.0051020407
  %v2040 = vmul.f32 %v1917, 0.0051020407
  %v2041 = vmul.f32 %v1921, 0.0051020407
  %v2042 = vmul.f32 %v1922, %v1922
  %v2043 = vmul.f32 %v1923, %v1923
  %v2044 = vmul.f32 %v1924, %v1924
  %v2045 = vmul.f32 %v1925, %v1925
  %v2046 = vmul.f32 %v1926, %v1926
  %v2047 = vmul.f32 %v1927, %v1927
  %v2048 = vmul.f32 %v1928, %v1928
  %v2049 = vmul.f32 %v1929, %v1929
  %v2050 = vmul.f32 %v1930, %v1930
  %v2051 = vmul.f32 %v1931, %v1931
  %v2052 = vmul.f32 %v1932, %v1932
  %v2053 = vmul.f32 %v1933, %v1933
  %v2054 = vmul.f32 %v1934, %v1934
  %v2055 = vmul.f32 %v1935, %v1935
  %v2056 = vmul.f32 %v1936, %v1936
  %v2057 = vmul.f32 %v1937, %v1937
  %v2058 = vmul.f32 %v1938, %v1938
  %v2059 = vmul.f32 %v1939, %v1939
  %v2060 = vmul.f32 %v1940, %v1940
  %v2061 = vmul.f32 %v1941, %v1941
  %v2062 = vmul.f32 %v1942, %v1942
  %v2063 = vmul.f32 %v1943, %v1943
  %v2064 = vmul.f32 %v1944, %v1944
  %v2065 = vmul.f32 %v1945, %v1945
  %v2066 = vmul.f32 %v1946, %v1946
  %v2067 = vmul.f32 %v1947, %v1947
  %v2068 = vmul.f32 %v1948, %v1948
  %v2069 = vmul.f32 %v1949, %v1949
  %v2070 = vmul.f32 %v1950, %v1950
  %v2071 = vmul.f32 %v1951, %v1951
  %v2072 = vmul.f32 %v1952, %v1952
  %v2073 = vmul.f32 %v1953, %v1953
  %v2074 = vmul.f32 %v1954, %v1954
  %v2075 = vmul.f32 %v1955, %v1955
  %v2076 = vmul.f32 %v1956, %v1956
  %v2077 = vmul.f32 %v1957, %v1957
  %v2078 = vmul.f32 %v1958, %v1958
  %v2079 = vmul.f32 %v1959, %v1959
  %v2080 = vmul.f32 %v1960, %v1960
  %v2081 = vmul.f32 %v1961, %v1961
  %v2082 = vmul.f32 %v1962, %v1962
  %v2083 = vmul.f32 %v1963, %v1963
  %v2084 = vmul.f32 %v1964, %v1964
  %v2085 = vmul.f32 %v1965, %v1965
  %v2086 = vmul.f32 %v1966, %v1966
  %v2087 = vmul.f32 %v1967, %v1967
  %v2088 = vmul.f32 %v1968, %v1968
  %v2089 = vmul.f32 %v1969, %v1969
  %v2090 = vmul.f32 %v1970, %v1970
  %v2091 = vmul.f32 %v1971, %v1971
  %v2092 = vmul.f32 %v1972, %v1972
  %v2093 = vmul.f32 %v1973, %v1973
  %v2094 = vmul.f32 %v1974, %v1974
  %v2095 = vmul.f32 %v1975, %v1975
  %v2096 = vmul.f32 %v1976, %v1976
  %v2097 = vmul.f32 %v1977, %v1977
  %v2098 = vmul.f32 %v1978, %v1978
  %v2099 = vmul.f32 %v1979, %v1979
  %v2100 = vmul.f32 %v1980, %v1980
  %v2101 = vmul.f32 %v1981, %v1981
  %v2102 = vsub.f32 %v1982, %v2042
  %v2103 = vsub.f32 %v1983, %v2043
  %v2104 = vsub.f32 %v1984, %v2044
  %v2105 = vsub.f32 %v1985, %v2045
  %v2106 = vsub.f32 %v1986, %v2046
  %v2107 = vsub.f32 %v1987, %v2047
  %v2108 = vsub.f32 %v1988, %v2048
  %v2109 = vsub.f32 %v1989, %v2049
  %v2110 = vsub.f32 %v1990, %v2050
  %v2111 = vsub.f32 %v1991, %v2051
  %v2112 = vsub.f32 %v1992, %v2052
  %v2113 = vsub.f32 %v1993, %v2053
  %v2114 = vsub.f32 %v1994, %v2054
  %v2115 = vsub.f32 %v1995, %v2055
  %v2116 = vsub.f32 %v1996, %v2056
  %v2117 = vsub.f32 %v1997, %v2057
  %v2118 = vsub.f32 %v1998, %v2058
  %v2119 = vsub.f32 %v1999, %v2059
  %v2120 = vsub.f32 %v2000, %v2060
  %v2121 = vsub.f32 %v2001, %v2061
  %v2122 = vsub.f32 %v2002, %v2062
  %v2123 = vsub.f32 %v2003, %v2063
  %v2124 = vsub.f32 %v2004, %v2064
  %v2125 = vsub.f32 %v2005, %v2065
  %v2126 = vsub.f32 %v2006, %v2066
  %v2127 = vsub.f32 %v2007, %v2067
  %v2128 = vsub.f32 %v2008, %v2068
  %v2129 = vsub.f32 %v2009, %v2069
  %v2130 = vsub.f32 %v2010, %v2070
  %v2131 = vsub.f32 %v2011, %v2071
  %v2132 = vsub.f32 %v2012, %v2072
  %v2133 = vsub.f32 %v2013, %v2073
  %v2134 = vsub.f32 %v2014, %v2074
  %v2135 = vsub.f32 %v2015, %v2075
  %v2136 = vsub.f32 %v2016, %v2076
  %v2137 = vsub.f32 %v2017, %v2077
  %v2138 = vsub.f32 %v2018, %v2078
  %v2139 = vsub.f32 %v2019, %v2079
  %v2140 = vsub.f32 %v2020, %v2080
  %v2141 = vsub.f32 %v2021, %v2081
  %v2142 = vsub.f32 %v2022, %v2082
  %v2143 = vsub.f32 %v2023, %v2083
  %v2144 = vsub.f32 %v2024, %v2084
  %v2145 = vsub.f32 %v2025, %v2085
  %v2146 = vsub.f32 %v2026, %v2086
  %v2147 = vsub.f32 %v2027, %v2087
  %v2148 = vsub.f32 %v2028, %v2088
  %v2149 = vsub.f32 %v2029, %v2089
  %v2150 = vsub.f32 %v2030, %v2090
  %v2151 = vsub.f32 %v2031, %v2091
  %v2152 = vsub.f32 %v2032, %v2092
  %v2153 = vsub.f32 %v2033, %v2093
  %v2154 = vsub.f32 %v2034, %v2094
  %v2155 = vsub.f32 %v2035, %v2095
  %v2156 = vsub.f32 %v2036, %v2096
  %v2157 = vsub.f32 %v2037, %v2097
  %v2158 = vsub.f32 %v2038, %v2098
  %v2159 = vsub.f32 %v2039, %v2099
  %v2160 = vsub.f32 %v2040, %v2100
  %v2161 = vsub.f32 %v2041, %v2101
  %v2162 = vadd.f32 %v2102, 1e-05
  %v2163 = vadd.f32 %v2103, 1e-05
  %v2164 = vadd.f32 %v2104, 1e-05
  %v2165 = vadd.f32 %v2105, 1e-05
  %v2166 = vadd.f32 %v2106, 1e-05
  %v2167 = vadd.f32 %v2107, 1e-05
  %v2168 = vadd.f32 %v2108, 1e-05
  %v2169 = vadd.f32 %v2109, 1e-05
  %v2170 = vadd.f32 %v2110, 1e-05
  %v2171 = vadd.f32 %v2111, 1e-05
  %v2172 = vadd.f32 %v2112, 1e-05
  %v2173 = vadd.f32 %v2113, 1e-05
  %v2174 = vadd.f32 %v2114, 1e-05
  %v2175 = vadd.f32 %v2115, 1e-05
  %v2176 = vadd.f32 %v2116, 1e-05
  %v2177 = vadd.f32 %v2117, 1e-05
  %v2178 = vadd.f32 %v2118, 1e-05
  %v2179 = vadd.f32 %v2119, 1e-05
  %v2180 = vadd.f32 %v2120, 1e-05
  %v2181 = vadd.f32 %v2121, 1e-05
  %v2182 = vadd.f32 %v2122, 1e-05
  %v2183 = vadd.f32 %v2123, 1e-05
  %v2184 = vadd.f32 %v2124, 1e-05
  %v2185 = vadd.f32 %v2125, 1e-05
  %v2186 = vadd.f32 %v2126, 1e-05
  %v2187 = vadd.f32 %v2127, 1e-05
  %v2188 = vadd.f32 %v2128, 1e-05
  %v2189 = vadd.f32 %v2129, 1e-05
  %v2190 = vadd.f32 %v2130, 1e-05
  %v2191 = vadd.f32 %v2131, 1e-05
  %v2192 = vadd.f32 %v2132, 1e-05
  %v2193 = vadd.f32 %v2133, 1e-05
  %v2194 = vadd.f32 %v2134, 1e-05
  %v2195 = vadd.f32 %v2135, 1e-05
  %v2196 = vadd.f32 %v2136, 1e-05
  %v2197 = vadd.f32 %v2137, 1e-05
  %v2198 = vadd.f32 %v2138, 1e-05
  %v2199 = vadd.f32 %v2139, 1e-05
  %v2200 = vadd.f32 %v2140, 1e-05
  %v2201 = vadd.f32 %v2141, 1e-05
  %v2202 = vadd.f32 %v2142, 1e-05
  %v2203 = vadd.f32 %v2143, 1e-05
  %v2204 = vadd.f32 %v2144, 1e-05
  %v2205 = vadd.f32 %v2145, 1e-05
  %v2206 = vadd.f32 %v2146, 1e-05
  %v2207 = vadd.f32 %v2147, 1e-05
  %v2208 = vadd.f32 %v2148, 1e-05
  %v2209 = vadd.f32 %v2149, 1e-05
  %v2210 = vadd.f32 %v2150, 1e-05
  %v2211 = vadd.f32 %v2151, 1e-05
  %v2212 = vadd.f32 %v2152, 1e-05
  %v2213 = vadd.f32 %v2153, 1e-05
  %v2214 = vadd.f32 %v2154, 1e-05
  %v2215 = vadd.f32 %v2155, 1e-05
  %v2216 = vadd.f32 %v2156, 1e-05
  %v2217 = vadd.f32 %v2157, 1e-05
  %v2218 = vadd.f32 %v2158, 1e-05
  %v2219 = vadd.f32 %v2159, 1e-05
  %v2220 = vadd.f32 %v2160, 1e-05
  %v2221 = vadd.f32 %v2161, 1e-05
  %v2222 = vrsqrt.pop %v2162
  %v2223 = vrsqrt.pop %v2163
  %v2224 = vrsqrt.pop %v2164
  %v2225 = vrsqrt.pop %v2165
  %v2226 = vrsqrt.pop %v2166
  %v2227 = vrsqrt.pop %v2167
  %v2228 = vrsqrt.pop %v2168
  %v2229 = vrsqrt.pop %v2169
  %v2230 = vrsqrt.pop %v2170
  %v2231 = vrsqrt.pop %v2171
  %v2232 = vrsqrt.pop %v2172
  %v2233 = vrsqrt.pop %v2173
  %v2234 = vrsqrt.pop %v2174
  %v2235 = vrsqrt.pop %v2175
  %v2236 = vrsqrt.pop %v2176
  %v2237 = vrsqrt.pop %v2177
  %v2238 = vrsqrt.pop %v2178
  %v2239 = vrsqrt.pop %v2179
  %v2240 = vrsqrt.pop %v2180
  %v2241 = vrsqrt.pop %v2181
  %v2242 = vrsqrt.pop %v2182
  %v2243 = vrsqrt.pop %v2183
  %v2244 = vrsqrt.pop %v2184
  %v2245 = vrsqrt.pop %v2185
  %v2246 = vrsqrt.pop %v2186
  %v2247 = vrsqrt.pop %v2187
  %v2248 = vrsqrt.pop %v2188
  %v2249 = vrsqrt.pop %v2189
  %v2250 = vrsqrt.pop %v2190
  %v2251 = vrsqrt.pop %v2191
  %v2252 = vrsqrt.pop %v2192
  %v2253 = vrsqrt.pop %v2193
  %v2254 = vrsqrt.pop %v2194
  %v2255 = vrsqrt.pop %v2195
  %v2256 = vrsqrt.pop %v2196
  %v2257 = vrsqrt.pop %v2197
  %v2258 = vrsqrt.pop %v2198
  %v2259 = vrsqrt.pop %v2199
  %v2260 = vrsqrt.pop %v2200
  %v2261 = vrsqrt.pop %v2201
  %v2262 = vrsqrt.pop %v2202
  %v2263 = vrsqrt.pop %v2203
  %v2264 = vrsqrt.pop %v2204
  %v2265 = vrsqrt.pop %v2205
  %v2266 = vrsqrt.pop %v2206
  %v2267 = vrsqrt.pop %v2207
  %v2268 = vrsqrt.pop %v2208
  %v2269 = vrsqrt.pop %v2209
  %v2270 = vrsqrt.pop %v2210
  %v2271 = vrsqrt.pop %v2211
  %v2272 = vrsqrt.pop %v2212
  %v2273 = vrsqrt.pop %v2213
  %v2274 = vrsqrt.pop %v2214
  %v2275 = vrsqrt.pop %v2215
  %v2276 = vrsqrt.pop %v2216
  %v2277 = vrsqrt.pop %v2217
  %v2278 = vrsqrt.pop %v2218
  %v2279 = vrsqrt.pop %v2219
  %v2280 = vrsqrt.pop %v2220
  %v2281 = vrsqrt.pop %v2221
  %v2282 = vld [vmem:[%s6] sm:$0xff]
  %v2283 = vld [vmem:[%s6 + $0x8] sm:$0xff]
  %v2284 = vld [vmem:[%s6 + $0x10] sm:$0xff]
  %v2285 = vld [vmem:[%s6 + $0x18] sm:$0xff]
  %v2286 = vld [vmem:[%s6 + $0x20] sm:$0xff]
  %v2287 = vld [vmem:[%s6 + $0x28] sm:$0xff]
  %v2288 = vld [vmem:[%s6 + $0x30] sm:$0xff]
  %v2289 = vld [vmem:[%s6 + $0x38] sm:$0xff]
  %v2290 = vld [vmem:[%s6 + $0x40] sm:$0xff]
  %v2291 = vld [vmem:[%s6 + $0x48] sm:$0xff]
  %v2292 = vld [vmem:[%s6 + $0x50] sm:$0xff]
  %v2293 = vld [vmem:[%s6 + $0x58] sm:$0xff]
  %v2294 = vld [vmem:[%s6 + $0x60] sm:$0xff]
  %v2295 = vld [vmem:[%s6 + $0x68] sm:$0xff]
  %v2296 = vld [vmem:[%s6 + $0x70] sm:$0xff]
  %v2297 = vld [vmem:[%s6 + $0x78] sm:$0xff]
  %v2298 = vld [vmem:[%s6 + $0x80] sm:$0xff]
  %v2299 = vld [vmem:[%s6 + $0x88] sm:$0xff]
  %v2300 = vld [vmem:[%s6 + $0x90] sm:$0xff]
  %v2301 = vld [vmem:[%s6 + $0x98] sm:$0xff]
  %v2302 = vld [vmem:[%s6 + $0xa0] sm:$0xff]
  %v2303 = vld [vmem:[%s6 + $0xa8] sm:$0xff]
  %v2304 = vld [vmem:[%s6 + $0xb0] sm:$0xff]
  %v2305 = vld [vmem:[%s6 + $0xb8] sm:$0xff]
  %v2306 = vld [vmem:[%s6 + $0xc0] sm:$0xff]
  %v2307 = vld [vmem:[%s6 + $0xc8] sm:$0xff]
  %v2308 = vld [vmem:[%s6 + $0xd0] sm:$0xff]
  %v2309 = vld [vmem:[%s6 + $0xd8] sm:$0xff]
  %v2310 = vld [vmem:[%s6 + $0xe0] sm:$0xff]
  %v2311 = vld [vmem:[%s6 + $0xe8] sm:$0xff]
  %v2312 = vld [vmem:[%s6 + $0xf0] sm:$0xff]
  %v2313 = vld [vmem:[%s6 + $0xf8] sm:$0xff]
  %v2314 = vld [vmem:[%s6 + $0x100] sm:$0xff]
  %v2315 = vld [vmem:[%s6 + $0x108] sm:$0xff]
  %v2316 = vld [vmem:[%s6 + $0x110] sm:$0xff]
  %v2317 = vld [vmem:[%s6 + $0x118] sm:$0xff]
  %v2318 = vld [vmem:[%s6 + $0x120] sm:$0xff]
  %v2319 = vld [vmem:[%s6 + $0x128] sm:$0xff]
  %v2320 = vld [vmem:[%s6 + $0x130] sm:$0xff]
  %v2321 = vld [vmem:[%s6 + $0x138] sm:$0xff]
  %v2322 = vld [vmem:[%s6 + $0x140] sm:$0xff]
  %v2323 = vld [vmem:[%s6 + $0x148] sm:$0xff]
  %v2324 = vld [vmem:[%s6 + $0x150] sm:$0xff]
  %v2325 = vld [vmem:[%s6 + $0x158] sm:$0xff]
  %v2326 = vld [vmem:[%s6 + $0x160] sm:$0xff]
  %v2327 = vld [vmem:[%s6 + $0x168] sm:$0xff]
  %v2328 = vld [vmem:[%s6 + $0x170] sm:$0xff]
  %v2329 = vld [vmem:[%s6 + $0x178] sm:$0xff]
  %v2330 = vld [vmem:[%s6 + $0x180] sm:$0xff]
  %v2331 = vld [vmem:[%s6 + $0x188] sm:$0xff]
  %v2332 = vld [vmem:[%s6 + $0x190] sm:$0xff]
  %v2333 = vld [vmem:[%s6 + $0x198] sm:$0xff]
  %v2334 = vld [vmem:[%s6 + $0x1a0] sm:$0xff]
  %v2335 = vld [vmem:[%s6 + $0x1a8] sm:$0xff]
  %v2336 = vld [vmem:[%s6 + $0x1b0] sm:$0xff]
  %v2337 = vld [vmem:[%s6 + $0x1b8] sm:$0xff]
  %v2338 = vld [vmem:[%s6 + $0x1c0] sm:$0xff]
  %v2339 = vld [vmem:[%s6 + $0x1c8] sm:$0xff]
  %v2340 = vld [vmem:[%s6 + $0x1d0] sm:$0xff]
  %v2341 = vld [vmem:[%s6 + $0x1d8] sm:$0xff]
  %v2342 = vmul.f32 %v2222, %v2282
  %v2343 = vmul.f32 %v2223, %v2283
  %v2344 = vmul.f32 %v2224, %v2284
  %v2345 = vmul.f32 %v2225, %v2285
  %v2346 = vmul.f32 %v2226, %v2286
  %v2347 = vmul.f32 %v2227, %v2287
  %v2348 = vmul.f32 %v2228, %v2288
  %v2349 = vmul.f32 %v2229, %v2289
  %v2350 = vmul.f32 %v2230, %v2290
  %v2351 = vmul.f32 %v2231, %v2291
  %v2352 = vmul.f32 %v2232, %v2292
  %v2353 = vmul.f32 %v2233, %v2293
  %v2354 = vmul.f32 %v2234, %v2294
  %v2355 = vmul.f32 %v2235, %v2295
  %v2356 = vmul.f32 %v2236, %v2296
  %v2357 = vmul.f32 %v2237, %v2297
  %v2358 = vmul.f32 %v2238, %v2298
  %v2359 = vmul.f32 %v2239, %v2299
  %v2360 = vmul.f32 %v2240, %v2300
  %v2361 = vmul.f32 %v2241, %v2301
  %v2362 = vmul.f32 %v2242, %v2302
  %v2363 = vmul.f32 %v2243, %v2303
  %v2364 = vmul.f32 %v2244, %v2304
  %v2365 = vmul.f32 %v2245, %v2305
  %v2366 = vmul.f32 %v2246, %v2306
  %v2367 = vmul.f32 %v2247, %v2307
  %v2368 = vmul.f32 %v2248, %v2308
  %v2369 = vmul.f32 %v2249, %v2309
  %v2370 = vmul.f32 %v2250, %v2310
  %v2371 = vmul.f32 %v2251, %v2311
  %v2372 = vmul.f32 %v2252, %v2312
  %v2373 = vmul.f32 %v2253, %v2313
  %v2374 = vmul.f32 %v2254, %v2314
  %v2375 = vmul.f32 %v2255, %v2315
  %v2376 = vmul.f32 %v2256, %v2316
  %v2377 = vmul.f32 %v2257, %v2317
  %v2378 = vmul.f32 %v2258, %v2318
  %v2379 = vmul.f32 %v2259, %v2319
  %v2380 = vmul.f32 %v2260, %v2320
  %v2381 = vmul.f32 %v2261, %v2321
  %v2382 = vmul.f32 %v2262, %v2322
  %v2383 = vmul.f32 %v2263, %v2323
  %v2384 = vmul.f32 %v2264, %v2324
  %v2385 = vmul.f32 %v2265, %v2325
  %v2386 = vmul.f32 %v2266, %v2326
  %v2387 = vmul.f32 %v2267, %v2327
  %v2388 = vmul.f32 %v2268, %v2328
  %v2389 = vmul.f32 %v2269, %v2329
  %v2390 = vmul.f32 %v2270, %v2330
  %v2391 = vmul.f32 %v2271, %v2331
  %v2392 = vmul.f32 %v2272, %v2332
  %v2393 = vmul.f32 %v2273, %v2333
  %v2394 = vmul.f32 %v2274, %v2334
  %v2395 = vmul.f32 %v2275, %v2335
  %v2396 = vmul.f32 %v2276, %v2336
  %v2397 = vmul.f32 %v2277, %v2337
  %v2398 = vmul.f32 %v2278, %v2338
  %v2399 = vmul.f32 %v2279, %v2339
  %v2400 = vmul.f32 %v2280, %v2340
  %v2401 = vmul.f32 %v2281, %v2341
  %v2402 = vld [vmem:[%s7] sm:$0xff]
  %v2403 = vld [vmem:[%s7 + $0x8] sm:$0xff]
  %v2404 = vld [vmem:[%s7 + $0x10] sm:$0xff]
  %v2405 = vld [vmem:[%s7 + $0x18] sm:$0xff]
  %v2406 = vld [vmem:[%s7 + $0x20] sm:$0xff]
  %v2407 = vld [vmem:[%s7 + $0x28] sm:$0xff]
  %v2408 = vld [vmem:[%s7 + $0x30] sm:$0xff]
  %v2409 = vld [vmem:[%s7 + $0x38] sm:$0xff]
  %v2410 = vld [vmem:[%s7 + $0x40] sm:$0xff]
  %v2411 = vld [vmem:[%s7 + $0x48] sm:$0xff]
  %v2412 = vld [vmem:[%s7 + $0x50] sm:$0xff]
  %v2413 = vld [vmem:[%s7 + $0x58] sm:$0xff]
  %v2414 = vld [vmem:[%s7 + $0x60] sm:$0xff]
  %v2415 = vld [vmem:[%s7 + $0x68] sm:$0xff]
  %v2416 = vld [vmem:[%s7 + $0x70] sm:$0xff]
  %v2417 = vld [vmem:[%s7 + $0x78] sm:$0xff]
  %v2418 = vld [vmem:[%s7 + $0x80] sm:$0xff]
  %v2419 = vld [vmem:[%s7 + $0x88] sm:$0xff]
  %v2420 = vld [vmem:[%s7 + $0x90] sm:$0xff]
  %v2421 = vld [vmem:[%s7 + $0x98] sm:$0xff]
  %v2422 = vld [vmem:[%s7 + $0xa0] sm:$0xff]
  %v2423 = vld [vmem:[%s7 + $0xa8] sm:$0xff]
  %v2424 = vld [vmem:[%s7 + $0xb0] sm:$0xff]
  %v2425 = vld [vmem:[%s7 + $0xb8] sm:$0xff]
  %v2426 = vld [vmem:[%s7 + $0xc0] sm:$0xff]
  %v2427 = vld [vmem:[%s7 + $0xc8] sm:$0xff]
  %v2428 = vld [vmem:[%s7 + $0xd0] sm:$0xff]
  %v2429 = vld [vmem:[%s7 + $0xd8] sm:$0xff]
  %v2430 = vld [vmem:[%s7 + $0xe0] sm:$0xff]
  %v2431 = vld [vmem:[%s7 + $0xe8] sm:$0xff]
  %v2432 = vld [vmem:[%s7 + $0xf0] sm:$0xff]
  %v2433 = vld [vmem:[%s7 + $0xf8] sm:$0xff]
  %v2434 = vld [vmem:[%s7 + $0x100] sm:$0xff]
  %v2435 = vld [vmem:[%s7 + $0x108] sm:$0xff]
  %v2436 = vld [vmem:[%s7 + $0x110] sm:$0xff]
  %v2437 = vld [vmem:[%s7 + $0x118] sm:$0xff]
  %v2438 = vld [vmem:[%s7 + $0x120] sm:$0xff]
  %v2439 = vld [vmem:[%s7 + $0x128] sm:$0xff]
  %v2440 = vld [vmem:[%s7 + $0x130] sm:$0xff]
  %v2441 = vld [vmem:[%s7 + $0x138] sm:$0xff]
  %v2442 = vld [vmem:[%s7 + $0x140] sm:$0xff]
  %v2443 = vld [vmem:[%s7 + $0x148] sm:$0xff]
  %v2444 = vld [vmem:[%s7 + $0x150] sm:$0xff]
  %v2445 = vld [vmem:[%s7 + $0x158] sm:$0xff]
  %v2446 = vld [vmem:[%s7 + $0x160] sm:$0xff]
  %v2447 = vld [vmem:[%s7 + $0x168] sm:$0xff]
  %v2448 = vld [vmem:[%s7 + $0x170] sm:$0xff]
  %v2449 = vld [vmem:[%s7 + $0x178] sm:$0xff]
  %v2450 = vld [vmem:[%s7 + $0x180] sm:$0xff]
  %v2451 = vld [vmem:[%s7 + $0x188] sm:$0xff]
  %v2452 = vld [vmem:[%s7 + $0x190] sm:$0xff]
  %v2453 = vld [vmem:[%s7 + $0x198] sm:$0xff]
  %v2454 = vld [vmem:[%s7 + $0x1a0] sm:$0xff]
  %v2455 = vld [vmem:[%s7 + $0x1a8] sm:$0xff]
  %v2456 = vld [vmem:[%s7 + $0x1b0] sm:$0xff]
  %v2457 = vld [vmem:[%s7 + $0x1b8] sm:$0xff]
  %v2458 = vld [vmem:[%s7 + $0x1c0] sm:$0xff]
  %v2459 = vld [vmem:[%s7 + $0x1c8] sm:$0xff]
  %v2460 = vld [vmem:[%s7 + $0x1d0] sm:$0xff]
  %v2461 = vld [vmem:[%s7 + $0x1d8] sm:$0xff]
  %v2462 = vmul.f32 %v1922, %v2342
  %v2463 = vmul.f32 %v1923, %v2343
  %v2464 = vmul.f32 %v1924, %v2344
  %v2465 = vmul.f32 %v1925, %v2345
  %v2466 = vmul.f32 %v1926, %v2346
  %v2467 = vmul.f32 %v1927, %v2347
  %v2468 = vmul.f32 %v1928, %v2348
  %v2469 = vmul.f32 %v1929, %v2349
  %v2470 = vmul.f32 %v1930, %v2350
  %v2471 = vmul.f32 %v1931, %v2351
  %v2472 = vmul.f32 %v1932, %v2352
  %v2473 = vmul.f32 %v1933, %v2353
  %v2474 = vmul.f32 %v1934, %v2354
  %v2475 = vmul.f32 %v1935, %v2355
  %v2476 = vmul.f32 %v1936, %v2356
  %v2477 = vmul.f32 %v1937, %v2357
  %v2478 = vmul.f32 %v1938, %v2358
  %v2479 = vmul.f32 %v1939, %v2359
  %v2480 = vmul.f32 %v1940, %v2360
  %v2481 = vmul.f32 %v1941, %v2361
  %v2482 = vmul.f32 %v1942, %v2362
  %v2483 = vmul.f32 %v1943, %v2363
  %v2484 = vmul.f32 %v1944, %v2364
  %v2485 = vmul.f32 %v1945, %v2365
  %v2486 = vmul.f32 %v1946, %v2366
  %v2487 = vmul.f32 %v1947, %v2367
  %v2488 = vmul.f32 %v1948, %v2368
  %v2489 = vmul.f32 %v1949, %v2369
  %v2490 = vmul.f32 %v1950, %v2370
  %v2491 = vmul.f32 %v1951, %v2371
  %v2492 = vmul.f32 %v1952, %v2372
  %v2493 = vmul.f32 %v1953, %v2373
  %v2494 = vmul.f32 %v1954, %v2374
  %v2495 = vmul.f32 %v1955, %v2375
  %v2496 = vmul.f32 %v1956, %v2376
  %v2497 = vmul.f32 %v1957, %v2377
  %v2498 = vmul.f32 %v1958, %v2378
  %v2499 = vmul.f32 %v1959, %v2379
  %v2500 = vmul.f32 %v1960, %v2380
  %v2501 = vmul.f32 %v1961, %v2381
  %v2502 = vmul.f32 %v1962, %v2382
  %v2503 = vmul.f32 %v1963, %v2383
  %v2504 = vmul.f32 %v1964, %v2384
  %v2505 = vmul.f32 %v1965, %v2385
  %v2506 = vmul.f32 %v1966, %v2386
  %v2507 = vmul.f32 %v1967, %v2387
  %v2508 = vmul.f32 %v1968, %v2388
  %v2509 = vmul.f32 %v1969, %v2389
  %v2510 = vmul.f32 %v1970, %v2390
  %v2511 = vmul.f32 %v1971, %v2391
  %v2512 = vmul.f32 %v1972, %v2392
  %v2513 = vmul.f32 %v1973, %v2393
  %v2514 = vmul.f32 %v1974, %v2394
  %v2515 = vmul.f32 %v1975, %v2395
  %v2516 = vmul.f32 %v1976, %v2396
  %v2517 = vmul.f32 %v1977, %v2397
  %v2518 = vmul.f32 %v1978, %v2398
  %v2519 = vmul.f32 %v1979, %v2399
  %v2520 = vmul.f32 %v1980, %v2400
  %v2521 = vmul.f32 %v1981, %v2401
  %v2522 = vsub.f32 %v2402, %v2462
  %v2523 = vsub.f32 %v2403, %v2463
  %v2524 = vsub.f32 %v2404, %v2464
  %v2525 = vsub.f32 %v2405, %v2465
  %v2526 = vsub.f32 %v2406, %v2466
  %v2527 = vsub.f32 %v2407, %v2467
  %v2528 = vsub.f32 %v2408, %v2468
  %v2529 = vsub.f32 %v2409, %v2469
  %v2530 = vsub.f32 %v2410, %v2470
  %v2531 = vsub.f32 %v2411, %v2471
  %v2532 = vsub.f32 %v2412, %v2472
  %v2533 = vsub.f32 %v2413, %v2473
  %v2534 = vsub.f32 %v2414, %v2474
  %v2535 = vsub.f32 %v2415, %v2475
  %v2536 = vsub.f32 %v2416, %v2476
  %v2537 = vsub.f32 %v2417, %v2477
  %v2538 = vsub.f32 %v2418, %v2478
  %v2539 = vsub.f32 %v2419, %v2479
  %v2540 = vsub.f32 %v2420, %v2480
  %v2541 = vsub.f32 %v2421, %v2481
  %v2542 = vsub.f32 %v2422, %v2482
  %v2543 = vsub.f32 %v2423, %v2483
  %v2544 = vsub.f32 %v2424, %v2484
  %v2545 = vsub.f32 %v2425, %v2485
  %v2546 = vsub.f32 %v2426, %v2486
  %v2547 = vsub.f32 %v2427, %v2487
  %v2548 = vsub.f32 %v2428, %v2488
  %v2549 = vsub.f32 %v2429, %v2489
  %v2550 = vsub.f32 %v2430, %v2490
  %v2551 = vsub.f32 %v2431, %v2491
  %v2552 = vsub.f32 %v2432, %v2492
  %v2553 = vsub.f32 %v2433, %v2493
  %v2554 = vsub.f32 %v2434, %v2494
  %v2555 = vsub.f32 %v2435, %v2495
  %v2556 = vsub.f32 %v2436, %v2496
  %v2557 = vsub.f32 %v2437, %v2497
  %v2558 = vsub.f32 %v2438, %v2498
  %v2559 = vsub.f32 %v2439, %v2499
  %v2560 = vsub.f32 %v2440, %v2500
  %v2561 = vsub.f32 %v2441, %v2501
  %v2562 = vsub.f32 %v2442, %v2502
  %v2563 = vsub.f32 %v2443, %v2503
  %v2564 = vsub.f32 %v2444, %v2504
  %v2565 = vsub.f32 %v2445, %v2505
  %v2566 = vsub.f32 %v2446, %v2506
  %v2567 = vsub.f32 %v2447, %v2507
  %v2568 = vsub.f32 %v2448, %v2508
  %v2569 = vsub.f32 %v2449, %v2509
  %v2570 = vsub.f32 %v2450, %v2510
  %v2571 = vsub.f32 %v2451, %v2511
  %v2572 = vsub.f32 %v2452, %v2512
  %v2573 = vsub.f32 %v2453, %v2513
  %v2574 = vsub.f32 %v2454, %v2514
  %v2575 = vsub.f32 %v2455, %v2515
  %v2576 = vsub.f32 %v2456, %v2516
  %v2577 = vsub.f32 %v2457, %v2517
  %v2578 = vsub.f32 %v2458, %v2518
  %v2579 = vsub.f32 %v2459, %v2519
  %v2580 = vsub.f32 %v2460, %v2520
  %v2581 = vsub.f32 %v2461, %v2521
  %2583 = vset.pattern.permute.xlu0 0
  %2584 = vperm.xlu0 %2583, %v2342
  %v2585 = vpop.permute.xlu0 %2584
  %2588 = vset.pattern.permute.xlu0 0
  %2589 = vperm.xlu0 %2588, %v2343
  %v2590 = vpop.permute.xlu0 %2589
  %2593 = vset.pattern.permute.xlu0 0
  %2594 = vperm.xlu0 %2593, %v2344
  %v2595 = vpop.permute.xlu0 %2594
  %2598 = vset.pattern.permute.xlu0 0
  %2599 = vperm.xlu0 %2598, %v2345
  %v2600 = vpop.permute.xlu0 %2599
  %2603 = vset.pattern.permute.xlu0 0
  %2604 = vperm.xlu0 %2603, %v2346
  %v2605 = vpop.permute.xlu0 %2604
  %2608 = vset.pattern.permute.xlu0 0
  %2609 = vperm.xlu0 %2608, %v2347
  %v2610 = vpop.permute.xlu0 %2609
  %2613 = vset.pattern.permute.xlu0 0
  %2614 = vperm.xlu0 %2613, %v2348
  %v2615 = vpop.permute.xlu0 %2614
  %2618 = vset.pattern.permute.xlu0 0
  %2619 = vperm.xlu0 %2618, %v2349
  %v2620 = vpop.permute.xlu0 %2619
  %2623 = vset.pattern.permute.xlu0 0
  %2624 = vperm.xlu0 %2623, %v2350
  %v2625 = vpop.permute.xlu0 %2624
  %2628 = vset.pattern.permute.xlu0 0
  %2629 = vperm.xlu0 %2628, %v2351
  %v2630 = vpop.permute.xlu0 %2629
  %2633 = vset.pattern.permute.xlu0 0
  %2634 = vperm.xlu0 %2633, %v2352
  %v2635 = vpop.permute.xlu0 %2634
  %2638 = vset.pattern.permute.xlu0 0
  %2639 = vperm.xlu0 %2638, %v2353
  %v2640 = vpop.permute.xlu0 %2639
  %2643 = vset.pattern.permute.xlu0 0
  %2644 = vperm.xlu0 %2643, %v2354
  %v2645 = vpop.permute.xlu0 %2644
  %2648 = vset.pattern.permute.xlu0 0
  %2649 = vperm.xlu0 %2648, %v2355
  %v2650 = vpop.permute.xlu0 %2649
  %2653 = vset.pattern.permute.xlu0 0
  %2654 = vperm.xlu0 %2653, %v2356
  %v2655 = vpop.permute.xlu0 %2654
  %2658 = vset.pattern.permute.xlu0 0
  %2659 = vperm.xlu0 %2658, %v2357
  %v2660 = vpop.permute.xlu0 %2659
  %2663 = vset.pattern.permute.xlu0 0
  %2664 = vperm.xlu0 %2663, %v2358
  %v2665 = vpop.permute.xlu0 %2664
  %2668 = vset.pattern.permute.xlu0 0
  %2669 = vperm.xlu0 %2668, %v2359
  %v2670 = vpop.permute.xlu0 %2669
  %2673 = vset.pattern.permute.xlu0 0
  %2674 = vperm.xlu0 %2673, %v2360
  %v2675 = vpop.permute.xlu0 %2674
  %2678 = vset.pattern.permute.xlu0 0
  %2679 = vperm.xlu0 %2678, %v2361
  %v2680 = vpop.permute.xlu0 %2679
  %2683 = vset.pattern.permute.xlu0 0
  %2684 = vperm.xlu0 %2683, %v2362
  %v2685 = vpop.permute.xlu0 %2684
  %2688 = vset.pattern.permute.xlu0 0
  %2689 = vperm.xlu0 %2688, %v2363
  %v2690 = vpop.permute.xlu0 %2689
  %2693 = vset.pattern.permute.xlu0 0
  %2694 = vperm.xlu0 %2693, %v2364
  %v2695 = vpop.permute.xlu0 %2694
  %2698 = vset.pattern.permute.xlu0 0
  %2699 = vperm.xlu0 %2698, %v2365
  %v2700 = vpop.permute.xlu0 %2699
  %2703 = vset.pattern.permute.xlu0 0
  %2704 = vperm.xlu0 %2703, %v2366
  %v2705 = vpop.permute.xlu0 %2704
  %2708 = vset.pattern.permute.xlu0 0
  %2709 = vperm.xlu0 %2708, %v2367
  %v2710 = vpop.permute.xlu0 %2709
  %2713 = vset.pattern.permute.xlu0 0
  %2714 = vperm.xlu0 %2713, %v2368
  %v2715 = vpop.permute.xlu0 %2714
  %2718 = vset.pattern.permute.xlu0 0
  %2719 = vperm.xlu0 %2718, %v2369
  %v2720 = vpop.permute.xlu0 %2719
  %2723 = vset.pattern.permute.xlu0 0
  %2724 = vperm.xlu0 %2723, %v2370
  %v2725 = vpop.permute.xlu0 %2724
  %2728 = vset.pattern.permute.xlu0 0
  %2729 = vperm.xlu0 %2728, %v2371
  %v2730 = vpop.permute.xlu0 %2729
  %2733 = vset.pattern.permute.xlu0 0
  %2734 = vperm.xlu0 %2733, %v2372
  %v2735 = vpop.permute.xlu0 %2734
  %2738 = vset.pattern.permute.xlu0 0
  %2739 = vperm.xlu0 %2738, %v2373
  %v2740 = vpop.permute.xlu0 %2739
  %2743 = vset.pattern.permute.xlu0 0
  %2744 = vperm.xlu0 %2743, %v2374
  %v2745 = vpop.permute.xlu0 %2744
  %2748 = vset.pattern.permute.xlu0 0
  %2749 = vperm.xlu0 %2748, %v2375
  %v2750 = vpop.permute.xlu0 %2749
  %2753 = vset.pattern.permute.xlu0 0
  %2754 = vperm.xlu0 %2753, %v2376
  %v2755 = vpop.permute.xlu0 %2754
  %2758 = vset.pattern.permute.xlu0 0
  %2759 = vperm.xlu0 %2758, %v2377
  %v2760 = vpop.permute.xlu0 %2759
  %2763 = vset.pattern.permute.xlu0 0
  %2764 = vperm.xlu0 %2763, %v2378
  %v2765 = vpop.permute.xlu0 %2764
  %2768 = vset.pattern.permute.xlu0 0
  %2769 = vperm.xlu0 %2768, %v2379
  %v2770 = vpop.permute.xlu0 %2769
  %2773 = vset.pattern.permute.xlu0 0
  %2774 = vperm.xlu0 %2773, %v2380
  %v2775 = vpop.permute.xlu0 %2774
  %2778 = vset.pattern.permute.xlu0 0
  %2779 = vperm.xlu0 %2778, %v2381
  %v2780 = vpop.permute.xlu0 %2779
  %2783 = vset.pattern.permute.xlu0 0
  %2784 = vperm.xlu0 %2783, %v2382
  %v2785 = vpop.permute.xlu0 %2784
  %2788 = vset.pattern.permute.xlu0 0
  %2789 = vperm.xlu0 %2788, %v2383
  %v2790 = vpop.permute.xlu0 %2789
  %2793 = vset.pattern.permute.xlu0 0
  %2794 = vperm.xlu0 %2793, %v2384
  %v2795 = vpop.permute.xlu0 %2794
  %2798 = vset.pattern.permute.xlu0 0
  %2799 = vperm.xlu0 %2798, %v2385
  %v2800 = vpop.permute.xlu0 %2799
  %2803 = vset.pattern.permute.xlu0 0
  %2804 = vperm.xlu0 %2803, %v2386
  %v2805 = vpop.permute.xlu0 %2804
  %2808 = vset.pattern.permute.xlu0 0
  %2809 = vperm.xlu0 %2808, %v2387
  %v2810 = vpop.permute.xlu0 %2809
  %2813 = vset.pattern.permute.xlu0 0
  %2814 = vperm.xlu0 %2813, %v2388
  %v2815 = vpop.permute.xlu0 %2814
  %2818 = vset.pattern.permute.xlu0 0
  %2819 = vperm.xlu0 %2818, %v2389
  %v2820 = vpop.permute.xlu0 %2819
  %2823 = vset.pattern.permute.xlu0 0
  %2824 = vperm.xlu0 %2823, %v2390
  %v2825 = vpop.permute.xlu0 %2824
  %2828 = vset.pattern.permute.xlu0 0
  %2829 = vperm.xlu0 %2828, %v2391
  %v2830 = vpop.permute.xlu0 %2829
  %2833 = vset.pattern.permute.xlu0 0
  %2834 = vperm.xlu0 %2833, %v2392
  %v2835 = vpop.permute.xlu0 %2834
  %2838 = vset.pattern.permute.xlu0 0
  %2839 = vperm.xlu0 %2838, %v2393
  %v2840 = vpop.permute.xlu0 %2839
  %2843 = vset.pattern.permute.xlu0 0
  %2844 = vperm.xlu0 %2843, %v2394
  %v2845 = vpop.permute.xlu0 %2844
  %2848 = vset.pattern.permute.xlu0 0
  %2849 = vperm.xlu0 %2848, %v2395
  %v2850 = vpop.permute.xlu0 %2849
  %2853 = vset.pattern.permute.xlu0 0
  %2854 = vperm.xlu0 %2853, %v2396
  %v2855 = vpop.permute.xlu0 %2854
  %2858 = vset.pattern.permute.xlu0 0
  %2859 = vperm.xlu0 %2858, %v2397
  %v2860 = vpop.permute.xlu0 %2859
  %2863 = vset.pattern.permute.xlu0 0
  %2864 = vperm.xlu0 %2863, %v2398
  %v2865 = vpop.permute.xlu0 %2864
  %2868 = vset.pattern.permute.xlu0 0
  %2869 = vperm.xlu0 %2868, %v2399
  %v2870 = vpop.permute.xlu0 %2869
  %2873 = vset.pattern.permute.xlu0 0
  %2874 = vperm.xlu0 %2873, %v2400
  %v2875 = vpop.permute.xlu0 %2874
  %2878 = vset.pattern.permute.xlu0 0
  %2879 = vperm.xlu0 %2878, %v2401
  %v2880 = vpop.permute.xlu0 %2879
  %v2882 = vmul.f32 %v964, %v2585
  %v2883 = vmul.f32 %v966, %v2585
  %v2884 = vmul.f32 %v970, %v2590
  %v2885 = vmul.f32 %v972, %v2590
  %v2886 = vmul.f32 %v976, %v2595
  %v2887 = vmul.f32 %v978, %v2595
  %v2888 = vmul.f32 %v982, %v2600
  %v2889 = vmul.f32 %v984, %v2600
  %v2890 = vmul.f32 %v988, %v2605
  %v2891 = vmul.f32 %v990, %v2605
  %v2892 = vmul.f32 %v994, %v2610
  %v2893 = vmul.f32 %v996, %v2610
  %v2894 = vmul.f32 %v1000, %v2615
  %v2895 = vmul.f32 %v1002, %v2615
  %v2896 = vmul.f32 %v1006, %v2620
  %v2897 = vmul.f32 %v1008, %v2620
  %v2898 = vmul.f32 %v1012, %v2625
  %v2899 = vmul.f32 %v1014, %v2625
  %v2900 = vmul.f32 %v1018, %v2630
  %v2901 = vmul.f32 %v1020, %v2630
  %v2902 = vmul.f32 %v1024, %v2635
  %v2903 = vmul.f32 %v1026, %v2635
  %v2904 = vmul.f32 %v1030, %v2640
  %v2905 = vmul.f32 %v1032, %v2640
  %v2906 = vmul.f32 %v1036, %v2645
  %v2907 = vmul.f32 %v1038, %v2645
  %v2908 = vmul.f32 %v1042, %v2650
  %v2909 = vmul.f32 %v1044, %v2650
  %v2910 = vmul.f32 %v1048, %v2655
  %v2911 = vmul.f32 %v1050, %v2655
  %v2912 = vmul.f32 %v1054, %v2660
  %v2913 = vmul.f32 %v1056, %v2660
  %v2914 = vmul.f32 %v1060, %v2665
  %v2915 = vmul.f32 %v1062, %v2665
  %v2916 = vmul.f32 %v1066, %v2670
  %v2917 = vmul.f32 %v1068, %v2670
  %v2918 = vmul.f32 %v1072, %v2675
  %v2919 = vmul.f32 %v1074, %v2675
  %v2920 = vmul.f32 %v1078, %v2680
  %v2921 = vmul.f32 %v1080, %v2680
  %v2922 = vmul.f32 %v1084, %v2685
  %v2923 = vmul.f32 %v1086, %v2685
  %v2924 = vmul.f32 %v1090, %v2690
  %v2925 = vmul.f32 %v1092, %v2690
  %v2926 = vmul.f32 %v1096, %v2695
  %v2927 = vmul.f32 %v1098, %v2695
  %v2928 = vmul.f32 %v1102, %v2700
  %v2929 = vmul.f32 %v1104, %v2700
  %v2930 = vmul.f32 %v1108, %v2705
  %v2931 = vmul.f32 %v1110, %v2705
  %v2932 = vmul.f32 %v1114, %v2710
  %v2933 = vmul.f32 %v1116, %v2710
  %v2934 = vmul.f32 %v1120, %v2715
  %v2935 = vmul.f32 %v1122, %v2715
  %v2936 = vmul.f32 %v1126, %v2720
  %v2937 = vmul.f32 %v1128, %v2720
  %v2938 = vmul.f32 %v1132, %v2725
  %v2939 = vmul.f32 %v1134, %v2725
  %v2940 = vmul.f32 %v1138, %v2730
  %v2941 = vmul.f32 %v1140, %v2730
  %v2942 = vmul.f32 %v1144, %v2735
  %v2943 = vmul.f32 %v1146, %v2735
  %v2944 = vmul.f32 %v1150, %v2740
  %v2945 = vmul.f32 %v1152, %v2740
  %v2946 = vmul.f32 %v1156, %v2745
  %v2947 = vmul.f32 %v1158, %v2745
  %v2948 = vmul.f32 %v1162, %v2750
  %v2949 = vmul.f32 %v1164, %v2750
  %v2950 = vmul.f32 %v1168, %v2755
  %v2951 = vmul.f32 %v1170, %v2755
  %v2952 = vmul.f32 %v1174, %v2760
  %v2953 = vmul.f32 %v1176, %v2760
  %v2954 = vmul.f32 %v1180, %v2765
  %v2955 = vmul.f32 %v1182, %v2765
  %v2956 = vmul.f32 %v1186, %v2770
  %v2957 = vmul.f32 %v1188, %v2770
  %v2958 = vmul.f32 %v1192, %v2775
  %v2959 = vmul.f32 %v1194, %v2775
  %v2960 = vmul.f32 %v1198, %v2780
  %v2961 = vmul.f32 %v1200, %v2780
  %v2962 = vmul.f32 %v1204, %v2785
  %v2963 = vmul.f32 %v1206, %v2785
  %v2964 = vmul.f32 %v1210, %v2790
  %v2965 = vmul.f32 %v1212, %v2790
  %v2966 = vmul.f32 %v1216, %v2795
  %v2967 = vmul.f32 %v1218, %v2795
  %v2968 = vmul.f32 %v1222, %v2800
  %v2969 = vmul.f32 %v1224, %v2800
  %v2970 = vmul.f32 %v1228, %v2805
  %v2971 = vmul.f32 %v1230, %v2805
  %v2972 = vmul.f32 %v1234, %v2810
  %v2973 = vmul.f32 %v1236, %v2810
  %v2974 = vmul.f32 %v1240, %v2815
  %v2975 = vmul.f32 %v1242, %v2815
  %v2976 = vmul.f32 %v1246, %v2820
  %v2977 = vmul.f32 %v1248, %v2820
  %v2978 = vmul.f32 %v1252, %v2825
  %v2979 = vmul.f32 %v1254, %v2825
  %v2980 = vmul.f32 %v1258, %v2830
  %v2981 = vmul.f32 %v1260, %v2830
  %v2982 = vmul.f32 %v1264, %v2835
  %v2983 = vmul.f32 %v1266, %v2835
  %v2984 = vmul.f32 %v1270, %v2840
  %v2985 = vmul.f32 %v1272, %v2840
  %v2986 = vmul.f32 %v1276, %v2845
  %v2987 = vmul.f32 %v1278, %v2845
  %v2988 = vmul.f32 %v1282, %v2850
  %v2989 = vmul.f32 %v1284, %v2850
  %v2990 = vmul.f32 %v1288, %v2855
  %v2991 = vmul.f32 %v1290, %v2855
  %v2992 = vmul.f32 %v1294, %v2860
  %v2993 = vmul.f32 %v1296, %v2860
  %v2994 = vmul.f32 %v1300, %v2865
  %v2995 = vmul.f32 %v1302, %v2865
  %v2996 = vmul.f32 %v1306, %v2870
  %v2997 = vmul.f32 %v1308, %v2870
  %v2998 = vmul.f32 %v1312, %v2875
  %v2999 = vmul.f32 %v1314, %v2875
  %v3000 = vmul.f32 %v1318, %v2880
  %v3001 = vmul.f32 %v1320, %v2880
  %3003 = vset.pattern.permute.xlu0 0
  %3004 = vperm.xlu0 %3003, %v2522
  %v3005 = vpop.permute.xlu0 %3004
  %3008 = vset.pattern.permute.xlu0 0
  %3009 = vperm.xlu0 %3008, %v2523
  %v3010 = vpop.permute.xlu0 %3009
  %3013 = vset.pattern.permute.xlu0 0
  %3014 = vperm.xlu0 %3013, %v2524
  %v3015 = vpop.permute.xlu0 %3014
  %3018 = vset.pattern.permute.xlu0 0
  %3019 = vperm.xlu0 %3018, %v2525
  %v3020 = vpop.permute.xlu0 %3019
  %3023 = vset.pattern.permute.xlu0 0
  %3024 = vperm.xlu0 %3023, %v2526
  %v3025 = vpop.permute.xlu0 %3024
  %3028 = vset.pattern.permute.xlu0 0
  %3029 = vperm.xlu0 %3028, %v2527
  %v3030 = vpop.permute.xlu0 %3029
  %3033 = vset.pattern.permute.xlu0 0
  %3034 = vperm.xlu0 %3033, %v2528
  %v3035 = vpop.permute.xlu0 %3034
  %3038 = vset.pattern.permute.xlu0 0
  %3039 = vperm.xlu0 %3038, %v2529
  %v3040 = vpop.permute.xlu0 %3039
  %3043 = vset.pattern.permute.xlu0 0
  %3044 = vperm.xlu0 %3043, %v2530
  %v3045 = vpop.permute.xlu0 %3044
  %3048 = vset.pattern.permute.xlu0 0
  %3049 = vperm.xlu0 %3048, %v2531
  %v3050 = vpop.permute.xlu0 %3049
  %3053 = vset.pattern.permute.xlu0 0
  %3054 = vperm.xlu0 %3053, %v2532
  %v3055 = vpop.permute.xlu0 %3054
  %3058 = vset.pattern.permute.xlu0 0
  %3059 = vperm.xlu0 %3058, %v2533
  %v3060 = vpop.permute.xlu0 %3059
  %3063 = vset.pattern.permute.xlu0 0
  %3064 = vperm.xlu0 %3063, %v2534
  %v3065 = vpop.permute.xlu0 %3064
  %3068 = vset.pattern.permute.xlu0 0
  %3069 = vperm.xlu0 %3068, %v2535
  %v3070 = vpop.permute.xlu0 %3069
  %3073 = vset.pattern.permute.xlu0 0
  %3074 = vperm.xlu0 %3073, %v2536
  %v3075 = vpop.permute.xlu0 %3074
  %3078 = vset.pattern.permute.xlu0 0
  %3079 = vperm.xlu0 %3078, %v2537
  %v3080 = vpop.permute.xlu0 %3079
  %3083 = vset.pattern.permute.xlu0 0
  %3084 = vperm.xlu0 %3083, %v2538
  %v3085 = vpop.permute.xlu0 %3084
  %3088 = vset.pattern.permute.xlu0 0
  %3089 = vperm.xlu0 %3088, %v2539
  %v3090 = vpop.permute.xlu0 %3089
  %3093 = vset.pattern.permute.xlu0 0
  %3094 = vperm.xlu0 %3093, %v2540
  %v3095 = vpop.permute.xlu0 %3094
  %3098 = vset.pattern.permute.xlu0 0
  %3099 = vperm.xlu0 %3098, %v2541
  %v3100 = vpop.permute.xlu0 %3099
  %3103 = vset.pattern.permute.xlu0 0
  %3104 = vperm.xlu0 %3103, %v2542
  %v3105 = vpop.permute.xlu0 %3104
  %3108 = vset.pattern.permute.xlu0 0
  %3109 = vperm.xlu0 %3108, %v2543
  %v3110 = vpop.permute.xlu0 %3109
  %3113 = vset.pattern.permute.xlu0 0
  %3114 = vperm.xlu0 %3113, %v2544
  %v3115 = vpop.permute.xlu0 %3114
  %3118 = vset.pattern.permute.xlu0 0
  %3119 = vperm.xlu0 %3118, %v2545
  %v3120 = vpop.permute.xlu0 %3119
  %3123 = vset.pattern.permute.xlu0 0
  %3124 = vperm.xlu0 %3123, %v2546
  %v3125 = vpop.permute.xlu0 %3124
  %3128 = vset.pattern.permute.xlu0 0
  %3129 = vperm.xlu0 %3128, %v2547
  %v3130 = vpop.permute.xlu0 %3129
  %3133 = vset.pattern.permute.xlu0 0
  %3134 = vperm.xlu0 %3133, %v2548
  %v3135 = vpop.permute.xlu0 %3134
  %3138 = vset.pattern.permute.xlu0 0
  %3139 = vperm.xlu0 %3138, %v2549
  %v3140 = vpop.permute.xlu0 %3139
  %3143 = vset.pattern.permute.xlu0 0
  %3144 = vperm.xlu0 %3143, %v2550
  %v3145 = vpop.permute.xlu0 %3144
  %3148 = vset.pattern.permute.xlu0 0
  %3149 = vperm.xlu0 %3148, %v2551
  %v3150 = vpop.permute.xlu0 %3149
  %3153 = vset.pattern.permute.xlu0 0
  %3154 = vperm.xlu0 %3153, %v2552
  %v3155 = vpop.permute.xlu0 %3154
  %3158 = vset.pattern.permute.xlu0 0
  %3159 = vperm.xlu0 %3158, %v2553
  %v3160 = vpop.permute.xlu0 %3159
  %3163 = vset.pattern.permute.xlu0 0
  %3164 = vperm.xlu0 %3163, %v2554
  %v3165 = vpop.permute.xlu0 %3164
  %3168 = vset.pattern.permute.xlu0 0
  %3169 = vperm.xlu0 %3168, %v2555
  %v3170 = vpop.permute.xlu0 %3169
  %3173 = vset.pattern.permute.xlu0 0
  %3174 = vperm.xlu0 %3173, %v2556
  %v3175 = vpop.permute.xlu0 %3174
  %3178 = vset.pattern.permute.xlu0 0
  %3179 = vperm.xlu0 %3178, %v2557
  %v3180 = vpop.permute.xlu0 %3179
  %3183 = vset.pattern.permute.xlu0 0
  %3184 = vperm.xlu0 %3183, %v2558
  %v3185 = vpop.permute.xlu0 %3184
  %3188 = vset.pattern.permute.xlu0 0
  %3189 = vperm.xlu0 %3188, %v2559
  %v3190 = vpop.permute.xlu0 %3189
  %3193 = vset.pattern.permute.xlu0 0
  %3194 = vperm.xlu0 %3193, %v2560
  %v3195 = vpop.permute.xlu0 %3194
  %3198 = vset.pattern.permute.xlu0 0
  %3199 = vperm.xlu0 %3198, %v2561
  %v3200 = vpop.permute.xlu0 %3199
  %3203 = vset.pattern.permute.xlu0 0
  %3204 = vperm.xlu0 %3203, %v2562
  %v3205 = vpop.permute.xlu0 %3204
  %3208 = vset.pattern.permute.xlu0 0
  %3209 = vperm.xlu0 %3208, %v2563
  %v3210 = vpop.permute.xlu0 %3209
  %3213 = vset.pattern.permute.xlu0 0
  %3214 = vperm.xlu0 %3213, %v2564
  %v3215 = vpop.permute.xlu0 %3214
  %3218 = vset.pattern.permute.xlu0 0
  %3219 = vperm.xlu0 %3218, %v2565
  %v3220 = vpop.permute.xlu0 %3219
  %3223 = vset.pattern.permute.xlu0 0
  %3224 = vperm.xlu0 %3223, %v2566
  %v3225 = vpop.permute.xlu0 %3224
  %3228 = vset.pattern.permute.xlu0 0
  %3229 = vperm.xlu0 %3228, %v2567
  %v3230 = vpop.permute.xlu0 %3229
  %3233 = vset.pattern.permute.xlu0 0
  %3234 = vperm.xlu0 %3233, %v2568
  %v3235 = vpop.permute.xlu0 %3234
  %3238 = vset.pattern.permute.xlu0 0
  %3239 = vperm.xlu0 %3238, %v2569
  %v3240 = vpop.permute.xlu0 %3239
  %3243 = vset.pattern.permute.xlu0 0
  %3244 = vperm.xlu0 %3243, %v2570
  %v3245 = vpop.permute.xlu0 %3244
  %3248 = vset.pattern.permute.xlu0 0
  %3249 = vperm.xlu0 %3248, %v2571
  %v3250 = vpop.permute.xlu0 %3249
  %3253 = vset.pattern.permute.xlu0 0
  %3254 = vperm.xlu0 %3253, %v2572
  %v3255 = vpop.permute.xlu0 %3254
  %3258 = vset.pattern.permute.xlu0 0
  %3259 = vperm.xlu0 %3258, %v2573
  %v3260 = vpop.permute.xlu0 %3259
  %3263 = vset.pattern.permute.xlu0 0
  %3264 = vperm.xlu0 %3263, %v2574
  %v3265 = vpop.permute.xlu0 %3264
  %3268 = vset.pattern.permute.xlu0 0
  %3269 = vperm.xlu0 %3268, %v2575
  %v3270 = vpop.permute.xlu0 %3269
  %3273 = vset.pattern.permute.xlu0 0
  %3274 = vperm.xlu0 %3273, %v2576
  %v3275 = vpop.permute.xlu0 %3274
  %3278 = vset.pattern.permute.xlu0 0
  %3279 = vperm.xlu0 %3278, %v2577
  %v3280 = vpop.permute.xlu0 %3279
  %3283 = vset.pattern.permute.xlu0 0
  %3284 = vperm.xlu0 %3283, %v2578
  %v3285 = vpop.permute.xlu0 %3284
  %3288 = vset.pattern.permute.xlu0 0
  %3289 = vperm.xlu0 %3288, %v2579
  %v3290 = vpop.permute.xlu0 %3289
  %3293 = vset.pattern.permute.xlu0 0
  %3294 = vperm.xlu0 %3293, %v2580
  %v3295 = vpop.permute.xlu0 %3294
  %3298 = vset.pattern.permute.xlu0 0
  %3299 = vperm.xlu0 %3298, %v2581
  %v3300 = vpop.permute.xlu0 %3299
  %v3302 = vadd.f32 %v2882, %v3005
  %v3303 = vadd.f32 %v2883, %v3005
  %v3304 = vadd.f32 %v2884, %v3010
  %v3305 = vadd.f32 %v2885, %v3010
  %v3306 = vadd.f32 %v2886, %v3015
  %v3307 = vadd.f32 %v2887, %v3015
  %v3308 = vadd.f32 %v2888, %v3020
  %v3309 = vadd.f32 %v2889, %v3020
  %v3310 = vadd.f32 %v2890, %v3025
  %v3311 = vadd.f32 %v2891, %v3025
  %v3312 = vadd.f32 %v2892, %v3030
  %v3313 = vadd.f32 %v2893, %v3030
  %v3314 = vadd.f32 %v2894, %v3035
  %v3315 = vadd.f32 %v2895, %v3035
  %v3316 = vadd.f32 %v2896, %v3040
  %v3317 = vadd.f32 %v2897, %v3040
  %v3318 = vadd.f32 %v2898, %v3045
  %v3319 = vadd.f32 %v2899, %v3045
  %v3320 = vadd.f32 %v2900, %v3050
  %v3321 = vadd.f32 %v2901, %v3050
  %v3322 = vadd.f32 %v2902, %v3055
  %v3323 = vadd.f32 %v2903, %v3055
  %v3324 = vadd.f32 %v2904, %v3060
  %v3325 = vadd.f32 %v2905, %v3060
  %v3326 = vadd.f32 %v2906, %v3065
  %v3327 = vadd.f32 %v2907, %v3065
  %v3328 = vadd.f32 %v2908, %v3070
  %v3329 = vadd.f32 %v2909, %v3070
  %v3330 = vadd.f32 %v2910, %v3075
  %v3331 = vadd.f32 %v2911, %v3075
  %v3332 = vadd.f32 %v2912, %v3080
  %v3333 = vadd.f32 %v2913, %v3080
  %v3334 = vadd.f32 %v2914, %v3085
  %v3335 = vadd.f32 %v2915, %v3085
  %v3336 = vadd.f32 %v2916, %v3090
  %v3337 = vadd.f32 %v2917, %v3090
  %v3338 = vadd.f32 %v2918, %v3095
  %v3339 = vadd.f32 %v2919, %v3095
  %v3340 = vadd.f32 %v2920, %v3100
  %v3341 = vadd.f32 %v2921, %v3100
  %v3342 = vadd.f32 %v2922, %v3105
  %v3343 = vadd.f32 %v2923, %v3105
  %v3344 = vadd.f32 %v2924, %v3110
  %v3345 = vadd.f32 %v2925, %v3110
  %v3346 = vadd.f32 %v2926, %v3115
  %v3347 = vadd.f32 %v2927, %v3115
  %v3348 = vadd.f32 %v2928, %v3120
  %v3349 = vadd.f32 %v2929, %v3120
  %v3350 = vadd.f32 %v2930, %v3125
  %v3351 = vadd.f32 %v2931, %v3125
  %v3352 = vadd.f32 %v2932, %v3130
  %v3353 = vadd.f32 %v2933, %v3130
  %v3354 = vadd.f32 %v2934, %v3135
  %v3355 = vadd.f32 %v2935, %v3135
  %v3356 = vadd.f32 %v2936, %v3140
  %v3357 = vadd.f32 %v2937, %v3140
  %v3358 = vadd.f32 %v2938, %v3145
  %v3359 = vadd.f32 %v2939, %v3145
  %v3360 = vadd.f32 %v2940, %v3150
  %v3361 = vadd.f32 %v2941, %v3150
  %v3362 = vadd.f32 %v2942, %v3155
  %v3363 = vadd.f32 %v2943, %v3155
  %v3364 = vadd.f32 %v2944, %v3160
  %v3365 = vadd.f32 %v2945, %v3160
  %v3366 = vadd.f32 %v2946, %v3165
  %v3367 = vadd.f32 %v2947, %v3165
  %v3368 = vadd.f32 %v2948, %v3170
  %v3369 = vadd.f32 %v2949, %v3170
  %v3370 = vadd.f32 %v2950, %v3175
  %v3371 = vadd.f32 %v2951, %v3175
  %v3372 = vadd.f32 %v2952, %v3180
  %v3373 = vadd.f32 %v2953, %v3180
  %v3374 = vadd.f32 %v2954, %v3185
  %v3375 = vadd.f32 %v2955, %v3185
  %v3376 = vadd.f32 %v2956, %v3190
  %v3377 = vadd.f32 %v2957, %v3190
  %v3378 = vadd.f32 %v2958, %v3195
  %v3379 = vadd.f32 %v2959, %v3195
  %v3380 = vadd.f32 %v2960, %v3200
  %v3381 = vadd.f32 %v2961, %v3200
  %v3382 = vadd.f32 %v2962, %v3205
  %v3383 = vadd.f32 %v2963, %v3205
  %v3384 = vadd.f32 %v2964, %v3210
  %v3385 = vadd.f32 %v2965, %v3210
  %v3386 = vadd.f32 %v2966, %v3215
  %v3387 = vadd.f32 %v2967, %v3215
  %v3388 = vadd.f32 %v2968, %v3220
  %v3389 = vadd.f32 %v2969, %v3220
  %v3390 = vadd.f32 %v2970, %v3225
  %v3391 = vadd.f32 %v2971, %v3225
  %v3392 = vadd.f32 %v2972, %v3230
  %v3393 = vadd.f32 %v2973, %v3230
  %v3394 = vadd.f32 %v2974, %v3235
  %v3395 = vadd.f32 %v2975, %v3235
  %v3396 = vadd.f32 %v2976, %v3240
  %v3397 = vadd.f32 %v2977, %v3240
  %v3398 = vadd.f32 %v2978, %v3245
  %v3399 = vadd.f32 %v2979, %v3245
  %v3400 = vadd.f32 %v2980, %v3250
  %v3401 = vadd.f32 %v2981, %v3250
  %v3402 = vadd.f32 %v2982, %v3255
  %v3403 = vadd.f32 %v2983, %v3255
  %v3404 = vadd.f32 %v2984, %v3260
  %v3405 = vadd.f32 %v2985, %v3260
  %v3406 = vadd.f32 %v2986, %v3265
  %v3407 = vadd.f32 %v2987, %v3265
  %v3408 = vadd.f32 %v2988, %v3270
  %v3409 = vadd.f32 %v2989, %v3270
  %v3410 = vadd.f32 %v2990, %v3275
  %v3411 = vadd.f32 %v2991, %v3275
  %v3412 = vadd.f32 %v2992, %v3280
  %v3413 = vadd.f32 %v2993, %v3280
  %v3414 = vadd.f32 %v2994, %v3285
  %v3415 = vadd.f32 %v2995, %v3285
  %v3416 = vadd.f32 %v2996, %v3290
  %v3417 = vadd.f32 %v2997, %v3290
  %v3418 = vadd.f32 %v2998, %v3295
  %v3419 = vadd.f32 %v2999, %v3295
  %v3420 = vadd.f32 %v3000, %v3300
  %v3421 = vadd.f32 %v3001, %v3300
  %3422 = vst [vmem:[%s8] sm:$0xff] %v3302
  %3423 = vst.msk [vmem:[%s8 + $0x8] sm:$0xff] %vm265, %v3303
  %3424 = vst [vmem:[%s8 + $0x10] sm:$0xff] %v3304
  %3425 = vst.msk [vmem:[%s8 + $0x18] sm:$0xff] %vm265, %v3305
  %3426 = vst [vmem:[%s8 + $0x20] sm:$0xff] %v3306
  %3427 = vst.msk [vmem:[%s8 + $0x28] sm:$0xff] %vm265, %v3307
  %3428 = vst [vmem:[%s8 + $0x30] sm:$0xff] %v3308
  %3429 = vst.msk [vmem:[%s8 + $0x38] sm:$0xff] %vm265, %v3309
  %3430 = vst [vmem:[%s8 + $0x40] sm:$0xff] %v3310
  %3431 = vst.msk [vmem:[%s8 + $0x48] sm:$0xff] %vm265, %v3311
  %3432 = vst [vmem:[%s8 + $0x50] sm:$0xff] %v3312
  %3433 = vst.msk [vmem:[%s8 + $0x58] sm:$0xff] %vm265, %v3313
  %3434 = vst [vmem:[%s8 + $0x60] sm:$0xff] %v3314
  %3435 = vst.msk [vmem:[%s8 + $0x68] sm:$0xff] %vm265, %v3315
  %3436 = vst [vmem:[%s8 + $0x70] sm:$0xff] %v3316
  %3437 = vst.msk [vmem:[%s8 + $0x78] sm:$0xff] %vm265, %v3317
  %3438 = vst [vmem:[%s8 + $0x80] sm:$0xff] %v3318
  %3439 = vst.msk [vmem:[%s8 + $0x88] sm:$0xff] %vm265, %v3319
  %3440 = vst [vmem:[%s8 + $0x90] sm:$0xff] %v3320
  %3441 = vst.msk [vmem:[%s8 + $0x98] sm:$0xff] %vm265, %v3321
  %3442 = vst [vmem:[%s8 + $0xa0] sm:$0xff] %v3322
  %3443 = vst.msk [vmem:[%s8 + $0xa8] sm:$0xff] %vm265, %v3323
  %3444 = vst [vmem:[%s8 + $0xb0] sm:$0xff] %v3324
  %3445 = vst.msk [vmem:[%s8 + $0xb8] sm:$0xff] %vm265, %v3325
  %3446 = vst [vmem:[%s8 + $0xc0] sm:$0xff] %v3326
  %3447 = vst.msk [vmem:[%s8 + $0xc8] sm:$0xff] %vm265, %v3327
  %3448 = vst [vmem:[%s8 + $0xd0] sm:$0xff] %v3328
  %3449 = vst.msk [vmem:[%s8 + $0xd8] sm:$0xff] %vm265, %v3329
  %3450 = vst [vmem:[%s8 + $0xe0] sm:$0xff] %v3330
  %3451 = vst.msk [vmem:[%s8 + $0xe8] sm:$0xff] %vm265, %v3331
  %3452 = vst [vmem:[%s8 + $0xf0] sm:$0xff] %v3332
  %3453 = vst.msk [vmem:[%s8 + $0xf8] sm:$0xff] %vm265, %v3333
  %3454 = vst [vmem:[%s8 + $0x100] sm:$0xff] %v3334
  %3455 = vst.msk [vmem:[%s8 + $0x108] sm:$0xff] %vm265, %v3335
  %3456 = vst [vmem:[%s8 + $0x110] sm:$0xff] %v3336
  %3457 = vst.msk [vmem:[%s8 + $0x118] sm:$0xff] %vm265, %v3337
  %3458 = vst [vmem:[%s8 + $0x120] sm:$0xff] %v3338
  %3459 = vst.msk [vmem:[%s8 + $0x128] sm:$0xff] %vm265, %v3339
  %3460 = vst [vmem:[%s8 + $0x130] sm:$0xff] %v3340
  %3461 = vst.msk [vmem:[%s8 + $0x138] sm:$0xff] %vm265, %v3341
  %3462 = vst [vmem:[%s8 + $0x140] sm:$0xff] %v3342
  %3463 = vst.msk [vmem:[%s8 + $0x148] sm:$0xff] %vm265, %v3343
  %3464 = vst [vmem:[%s8 + $0x150] sm:$0xff] %v3344
  %3465 = vst.msk [vmem:[%s8 + $0x158] sm:$0xff] %vm265, %v3345
  %3466 = vst [vmem:[%s8 + $0x160] sm:$0xff] %v3346
  %3467 = vst.msk [vmem:[%s8 + $0x168] sm:$0xff] %vm265, %v3347
  %3468 = vst [vmem:[%s8 + $0x170] sm:$0xff] %v3348
  %3469 = vst.msk [vmem:[%s8 + $0x178] sm:$0xff] %vm265, %v3349
  %3470 = vst [vmem:[%s8 + $0x180] sm:$0xff] %v3350
  %3471 = vst.msk [vmem:[%s8 + $0x188] sm:$0xff] %vm265, %v3351
  %3472 = vst [vmem:[%s8 + $0x190] sm:$0xff] %v3352
  %3473 = vst.msk [vmem:[%s8 + $0x198] sm:$0xff] %vm265, %v3353
  %3474 = vst [vmem:[%s8 + $0x1a0] sm:$0xff] %v3354
  %3475 = vst.msk [vmem:[%s8 + $0x1a8] sm:$0xff] %vm265, %v3355
  %3476 = vst [vmem:[%s8 + $0x1b0] sm:$0xff] %v3356
  %3477 = vst.msk [vmem:[%s8 + $0x1b8] sm:$0xff] %vm265, %v3357
  %3478 = vst [vmem:[%s8 + $0x1c0] sm:$0xff] %v3358
  %3479 = vst.msk [vmem:[%s8 + $0x1c8] sm:$0xff] %vm265, %v3359
  %3480 = vst [vmem:[%s8 + $0x1d0] sm:$0xff] %v3360
  %3481 = vst.msk [vmem:[%s8 + $0x1d8] sm:$0xff] %vm265, %v3361
  %3482 = vst [vmem:[%s8 + $0x1e0] sm:$0xff] %v3362
  %3483 = vst.msk [vmem:[%s8 + $0x1e8] sm:$0xff] %vm265, %v3363
  %3484 = vst [vmem:[%s8 + $0x1f0] sm:$0xff] %v3364
  %3485 = vst.msk [vmem:[%s8 + $0x1f8] sm:$0xff] %vm265, %v3365
  %3486 = vst [vmem:[%s8 + $0x200] sm:$0xff] %v3366
  %3487 = vst.msk [vmem:[%s8 + $0x208] sm:$0xff] %vm265, %v3367
  %3488 = vst [vmem:[%s8 + $0x210] sm:$0xff] %v3368
  %3489 = vst.msk [vmem:[%s8 + $0x218] sm:$0xff] %vm265, %v3369
  %3490 = vst [vmem:[%s8 + $0x220] sm:$0xff] %v3370
  %3491 = vst.msk [vmem:[%s8 + $0x228] sm:$0xff] %vm265, %v3371
  %3492 = vst [vmem:[%s8 + $0x230] sm:$0xff] %v3372
  %3493 = vst.msk [vmem:[%s8 + $0x238] sm:$0xff] %vm265, %v3373
  %3494 = vst [vmem:[%s8 + $0x240] sm:$0xff] %v3374
  %3495 = vst.msk [vmem:[%s8 + $0x248] sm:$0xff] %vm265, %v3375
  %3496 = vst [vmem:[%s8 + $0x250] sm:$0xff] %v3376
  %3497 = vst.msk [vmem:[%s8 + $0x258] sm:$0xff] %vm265, %v3377
  %3498 = vst [vmem:[%s8 + $0x260] sm:$0xff] %v3378
  %3499 = vst.msk [vmem:[%s8 + $0x268] sm:$0xff] %vm265, %v3379
  %3500 = vst [vmem:[%s8 + $0x270] sm:$0xff] %v3380
  %3501 = vst.msk [vmem:[%s8 + $0x278] sm:$0xff] %vm265, %v3381
  %3502 = vst [vmem:[%s8 + $0x280] sm:$0xff] %v3382
  %3503 = vst.msk [vmem:[%s8 + $0x288] sm:$0xff] %vm265, %v3383
  %3504 = vst [vmem:[%s8 + $0x290] sm:$0xff] %v3384
  %3505 = vst.msk [vmem:[%s8 + $0x298] sm:$0xff] %vm265, %v3385
  %3506 = vst [vmem:[%s8 + $0x2a0] sm:$0xff] %v3386
  %3507 = vst.msk [vmem:[%s8 + $0x2a8] sm:$0xff] %vm265, %v3387
  %3508 = vst [vmem:[%s8 + $0x2b0] sm:$0xff] %v3388
  %3509 = vst.msk [vmem:[%s8 + $0x2b8] sm:$0xff] %vm265, %v3389
  %3510 = vst [vmem:[%s8 + $0x2c0] sm:$0xff] %v3390
  %3511 = vst.msk [vmem:[%s8 + $0x2c8] sm:$0xff] %vm265, %v3391
  %3512 = vst [vmem:[%s8 + $0x2d0] sm:$0xff] %v3392
  %3513 = vst.msk [vmem:[%s8 + $0x2d8] sm:$0xff] %vm265, %v3393
  %3514 = vst [vmem:[%s8 + $0x2e0] sm:$0xff] %v3394
  %3515 = vst.msk [vmem:[%s8 + $0x2e8] sm:$0xff] %vm265, %v3395
  %3516 = vst [vmem:[%s8 + $0x2f0] sm:$0xff] %v3396
  %3517 = vst.msk [vmem:[%s8 + $0x2f8] sm:$0xff] %vm265, %v3397
  %3518 = vst [vmem:[%s8 + $0x300] sm:$0xff] %v3398
  %3519 = vst.msk [vmem:[%s8 + $0x308] sm:$0xff] %vm265, %v3399
  %3520 = vst [vmem:[%s8 + $0x310] sm:$0xff] %v3400
  %3521 = vst.msk [vmem:[%s8 + $0x318] sm:$0xff] %vm265, %v3401
  %3522 = vst [vmem:[%s8 + $0x320] sm:$0xff] %v3402
  %3523 = vst.msk [vmem:[%s8 + $0x328] sm:$0xff] %vm265, %v3403
  %3524 = vst [vmem:[%s8 + $0x330] sm:$0xff] %v3404
  %3525 = vst.msk [vmem:[%s8 + $0x338] sm:$0xff] %vm265, %v3405
  %3526 = vst [vmem:[%s8 + $0x340] sm:$0xff] %v3406
  %3527 = vst.msk [vmem:[%s8 + $0x348] sm:$0xff] %vm265, %v3407
  %3528 = vst [vmem:[%s8 + $0x350] sm:$0xff] %v3408
  %3529 = vst.msk [vmem:[%s8 + $0x358] sm:$0xff] %vm265, %v3409
  %3530 = vst [vmem:[%s8 + $0x360] sm:$0xff] %v3410
  %3531 = vst.msk [vmem:[%s8 + $0x368] sm:$0xff] %vm265, %v3411
  %3532 = vst [vmem:[%s8 + $0x370] sm:$0xff] %v3412
  %3533 = vst.msk [vmem:[%s8 + $0x378] sm:$0xff] %vm265, %v3413
  %3534 = vst [vmem:[%s8 + $0x380] sm:$0xff] %v3414
  %3535 = vst.msk [vmem:[%s8 + $0x388] sm:$0xff] %vm265, %v3415
  %3536 = vst [vmem:[%s8 + $0x390] sm:$0xff] %v3416
  %3537 = vst.msk [vmem:[%s8 + $0x398] sm:$0xff] %vm265, %v3417
  %3538 = vst [vmem:[%s8 + $0x3a0] sm:$0xff] %v3418
  %3539 = vst.msk [vmem:[%s8 + $0x3a8] sm:$0xff] %vm265, %v3419
  %3540 = vst [vmem:[%s8 + $0x3b0] sm:$0xff] %v3420
  %3541 = vst.msk [vmem:[%s8 + $0x3b8] sm:$0xff] %vm265, %v3421
  // Predicated region
  $region34: #{tpu_custom_call.1} parent=0 // pred_check
    _
  $region35: #{tpu_custom_call.1} parent=0 // pred_check_branch
    %3543 = sbr.rel (0) target = $region37
  $region36: #{tpu_custom_call.1} parent=0 // pred_region
    _
  $region37: #{tpu_custom_call.1} parent=0 // pred_fallthru
    _
  // Predicated region
  $region38: #{tpu_custom_call.1} parent=0 // pred_check
    _
  $region39: #{tpu_custom_call.1} parent=0 // pred_check_branch
    %3545 = sbr.rel (0) target = $region41
  $region40: #{tpu_custom_call.1} parent=0 // pred_region
    _
  $region41: #{tpu_custom_call.1} parent=0 // pred_fallthru
    _

</llo_original>
